<compile_context>
chip_gen: v7x
topology: tpu7x:2x2x1
jax: 0.10.0
libtpu: 0.0.40
codegen_flags: <defaults>
</compile_context>

<pallas_src>
import jax
import jax.numpy as jnp
from jax.experimental import pallas as pl
from jax.experimental.pallas import tpu as pltpu


def seblk_kernel(x_ref, fused_down_ref, b_down_ref, w_up_t_ref, b_up_ref,
                 expand_ref, out_ref):
    # x_ref/out_ref   : (tb, C*L)   lane-dense view of (tb, C, L)
    # fused_down_ref  : (C*L, Cr)   (pool * 1/L) @ w_down^T   (pre-fused)
    # b_down_ref      : (1, Cr)
    # w_up_t_ref      : (Cr, C)     Conv1d(Cr->C, k=1) weight, pre-transposed
    # b_up_ref        : (1, C)
    # expand_ref      : (C, C*L)    block "diagonal" of 1 -> gate broadcast
    x = x_ref[...]                                            # (tb, C*L)
    hi = jax.lax.Precision.HIGHEST

    # --- squeeze + down-projection fused into one MXU matmul, then ReLU ---
    h = jnp.dot(x, fused_down_ref[...], precision=hi,
                preferred_element_type=jnp.float32) + b_down_ref[...]
    h = jnp.maximum(h, 0.0)                                   # (tb, Cr)

    # --- up-projection + Sigmoid (small) ---
    z = jnp.dot(h, w_up_t_ref[...], precision=hi,
                preferred_element_type=jnp.float32) + b_up_ref[...]
    s = jax.nn.sigmoid(z)                                     # (tb, C)

    # --- broadcast gate over L on the MXU, rescale X in its native dtype ---
    s_full = jnp.dot(s, expand_ref[...], precision=hi,
                     preferred_element_type=jnp.float32)      # (tb, C*L)
    out_ref[...] = (x * s_full.astype(x.dtype)).astype(out_ref.dtype)


def _pick_tile_b(B, C, L, itemsize, vmem_budget_bytes):
    """Largest batch tile whose pipelined VMEM footprint fits the budget."""
    # Per grid step the pipeline holds 2 (double-buffer) x (input + output) slabs.
    per_row = 4 * C * L * itemsize
    max_tb = max(1, vmem_budget_bytes // per_row)
    if B <= max_tb:
        return B                         # whole batch fits -> grid of 1
    tb = (max_tb // 8) * 8               # keep second-minor dim a multiple of 8
    while tb >= 8:
        if B % tb == 0:
            return tb
        tb -= 8
    return B                             # fallback: no suitable divisor


def seblk_forward(x, w_down, b_down, w_up, b_up, *,
                  tile_b=None, vmem_budget_bytes=24 * 1024 * 1024):
    """SE block forward.

    x:      (B, C, L)  activations (PyTorch Conv1d layout).
    w_down: (Cr, C)    Conv1d(C -> Cr, k=1) weight, kernel dim squeezed.
    b_down: (Cr,)
    w_up:   (C, Cr)    Conv1d(Cr -> C, k=1) weight, kernel dim squeezed.
    b_up:   (C,)
    """
    B, C, L = x.shape
    Cr = w_down.shape[0]
    itemsize = jnp.dtype(x.dtype).itemsize

    if tile_b is None:
        tile_b = _pick_tile_b(B, C, L, itemsize, vmem_budget_bytes)
    if B % tile_b != 0:
        tile_b = B       # TODO(synk): pad batch for ragged tiles instead
    grid = (B // tile_b,)

    # Lane-dense view: last dim becomes C*L (row-major reshape is free).
    x_flat = x.reshape(B, C * L)

    # Constant matrices for the lane-dense layout.
    eye_c = jnp.eye(C, dtype=jnp.float32)
    pool = jnp.repeat(eye_c, L, axis=0) * (1.0 / L)     # (C*L, C): mean over L
    expand = jnp.repeat(eye_c, L, axis=1)               # (C, C*L): broadcast over L

    # Fuse pooling into the down-projection: one big-tile matmul instead of two.
    w_down_t = w_down.T.astype(jnp.float32)             # (C, Cr)
    fused_down = pool @ w_down_t                        # (C*L, Cr)
    w_up_t = w_up.T.astype(jnp.float32)                 # (Cr, C)
    b_down2 = b_down.reshape(1, Cr).astype(jnp.float32)
    b_up2 = b_up.reshape(1, C).astype(jnp.float32)

    weight_bytes = 4 * (fused_down.size + expand.size + w_up_t.size
                        + b_down2.size + b_up2.size)
    cost = pl.CostEstimate(
        flops=(2 * B * C * L * Cr       # fused pooling + down projection
               + 2 * B * Cr * C         # up projection
               + 2 * B * C * C * L      # gate-broadcast matmul
               + B * C * L),            # rescale
        transcendentals=B * C,          # sigmoid
        bytes_accessed=2 * B * C * L * itemsize + weight_bytes,
    )

    out_flat = pl.pallas_call(
        seblk_kernel,
        out_shape=jax.ShapeDtypeStruct((B, C * L), x.dtype),
        grid_spec=pltpu.PrefetchScalarGridSpec(
            num_scalar_prefetch=0,
            grid=grid,
            in_specs=[
                pl.BlockSpec((tile_b, C * L), lambda i: (i, 0)),   # x slab
                pl.BlockSpec((C * L, Cr), lambda i: (0, 0)),       # fused_down
                pl.BlockSpec((1, Cr), lambda i: (0, 0)),           # b_down
                pl.BlockSpec((Cr, C), lambda i: (0, 0)),           # w_up^T
                pl.BlockSpec((1, C), lambda i: (0, 0)),            # b_up
                pl.BlockSpec((C, C * L), lambda i: (0, 0)),        # expand
            ],
            out_specs=pl.BlockSpec((tile_b, C * L), lambda i: (i, 0)),
        ),
        compiler_params=pltpu.CompilerParams(
            dimension_semantics=("parallel",),        # batch blocks independent
            vmem_limit_bytes=32 * 1024 * 1024,        # explicit, safe on v5e/v6e/v7x
        ),
        cost_estimate=cost,
    )(x_flat, fused_down, b_down2, w_up_t, b_up2, expand)

    return out_flat.reshape(B, C, L)


def seblk_reference(x, w_down, b_down, w_up, b_up):
    """Pure-JAX reference mirroring the PyTorch forward."""
    y = jnp.mean(x, axis=-1)                                  # (B, C)
    h = jnp.maximum(y @ w_down.T + b_down, 0.0)               # (B, Cr)
    s = jax.nn.sigmoid(h @ w_up.T + b_up)                     # (B, C)
    return x * s[:, :, None]


if __name__ == "__main__":
    B, C, L = 16, 32, 16
    ratio = 16
    Cr = C // ratio   # 2

    key = jax.random.PRNGKey(0)
    kx, kw1, kb1, kw2, kb2 = jax.random.split(key, 5)

    x = jax.random.normal(kx, (B, C, L), dtype=jnp.float32)

    # Deterministic synthetic Conv1d(k=1) parameters (kernel dim squeezed).
    w_down = 0.1 * jax.random.normal(kw1, (Cr, C), dtype=jnp.float32)
    b_down = 0.1 * jax.random.normal(kb1, (Cr,), dtype=jnp.float32)
    w_up = 0.1 * jax.random.normal(kw2, (C, Cr), dtype=jnp.float32)
    b_up = 0.1 * jax.random.normal(kb2, (C,), dtype=jnp.float32)

    # tile_b=8 -> grid=(2,): exercises the tiled / pipelined path.
    out = seblk_forward(x, w_down, b_down, w_up, b_up, tile_b=8)
    out = jax.block_until_ready(out)

    ref = seblk_reference(x, w_down, b_down, w_up, b_up)
    assert out.shape == (B, C, L)
    assert jnp.allclose(out, ref, atol=1e-5, rtol=1e-4), "mismatch vs reference"

    print("KERNEL_OK")
</pallas_src>

<mosaic_0001>
module attributes {stable_mosaic.version = 11 : i64} {
  func.func @seblk_kernel(%arg0: i32, %arg1: memref<8x512xf32, #tpu.memory_space<vmem>>, %arg2: memref<512x2xf32, #tpu.memory_space<vmem>>, %arg3: memref<1x2xf32, #tpu.memory_space<vmem>>, %arg4: memref<2x32xf32, #tpu.memory_space<vmem>>, %arg5: memref<1x32xf32, #tpu.memory_space<vmem>>, %arg6: memref<32x512xf32, #tpu.memory_space<vmem>>, %arg7: memref<8x512xf32, #tpu.memory_space<vmem>>) attributes {dimension_semantics = [#tpu.dimension_semantics<parallel>], iteration_bounds = array<i64: 2>, scalar_prefetch = 0 : i64, scratch_operands = 0 : i64, tpu.core_type = #tpu.core_type<tc>, window_params = [{transform_indices = @transform_0, window_bounds = array<i64: 8, 512>}, {pipeline_mode = #tpu.pipeline_mode<synchronous>, transform_indices = @transform_1, window_bounds = array<i64: 512, 2>}, {pipeline_mode = #tpu.pipeline_mode<synchronous>, transform_indices = @transform_2, window_bounds = array<i64: 1, 2>}, {pipeline_mode = #tpu.pipeline_mode<synchronous>, transform_indices = @transform_3, window_bounds = array<i64: 2, 32>}, {pipeline_mode = #tpu.pipeline_mode<synchronous>, transform_indices = @transform_4, window_bounds = array<i64: 1, 32>}, {pipeline_mode = #tpu.pipeline_mode<synchronous>, transform_indices = @transform_5, window_bounds = array<i64: 32, 512>}, {transform_indices = @transform_6, window_bounds = array<i64: 8, 512>}]} {
    %c0 = arith.constant 0 : index
    %c0_0 = arith.constant 0 : index
    %0 = vector.load %arg1[%c0, %c0_0] : memref<8x512xf32, #tpu.memory_space<vmem>>, vector<8x512xf32>
    %c0_1 = arith.constant 0 : index
    %c0_2 = arith.constant 0 : index
    %1 = vector.load %arg2[%c0_1, %c0_2] : memref<512x2xf32, #tpu.memory_space<vmem>>, vector<512x2xf32>
    %cst = arith.constant dense<0.000000e+00> : vector<8x2xf32>
    %2 = tpu.matmul %0, %1, %cst {dimension_numbers = #tpu.dot_dimension_numbers<[1], [0], [0], [1], [0, 0, 1, 1], [], []>, precision = #tpu.contract_precision<fp32>} : vector<8x512xf32>, vector<512x2xf32>, vector<8x2xf32> -> vector<8x2xf32>
    %c0_3 = arith.constant 0 : index
    %c0_4 = arith.constant 0 : index
    %3 = vector.load %arg3[%c0_3, %c0_4] : memref<1x2xf32, #tpu.memory_space<vmem>>, vector<1x2xf32>
    %4 = vector.broadcast %3 : vector<1x2xf32> to vector<8x2xf32>
    %5 = arith.addf %2, %4 : vector<8x2xf32>
    %cst_5 = arith.constant 0.000000e+00 : f32
    %6 = vector.broadcast %cst_5 : f32 to vector<8x2xf32>
    %7 = arith.maximumf %5, %6 : vector<8x2xf32>
    %c0_6 = arith.constant 0 : index
    %c0_7 = arith.constant 0 : index
    %8 = vector.load %arg4[%c0_6, %c0_7] : memref<2x32xf32, #tpu.memory_space<vmem>>, vector<2x32xf32>
    %cst_8 = arith.constant dense<0.000000e+00> : vector<8x32xf32>
    %9 = tpu.matmul %7, %8, %cst_8 {dimension_numbers = #tpu.dot_dimension_numbers<[1], [0], [0], [1], [0, 0, 1, 1], [], []>, precision = #tpu.contract_precision<fp32>} : vector<8x2xf32>, vector<2x32xf32>, vector<8x32xf32> -> vector<8x32xf32>
    %c0_9 = arith.constant 0 : index
    %c0_10 = arith.constant 0 : index
    %10 = vector.load %arg5[%c0_9, %c0_10] : memref<1x32xf32, #tpu.memory_space<vmem>>, vector<1x32xf32>
    %11 = vector.broadcast %10 : vector<1x32xf32> to vector<8x32xf32>
    %12 = arith.addf %9, %11 : vector<8x32xf32>
    %13 = arith.negf %12 : vector<8x32xf32>
    %14 = math.exp %13 : vector<8x32xf32>
    %cst_11 = arith.constant 1.000000e+00 : f32
    %15 = vector.broadcast %cst_11 : f32 to vector<8x32xf32>
    %16 = arith.addf %15, %14 : vector<8x32xf32>
    %17 = arith.divf %15, %16 : vector<8x32xf32>
    %c0_12 = arith.constant 0 : index
    %c0_13 = arith.constant 0 : index
    %18 = vector.load %arg6[%c0_12, %c0_13] : memref<32x512xf32, #tpu.memory_space<vmem>>, vector<32x512xf32>
    %cst_14 = arith.constant dense<0.000000e+00> : vector<8x512xf32>
    %19 = tpu.matmul %17, %18, %cst_14 {dimension_numbers = #tpu.dot_dimension_numbers<[1], [0], [0], [1], [0, 0, 1, 1], [], []>, precision = #tpu.contract_precision<fp32>} : vector<8x32xf32>, vector<32x512xf32>, vector<8x512xf32> -> vector<8x512xf32>
    %20 = arith.mulf %0, %19 : vector<8x512xf32>
    %c0_15 = arith.constant 0 : index
    %c0_16 = arith.constant 0 : index
    %21 = vector.load %arg7[%c0_15, %c0_16] : memref<8x512xf32, #tpu.memory_space<vmem>>, vector<8x512xf32>
    tpu.vector_store %arg7[%c0_15, %c0_16], %20 {strides = array<i32>} : memref<8x512xf32, #tpu.memory_space<vmem>>, vector<8x512xf32>,
    return
  }
  func.func @transform_0(%arg0: i32) -> (i32, i32) {
    %c0_i32 = arith.constant 0 : i32
    %c0_i32_0 = arith.constant 0 : i32
    return %arg0, %c0_i32 : i32, i32
  }
  func.func @transform_1(%arg0: i32) -> (i32, i32) {
    %c0_i32 = arith.constant 0 : i32
    %c0_i32_0 = arith.constant 0 : i32
    %c0_i32_1 = arith.constant 0 : i32
    return %c0_i32, %c0_i32_0 : i32, i32
  }
  func.func @transform_2(%arg0: i32) -> (i32, i32) {
    %c0_i32 = arith.constant 0 : i32
    %c0_i32_0 = arith.constant 0 : i32
    %c0_i32_1 = arith.constant 0 : i32
    return %c0_i32, %c0_i32_0 : i32, i32
  }
  func.func @transform_3(%arg0: i32) -> (i32, i32) {
    %c0_i32 = arith.constant 0 : i32
    %c0_i32_0 = arith.constant 0 : i32
    %c0_i32_1 = arith.constant 0 : i32
    return %c0_i32, %c0_i32_0 : i32, i32
  }
  func.func @transform_4(%arg0: i32) -> (i32, i32) {
    %c0_i32 = arith.constant 0 : i32
    %c0_i32_0 = arith.constant 0 : i32
    %c0_i32_1 = arith.constant 0 : i32
    return %c0_i32, %c0_i32_0 : i32, i32
  }
  func.func @transform_5(%arg0: i32) -> (i32, i32) {
    %c0_i32 = arith.constant 0 : i32
    %c0_i32_0 = arith.constant 0 : i32
    %c0_i32_1 = arith.constant 0 : i32
    return %c0_i32, %c0_i32_0 : i32, i32
  }
  func.func @transform_6(%arg0: i32) -> (i32, i32) {
    %c0_i32 = arith.constant 0 : i32
    %c0_i32_0 = arith.constant 0 : i32
    return %arg0, %c0_i32 : i32, i32
  }
}

</mosaic_0001>

<llo_original>
// kernel: tpu_custom_call.1
$region0: #{tpu_custom_call.1}
  #allocation0 [shape = 'u32[]', space=smem, size = 0x4, offset = 0x4, fixed_abs, tag = 'smem constant byte address 0x4 - core index']
  #allocation1 [shape = 'u32[144,128]{1,0:T(1,128)}', space=vmem, size = 0x12000, scoped, tag = 'internal scratch']
  %s0 = inlined_call_operand.vmem [shape: f32[16,512], index: 0, kind: input, shape index: {}]
  %s1 = inlined_call_operand.vmem [shape: f32[512,2], index: 1, kind: input, shape index: {}]
  %s2 = inlined_call_operand.vmem [shape: f32[1,2], index: 2, kind: input, shape index: {}]
  %s3 = inlined_call_operand.vmem [shape: f32[2,32], index: 3, kind: input, shape index: {}]
  %s4 = inlined_call_operand.vmem [shape: f32[1,32], index: 4, kind: input, shape index: {}]
  %s5 = inlined_call_operand.vmem [shape: f32[32,512], index: 5, kind: input, shape index: {}]
  %s6 = inlined_call_operand.hbm [shape: f32[16,512], index: 6, kind: output, shape index: {}]
  %s7 = sld [smem:[#allocation0]]
  $region57: #{tpu_custom_call.1} parent=0
    _
  %s9 = ssub.s32 1, %s7
  %s10 = scalar_select 0, %s9, %s7
  $region1: #{tpu_custom_call.1} parent=0
    #allocation2 [shape = 'u8[32768]{0}', space=vmem, size = 0x8000, scoped, tag = 'output window, operand 0']
    #allocation3 [shape = 's32[2]{0}', space=sflag, size = 0x8, scoped, tag = 'scoped memory for tpu_custom_call.1']
    %11 = vsyncpa [#allocation3], 0
    %s12 = scalar_lea.sflag [#allocation3], 1
    %13 = vsyncpa %s12, 0
    loop: start=0, step=1, limit=4
    $region2: #{tpu_custom_call.1} parent=1 // loop_pre_header
      _
    $region3: #{tpu_custom_call.1} parent=1 // loop_header
      %s15 = sphi 0, %s19
      %p16 = scmp.ge.s32.totalorder %s15, 4
      %s25 = sphi 0, %s27
      %s28 = sphi 0, %s25
      %s29 = sphi 0, %s28
      %s45 = sphi 0, %s29
      %s49 = sphi 0, %s49
      %s51 = sphi 0, %s49
      %s52 = sphi 0, %s51
      %s66 = sphi 0, %s52
      %s70 = sphi 0, %s70
      %s72 = sphi 0, %s70
      %s73 = sphi 0, %s72
      %s87 = sphi 0, %s73
      %s91 = sphi 0, %s91
      %s93 = sphi 0, %s91
      %s94 = sphi 0, %s93
      %s108 = sphi 0, %s94
      %s112 = sphi 0, %s112
      %s114 = sphi 0, %s112
      %s115 = sphi 0, %s114
      %s129 = sphi 0, %s115
      %s133 = sphi 0, %s133
      %s135 = sphi 0, %s133
      %s136 = sphi 0, %s135
      %s150 = sphi 0, %s136
      %s156 = sphi 0, %s158
      %s159 = sphi 0, %s156
      %s160 = sphi 0, %s159
      %s176 = sphi 0, %s160
    $region4: #{tpu_custom_call.1} parent=1 // loop_header_branch
      %18 = sbr.rel (%p16) target = $region8
    $region5: #{tpu_custom_call.1} parent=1 // loop_body
      %s20 = ssub.s32 %s15, 1
      %s21 = ssub.s32 %s15, 2
      %s22 = sadd.s32 %s15, 1
      %s23 = ssub.s32 %s15, %s22
      %p24 = scmp.eq.s32.totalorder %s23, 0
      %s26 = sadd.s32 %s25, 1
      %s27 = scalar_select %p24, %s25, %s26
      %p30 = pneg %p24
      %p31 = scmp.eq.s32.totalorder %s15, 1
      %p32 = por %p30, %p31
      %p33 = scmp.ne.s32.totalorder %s25, %s28
      %p34 = scmp.eq.s32.totalorder %s15, 0
      %p35 = por %p33, %p34
      %p36 = scmp.ne.s32.totalorder %s25, %s28
      %p37 = scmp.eq.s32.totalorder %s20, 1
      %p38 = por %p36, %p37
      %p39 = scmp.ne.s32.totalorder %s28, %s29
      %p40 = scmp.eq.s32.totalorder %s20, 0
      %p41 = por %p39, %p40
      %p42 = scmp.ne.s32.totalorder %s28, %s29
      %p43 = scmp.eq.s32.totalorder %s21, 1
      %p44 = por %p42, %p43
      %p46 = scmp.ne.s32.totalorder %s29, %s45
      %p47 = scmp.eq.s32.totalorder %s21, 0
      %p48 = por %p46, %p47
      %s50 = sadd.s32 %s49, 1
      %p53 = scmp.eq.s32.totalorder %s15, 1
      %p54 = scmp.ne.s32.totalorder %s49, %s51
      %p55 = scmp.eq.s32.totalorder %s15, 0
      %p56 = por %p54, %p55
      %p57 = scmp.ne.s32.totalorder %s49, %s51
      %p58 = scmp.eq.s32.totalorder %s20, 1
      %p59 = por %p57, %p58
      %p60 = scmp.ne.s32.totalorder %s51, %s52
      %p61 = scmp.eq.s32.totalorder %s20, 0
      %p62 = por %p60, %p61
      %p63 = scmp.ne.s32.totalorder %s51, %s52
      %p64 = scmp.eq.s32.totalorder %s21, 1
      %p65 = por %p63, %p64
      %p67 = scmp.ne.s32.totalorder %s52, %s66
      %p68 = scmp.eq.s32.totalorder %s21, 0
      %p69 = por %p67, %p68
      %s71 = sadd.s32 %s70, 1
      %p74 = scmp.eq.s32.totalorder %s15, 1
      %p75 = scmp.ne.s32.totalorder %s70, %s72
      %p76 = scmp.eq.s32.totalorder %s15, 0
      %p77 = por %p75, %p76
      %p78 = scmp.ne.s32.totalorder %s70, %s72
      %p79 = scmp.eq.s32.totalorder %s20, 1
      %p80 = por %p78, %p79
      %p81 = scmp.ne.s32.totalorder %s72, %s73
      %p82 = scmp.eq.s32.totalorder %s20, 0
      %p83 = por %p81, %p82
      %p84 = scmp.ne.s32.totalorder %s72, %s73
      %p85 = scmp.eq.s32.totalorder %s21, 1
      %p86 = por %p84, %p85
      %p88 = scmp.ne.s32.totalorder %s73, %s87
      %p89 = scmp.eq.s32.totalorder %s21, 0
      %p90 = por %p88, %p89
      %s92 = sadd.s32 %s91, 1
      %p95 = scmp.eq.s32.totalorder %s15, 1
      %p96 = scmp.ne.s32.totalorder %s91, %s93
      %p97 = scmp.eq.s32.totalorder %s15, 0
      %p98 = por %p96, %p97
      %p99 = scmp.ne.s32.totalorder %s91, %s93
      %p100 = scmp.eq.s32.totalorder %s20, 1
      %p101 = por %p99, %p100
      %p102 = scmp.ne.s32.totalorder %s93, %s94
      %p103 = scmp.eq.s32.totalorder %s20, 0
      %p104 = por %p102, %p103
      %p105 = scmp.ne.s32.totalorder %s93, %s94
      %p106 = scmp.eq.s32.totalorder %s21, 1
      %p107 = por %p105, %p106
      %p109 = scmp.ne.s32.totalorder %s94, %s108
      %p110 = scmp.eq.s32.totalorder %s21, 0
      %p111 = por %p109, %p110
      %s113 = sadd.s32 %s112, 1
      %p116 = scmp.eq.s32.totalorder %s15, 1
      %p117 = scmp.ne.s32.totalorder %s112, %s114
      %p118 = scmp.eq.s32.totalorder %s15, 0
      %p119 = por %p117, %p118
      %p120 = scmp.ne.s32.totalorder %s112, %s114
      %p121 = scmp.eq.s32.totalorder %s20, 1
      %p122 = por %p120, %p121
      %p123 = scmp.ne.s32.totalorder %s114, %s115
      %p124 = scmp.eq.s32.totalorder %s20, 0
      %p125 = por %p123, %p124
      %p126 = scmp.ne.s32.totalorder %s114, %s115
      %p127 = scmp.eq.s32.totalorder %s21, 1
      %p128 = por %p126, %p127
      %p130 = scmp.ne.s32.totalorder %s115, %s129
      %p131 = scmp.eq.s32.totalorder %s21, 0
      %p132 = por %p130, %p131
      %s134 = sadd.s32 %s133, 1
      %p137 = scmp.eq.s32.totalorder %s15, 1
      %p138 = scmp.ne.s32.totalorder %s133, %s135
      %p139 = scmp.eq.s32.totalorder %s15, 0
      %p140 = por %p138, %p139
      %p141 = scmp.ne.s32.totalorder %s133, %s135
      %p142 = scmp.eq.s32.totalorder %s20, 1
      %p143 = por %p141, %p142
      %p144 = scmp.ne.s32.totalorder %s135, %s136
      %p145 = scmp.eq.s32.totalorder %s20, 0
      %p146 = por %p144, %p145
      %p147 = scmp.ne.s32.totalorder %s135, %s136
      %p148 = scmp.eq.s32.totalorder %s21, 1
      %p149 = por %p147, %p148
      %p151 = scmp.ne.s32.totalorder %s136, %s150
      %p152 = scmp.eq.s32.totalorder %s21, 0
      %p153 = por %p151, %p152
      %s154 = ssub.s32 %s15, %s22
      %p155 = scmp.eq.s32.totalorder %s154, 0
      %s157 = sadd.s32 %s156, 1
      %s158 = scalar_select %p155, %s156, %s157
      %p161 = pneg %p155
      %p162 = scmp.eq.s32.totalorder %s15, 1
      %p163 = por %p161, %p162
      %p164 = scmp.ne.s32.totalorder %s156, %s159
      %p165 = scmp.eq.s32.totalorder %s15, 0
      %p166 = por %p164, %p165
      %p167 = scmp.ne.s32.totalorder %s156, %s159
      %p168 = scmp.eq.s32.totalorder %s20, 1
      %p169 = por %p167, %p168
      %p170 = scmp.ne.s32.totalorder %s159, %s160
      %p171 = scmp.eq.s32.totalorder %s20, 0
      %p172 = por %p170, %p171
      %p173 = scmp.ne.s32.totalorder %s159, %s160
      %p174 = scmp.eq.s32.totalorder %s21, 1
      %p175 = por %p173, %p174
      %p177 = scmp.ne.s32.totalorder %s160, %s176
      %p178 = scmp.eq.s32.totalorder %s21, 0
      %p179 = por %p177, %p178
      %p180 = scmp.le.s32.totalorder 1, %s15
      %p181 = scmp.lt.s32.totalorder %s15, 3
      %p182 = pnand %p180, %p181
      %p183 = pneg %p182
      // Predicated region
      $region9: #{tpu_custom_call.1} parent=5 // pred_check
        _
      $region10: #{tpu_custom_call.1} parent=5 // pred_check_branch
        %185 = sbr.rel (%p182) target = $region12
      $region11: #{tpu_custom_call.1} parent=5 // pred_region
        %s186 = ssub.s32 %s15, 1
        // Predicated region
        $region13: #{tpu_custom_call.1} parent=11 // pred_check
          %p187 = pneg %p62
        $region14: #{tpu_custom_call.1} parent=11 // pred_check_branch
          %189 = sbr.rel (%p187) target = $region16
        $region15: #{tpu_custom_call.1} parent=11 // pred_region
          _
        $region16: #{tpu_custom_call.1} parent=11 // pred_fallthru
          _
        // Predicated region
        $region17: #{tpu_custom_call.1} parent=11 // pred_check
          %p190 = pneg %p83
        $region18: #{tpu_custom_call.1} parent=11 // pred_check_branch
          %192 = sbr.rel (%p190) target = $region20
        $region19: #{tpu_custom_call.1} parent=11 // pred_region
          _
        $region20: #{tpu_custom_call.1} parent=11 // pred_fallthru
          _
        // Predicated region
        $region21: #{tpu_custom_call.1} parent=11 // pred_check
          %p193 = pneg %p104
        $region22: #{tpu_custom_call.1} parent=11 // pred_check_branch
          %195 = sbr.rel (%p193) target = $region24
        $region23: #{tpu_custom_call.1} parent=11 // pred_region
          _
        $region24: #{tpu_custom_call.1} parent=11 // pred_fallthru
          _
        // Predicated region
        $region25: #{tpu_custom_call.1} parent=11 // pred_check
          %p196 = pneg %p125
        $region26: #{tpu_custom_call.1} parent=11 // pred_check_branch
          %198 = sbr.rel (%p196) target = $region28
        $region27: #{tpu_custom_call.1} parent=11 // pred_region
          _
        $region28: #{tpu_custom_call.1} parent=11 // pred_fallthru
          _
        // Predicated region
        $region29: #{tpu_custom_call.1} parent=11 // pred_check
          %p199 = pneg %p146
        $region30: #{tpu_custom_call.1} parent=11 // pred_check_branch
          %201 = sbr.rel (%p199) target = $region32
        $region31: #{tpu_custom_call.1} parent=11 // pred_region
          _
        $region32: #{tpu_custom_call.1} parent=11 // pred_fallthru
          _
      $region12: #{tpu_custom_call.1} parent=5 // pred_fallthru
        _
      %p202 = scmp.lt.s32.totalorder %s15, 2
      // Predicated region
      $region33: #{tpu_custom_call.1} parent=5 // pred_check
        %p203 = pneg %p202
      $region34: #{tpu_custom_call.1} parent=5 // pred_check_branch
        %205 = sbr.rel (%p203) target = $region36
      $region35: #{tpu_custom_call.1} parent=5 // pred_region
        // Predicated region
        $region37: #{tpu_custom_call.1} parent=35 // pred_check
          %p206 = pneg %p35
        $region38: #{tpu_custom_call.1} parent=35 // pred_check_branch
          %208 = sbr.rel (%p206) target = $region40
        $region39: #{tpu_custom_call.1} parent=35 // pred_region
          %p209 = scmp.lt.s32.totalorder %s15, 1
          %s210 = scalar_select %p209, %s15, 1
          %s211 = smul.addr %s210, 4
          %s212 = smul.addr %s211, 8
          %s213 = scalar_lea.vmem %s0, %s212
        $region40: #{tpu_custom_call.1} parent=35 // pred_fallthru
          _
      $region36: #{tpu_custom_call.1} parent=5 // pred_fallthru
        _
      %p214 = scmp.le.s32.totalorder 1, %s15
      %p215 = scmp.lt.s32.totalorder %s15, 3
      %p216 = pnand %p214, %p215
      %p217 = pneg %p216
      // Predicated region
      $region41: #{tpu_custom_call.1} parent=5 // pred_check
        _
      $region42: #{tpu_custom_call.1} parent=5 // pred_check_branch
        %219 = sbr.rel (%p216) target = $region44
      $region43: #{tpu_custom_call.1} parent=5 // pred_region
        %s220 = ssub.s32 %s15, 1
        %p221 = scmp.lt.s32.totalorder %s20, 1
        %s222 = scalar_select %p221, %s20, 1
        %s223 = smul.addr %s222, 4
        %s224 = smul.addr %s223, 8
        %s225 = scalar_lea.vmem %s0, %s224
        %p226 = pneg %p41
        %p227 = pneg %p38
        %p228 = pneg %p62
        %p229 = pneg %p59
        %p230 = pneg %p83
        %p231 = pneg %p80
        %p232 = pneg %p104
        %p233 = pneg %p101
        %p234 = pneg %p125
        %p235 = pneg %p122
        %p236 = pneg %p146
        %p237 = pneg %p143
        %p238 = pneg %p172
        %p239 = pneg %p169
        %s240 = sand.u32 %s159, 1
        %s241 = scalar_lea.sflag [#allocation3], %s240
        %s242 = sand.u32 %s159, 1
        %s243 = smul.addr %s242, 32
        %s244 = scalar_lea.vmem [#allocation2], %s243
        %p245 = scmp.lt.s32.totalorder %s20, 1
        %s246 = scalar_select %p245, %s20, 1
        %s247 = smul.addr %s246, 4
        %s248 = smul.addr %s247, 8
        %s249 = scalar_lea.vmem %s0, %s248
        %v250 = vld [vmem:[%s249] sm:$0xff]
        %v251 = vld [vmem:[%s249 + $0x8] sm:$0xff]
        %v252 = vld [vmem:[%s249 + $0x10] sm:$0xff]
        %v253 = vld [vmem:[%s249 + $0x18] sm:$0xff]
        %v254 = vld [vmem:[%s1] sm:$0xff]
        %v255 = vld [vmem:[%s1 + $0x8] sm:$0xff]
        %v256 = vld [vmem:[%s1 + $0x10] sm:$0xff]
        %v257 = vld [vmem:[%s1 + $0x18] sm:$0xff]
        %v258 = vld [vmem:[%s1 + $0x20] sm:$0xff]
        %v259 = vld [vmem:[%s1 + $0x28] sm:$0xff]
        %v260 = vld [vmem:[%s1 + $0x30] sm:$0xff]
        %v261 = vld [vmem:[%s1 + $0x38] sm:$0xff]
        %v262 = vld [vmem:[%s1 + $0x40] sm:$0xff]
        %v263 = vld [vmem:[%s1 + $0x48] sm:$0xff]
        %v264 = vld [vmem:[%s1 + $0x50] sm:$0xff]
        %v265 = vld [vmem:[%s1 + $0x58] sm:$0xff]
        %v266 = vld [vmem:[%s1 + $0x60] sm:$0xff]
        %v267 = vld [vmem:[%s1 + $0x68] sm:$0xff]
        %v268 = vld [vmem:[%s1 + $0x70] sm:$0xff]
        %v269 = vld [vmem:[%s1 + $0x78] sm:$0xff]
        %v270 = vld [vmem:[%s1 + $0x80] sm:$0xff]
        %v271 = vld [vmem:[%s1 + $0x88] sm:$0xff]
        %v272 = vld [vmem:[%s1 + $0x90] sm:$0xff]
        %v273 = vld [vmem:[%s1 + $0x98] sm:$0xff]
        %v274 = vld [vmem:[%s1 + $0xa0] sm:$0xff]
        %v275 = vld [vmem:[%s1 + $0xa8] sm:$0xff]
        %v276 = vld [vmem:[%s1 + $0xb0] sm:$0xff]
        %v277 = vld [vmem:[%s1 + $0xb8] sm:$0xff]
        %v278 = vld [vmem:[%s1 + $0xc0] sm:$0xff]
        %v279 = vld [vmem:[%s1 + $0xc8] sm:$0xff]
        %v280 = vld [vmem:[%s1 + $0xd0] sm:$0xff]
        %v281 = vld [vmem:[%s1 + $0xd8] sm:$0xff]
        %v282 = vld [vmem:[%s1 + $0xe0] sm:$0xff]
        %v283 = vld [vmem:[%s1 + $0xe8] sm:$0xff]
        %v284 = vld [vmem:[%s1 + $0xf0] sm:$0xff]
        %v285 = vld [vmem:[%s1 + $0xf8] sm:$0xff]
        %v286 = vld [vmem:[%s1 + $0x100] sm:$0xff]
        %v287 = vld [vmem:[%s1 + $0x108] sm:$0xff]
        %v288 = vld [vmem:[%s1 + $0x110] sm:$0xff]
        %v289 = vld [vmem:[%s1 + $0x118] sm:$0xff]
        %v290 = vld [vmem:[%s1 + $0x120] sm:$0xff]
        %v291 = vld [vmem:[%s1 + $0x128] sm:$0xff]
        %v292 = vld [vmem:[%s1 + $0x130] sm:$0xff]
        %v293 = vld [vmem:[%s1 + $0x138] sm:$0xff]
        %v294 = vld [vmem:[%s1 + $0x140] sm:$0xff]
        %v295 = vld [vmem:[%s1 + $0x148] sm:$0xff]
        %v296 = vld [vmem:[%s1 + $0x150] sm:$0xff]
        %v297 = vld [vmem:[%s1 + $0x158] sm:$0xff]
        %v298 = vld [vmem:[%s1 + $0x160] sm:$0xff]
        %v299 = vld [vmem:[%s1 + $0x168] sm:$0xff]
        %v300 = vld [vmem:[%s1 + $0x170] sm:$0xff]
        %v301 = vld [vmem:[%s1 + $0x178] sm:$0xff]
        %v302 = vld [vmem:[%s1 + $0x180] sm:$0xff]
        %v303 = vld [vmem:[%s1 + $0x188] sm:$0xff]
        %v304 = vld [vmem:[%s1 + $0x190] sm:$0xff]
        %v305 = vld [vmem:[%s1 + $0x198] sm:$0xff]
        %v306 = vld [vmem:[%s1 + $0x1a0] sm:$0xff]
        %v307 = vld [vmem:[%s1 + $0x1a8] sm:$0xff]
        %v308 = vld [vmem:[%s1 + $0x1b0] sm:$0xff]
        %v309 = vld [vmem:[%s1 + $0x1b8] sm:$0xff]
        %v310 = vld [vmem:[%s1 + $0x1c0] sm:$0xff]
        %v311 = vld [vmem:[%s1 + $0x1c8] sm:$0xff]
        %v312 = vld [vmem:[%s1 + $0x1d0] sm:$0xff]
        %v313 = vld [vmem:[%s1 + $0x1d8] sm:$0xff]
        %v314 = vld [vmem:[%s1 + $0x1e0] sm:$0xff]
        %v315 = vld [vmem:[%s1 + $0x1e8] sm:$0xff]
        %v316 = vld [vmem:[%s1 + $0x1f0] sm:$0xff]
        %v317 = vld [vmem:[%s1 + $0x1f8] sm:$0xff]
        %v318 = vld [vmem:[%s2] sm:$0x1]
        %v320 = vlaneseq
        %v321 = vshrl.u32 %v320, 7
        %v322 = vsub.s32 0, %v321
        %v323 = vrot.slane %v318, %v322
        %325 = vmatprep.subr.mxu0 0.0
        %v326 = vand.u32 %v254, 4294901760
        %327 = vmatpush1.msra.mxu0 %v326
        %328 = vmatprep.subr.mxu0 0.0
        %v329 = vand.u32 %v255, 4294901760
        %330 = vmatpush1.msra.mxu0 %v329
        %331 = vmatprep.subr.mxu0 0.0
        %v332 = vand.u32 %v256, 4294901760
        %333 = vmatpush1.msra.mxu0 %v332
        %334 = vmatprep.subr.mxu0 0.0
        %v335 = vand.u32 %v257, 4294901760
        %336 = vmatpush1.msra.mxu0 %v335
        %337 = vmatprep.subr.mxu0 0.0
        %v338 = vand.u32 %v258, 4294901760
        %339 = vmatpush1.msra.mxu0 %v338
        %340 = vmatprep.subr.mxu0 0.0
        %v341 = vand.u32 %v259, 4294901760
        %342 = vmatpush1.msra.mxu0 %v341
        %343 = vmatprep.subr.mxu0 0.0
        %v344 = vand.u32 %v260, 4294901760
        %345 = vmatpush1.msra.mxu0 %v344
        %346 = vmatprep.subr.mxu0 0.0
        %v347 = vand.u32 %v261, 4294901760
        %348 = vmatpush1.msra.mxu0 %v347
        %349 = vmatprep.subr.mxu0 0.0
        %v350 = vand.u32 %v262, 4294901760
        %351 = vmatpush1.msra.mxu0 %v350
        %352 = vmatprep.subr.mxu0 0.0
        %v353 = vand.u32 %v263, 4294901760
        %354 = vmatpush1.msra.mxu0 %v353
        %355 = vmatprep.subr.mxu0 0.0
        %v356 = vand.u32 %v264, 4294901760
        %357 = vmatpush1.msra.mxu0 %v356
        %358 = vmatprep.subr.mxu0 0.0
        %v359 = vand.u32 %v265, 4294901760
        %360 = vmatpush1.msra.mxu0 %v359
        %361 = vmatprep.subr.mxu0 0.0
        %v362 = vand.u32 %v266, 4294901760
        %363 = vmatpush1.msra.mxu0 %v362
        %364 = vmatprep.subr.mxu0 0.0
        %v365 = vand.u32 %v267, 4294901760
        %366 = vmatpush1.msra.mxu0 %v365
        %367 = vmatprep.subr.mxu0 0.0
        %v368 = vand.u32 %v268, 4294901760
        %369 = vmatpush1.msra.mxu0 %v368
        %370 = vmatprep.subr.mxu0 0.0
        %v371 = vand.u32 %v269, 4294901760
        %372 = vmatpush1.msra.mxu0 %v371
        %373 = vmatprep.subr.mxu0 0.0
        %v374 = vand.u32 %v270, 4294901760
        %375 = vmatpush1.msra.mxu0 %v374
        %376 = vmatprep.subr.mxu0 0.0
        %v377 = vand.u32 %v271, 4294901760
        %378 = vmatpush1.msra.mxu0 %v377
        %379 = vmatprep.subr.mxu0 0.0
        %v380 = vand.u32 %v272, 4294901760
        %381 = vmatpush1.msra.mxu0 %v380
        %382 = vmatprep.subr.mxu0 0.0
        %v383 = vand.u32 %v273, 4294901760
        %384 = vmatpush1.msra.mxu0 %v383
        %385 = vmatprep.subr.mxu0 0.0
        %v386 = vand.u32 %v274, 4294901760
        %387 = vmatpush1.msra.mxu0 %v386
        %388 = vmatprep.subr.mxu0 0.0
        %v389 = vand.u32 %v275, 4294901760
        %390 = vmatpush1.msra.mxu0 %v389
        %391 = vmatprep.subr.mxu0 0.0
        %v392 = vand.u32 %v276, 4294901760
        %393 = vmatpush1.msra.mxu0 %v392
        %394 = vmatprep.subr.mxu0 0.0
        %v395 = vand.u32 %v277, 4294901760
        %396 = vmatpush1.msra.mxu0 %v395
        %397 = vmatprep.subr.mxu0 0.0
        %v398 = vand.u32 %v278, 4294901760
        %399 = vmatpush1.msra.mxu0 %v398
        %400 = vmatprep.subr.mxu0 0.0
        %v401 = vand.u32 %v279, 4294901760
        %402 = vmatpush1.msra.mxu0 %v401
        %403 = vmatprep.subr.mxu0 0.0
        %v404 = vand.u32 %v280, 4294901760
        %405 = vmatpush1.msra.mxu0 %v404
        %406 = vmatprep.subr.mxu0 0.0
        %v407 = vand.u32 %v281, 4294901760
        %408 = vmatpush1.msra.mxu0 %v407
        %409 = vmatprep.subr.mxu0 0.0
        %v410 = vand.u32 %v282, 4294901760
        %411 = vmatpush1.msra.mxu0 %v410
        %412 = vmatprep.subr.mxu0 0.0
        %v413 = vand.u32 %v283, 4294901760
        %414 = vmatpush1.msra.mxu0 %v413
        %415 = vmatprep.subr.mxu0 0.0
        %v416 = vand.u32 %v284, 4294901760
        %417 = vmatpush1.msra.mxu0 %v416
        %418 = vmatprep.subr.mxu0 0.0
        %v419 = vand.u32 %v285, 4294901760
        %420 = vmatpush1.msra.mxu0 %v419
        %v421 = vand.u32 %v251, 4294901760
        %v422 = vsub.f32 %v251, %v421
        %v423 = vand.u32 %v422, 4294901760
        %v424 = vsub.f32 %v422, %v423
        %v425 = vand.u32 %v424, 4294901760
        %426 = vmatprep.mubr.f32.mxu0 %v425
        %v427 = vand.u32 %v250, 4294901760
        %v428 = vsub.f32 %v250, %v427
        %v429 = vand.u32 %v428, 4294901760
        %v430 = vsub.f32 %v428, %v429
        %v431 = vand.u32 %v430, 4294901760
        %432 = vmatmul.mubr.f32.gmra.mrb[0].mxu0 %v431
        %v433 = vpop.f32.mrb[0].mxu0
        %v434 = vadd.f32 %v323, %v433
        %v435 = vpop.f32.mrb[0].mxu0
        %436 = vdwg.mxu0
        %437 = vmatprep.subr.mxu0 0.0
        %v438 = vand.u32 %v254, 4294901760
        %v439 = vsub.f32 %v254, %v438
        %v440 = vand.u32 %v439, 4294901760
        %v441 = vsub.f32 %v439, %v440
        %v442 = vand.u32 %v441, 4294901760
        %443 = vmatpush1.msra.mxu0 %v442
        %444 = vmatprep.subr.mxu0 0.0
        %v445 = vand.u32 %v255, 4294901760
        %v446 = vsub.f32 %v255, %v445
        %v447 = vand.u32 %v446, 4294901760
        %v448 = vsub.f32 %v446, %v447
        %v449 = vand.u32 %v448, 4294901760
        %450 = vmatpush1.msra.mxu0 %v449
        %451 = vmatprep.subr.mxu0 0.0
        %v452 = vand.u32 %v256, 4294901760
        %v453 = vsub.f32 %v256, %v452
        %v454 = vand.u32 %v453, 4294901760
        %v455 = vsub.f32 %v453, %v454
        %v456 = vand.u32 %v455, 4294901760
        %457 = vmatpush1.msra.mxu0 %v456
        %458 = vmatprep.subr.mxu0 0.0
        %v459 = vand.u32 %v257, 4294901760
        %v460 = vsub.f32 %v257, %v459
        %v461 = vand.u32 %v460, 4294901760
        %v462 = vsub.f32 %v460, %v461
        %v463 = vand.u32 %v462, 4294901760
        %464 = vmatpush1.msra.mxu0 %v463
        %465 = vmatprep.subr.mxu0 0.0
        %v466 = vand.u32 %v258, 4294901760
        %v467 = vsub.f32 %v258, %v466
        %v468 = vand.u32 %v467, 4294901760
        %v469 = vsub.f32 %v467, %v468
        %v470 = vand.u32 %v469, 4294901760
        %471 = vmatpush1.msra.mxu0 %v470
        %472 = vmatprep.subr.mxu0 0.0
        %v473 = vand.u32 %v259, 4294901760
        %v474 = vsub.f32 %v259, %v473
        %v475 = vand.u32 %v474, 4294901760
        %v476 = vsub.f32 %v474, %v475
        %v477 = vand.u32 %v476, 4294901760
        %478 = vmatpush1.msra.mxu0 %v477
        %479 = vmatprep.subr.mxu0 0.0
        %v480 = vand.u32 %v260, 4294901760
        %v481 = vsub.f32 %v260, %v480
        %v482 = vand.u32 %v481, 4294901760
        %v483 = vsub.f32 %v481, %v482
        %v484 = vand.u32 %v483, 4294901760
        %485 = vmatpush1.msra.mxu0 %v484
        %486 = vmatprep.subr.mxu0 0.0
        %v487 = vand.u32 %v261, 4294901760
        %v488 = vsub.f32 %v261, %v487
        %v489 = vand.u32 %v488, 4294901760
        %v490 = vsub.f32 %v488, %v489
        %v491 = vand.u32 %v490, 4294901760
        %492 = vmatpush1.msra.mxu0 %v491
        %493 = vmatprep.subr.mxu0 0.0
        %v494 = vand.u32 %v262, 4294901760
        %v495 = vsub.f32 %v262, %v494
        %v496 = vand.u32 %v495, 4294901760
        %v497 = vsub.f32 %v495, %v496
        %v498 = vand.u32 %v497, 4294901760
        %499 = vmatpush1.msra.mxu0 %v498
        %500 = vmatprep.subr.mxu0 0.0
        %v501 = vand.u32 %v263, 4294901760
        %v502 = vsub.f32 %v263, %v501
        %v503 = vand.u32 %v502, 4294901760
        %v504 = vsub.f32 %v502, %v503
        %v505 = vand.u32 %v504, 4294901760
        %506 = vmatpush1.msra.mxu0 %v505
        %507 = vmatprep.subr.mxu0 0.0
        %v508 = vand.u32 %v264, 4294901760
        %v509 = vsub.f32 %v264, %v508
        %v510 = vand.u32 %v509, 4294901760
        %v511 = vsub.f32 %v509, %v510
        %v512 = vand.u32 %v511, 4294901760
        %513 = vmatpush1.msra.mxu0 %v512
        %514 = vmatprep.subr.mxu0 0.0
        %v515 = vand.u32 %v265, 4294901760
        %v516 = vsub.f32 %v265, %v515
        %v517 = vand.u32 %v516, 4294901760
        %v518 = vsub.f32 %v516, %v517
        %v519 = vand.u32 %v518, 4294901760
        %520 = vmatpush1.msra.mxu0 %v519
        %521 = vmatprep.subr.mxu0 0.0
        %v522 = vand.u32 %v266, 4294901760
        %v523 = vsub.f32 %v266, %v522
        %v524 = vand.u32 %v523, 4294901760
        %v525 = vsub.f32 %v523, %v524
        %v526 = vand.u32 %v525, 4294901760
        %527 = vmatpush1.msra.mxu0 %v526
        %528 = vmatprep.subr.mxu0 0.0
        %v529 = vand.u32 %v267, 4294901760
        %v530 = vsub.f32 %v267, %v529
        %v531 = vand.u32 %v530, 4294901760
        %v532 = vsub.f32 %v530, %v531
        %v533 = vand.u32 %v532, 4294901760
        %534 = vmatpush1.msra.mxu0 %v533
        %535 = vmatprep.subr.mxu0 0.0
        %v536 = vand.u32 %v268, 4294901760
        %v537 = vsub.f32 %v268, %v536
        %v538 = vand.u32 %v537, 4294901760
        %v539 = vsub.f32 %v537, %v538
        %v540 = vand.u32 %v539, 4294901760
        %541 = vmatpush1.msra.mxu0 %v540
        %542 = vmatprep.subr.mxu0 0.0
        %v543 = vand.u32 %v269, 4294901760
        %v544 = vsub.f32 %v269, %v543
        %v545 = vand.u32 %v544, 4294901760
        %v546 = vsub.f32 %v544, %v545
        %v547 = vand.u32 %v546, 4294901760
        %548 = vmatpush1.msra.mxu0 %v547
        %549 = vmatprep.subr.mxu0 0.0
        %v550 = vand.u32 %v270, 4294901760
        %v551 = vsub.f32 %v270, %v550
        %v552 = vand.u32 %v551, 4294901760
        %v553 = vsub.f32 %v551, %v552
        %v554 = vand.u32 %v553, 4294901760
        %555 = vmatpush1.msra.mxu0 %v554
        %556 = vmatprep.subr.mxu0 0.0
        %v557 = vand.u32 %v271, 4294901760
        %v558 = vsub.f32 %v271, %v557
        %v559 = vand.u32 %v558, 4294901760
        %v560 = vsub.f32 %v558, %v559
        %v561 = vand.u32 %v560, 4294901760
        %562 = vmatpush1.msra.mxu0 %v561
        %563 = vmatprep.subr.mxu0 0.0
        %v564 = vand.u32 %v272, 4294901760
        %v565 = vsub.f32 %v272, %v564
        %v566 = vand.u32 %v565, 4294901760
        %v567 = vsub.f32 %v565, %v566
        %v568 = vand.u32 %v567, 4294901760
        %569 = vmatpush1.msra.mxu0 %v568
        %570 = vmatprep.subr.mxu0 0.0
        %v571 = vand.u32 %v273, 4294901760
        %v572 = vsub.f32 %v273, %v571
        %v573 = vand.u32 %v572, 4294901760
        %v574 = vsub.f32 %v572, %v573
        %v575 = vand.u32 %v574, 4294901760
        %576 = vmatpush1.msra.mxu0 %v575
        %577 = vmatprep.subr.mxu0 0.0
        %v578 = vand.u32 %v274, 4294901760
        %v579 = vsub.f32 %v274, %v578
        %v580 = vand.u32 %v579, 4294901760
        %v581 = vsub.f32 %v579, %v580
        %v582 = vand.u32 %v581, 4294901760
        %583 = vmatpush1.msra.mxu0 %v582
        %584 = vmatprep.subr.mxu0 0.0
        %v585 = vand.u32 %v275, 4294901760
        %v586 = vsub.f32 %v275, %v585
        %v587 = vand.u32 %v586, 4294901760
        %v588 = vsub.f32 %v586, %v587
        %v589 = vand.u32 %v588, 4294901760
        %590 = vmatpush1.msra.mxu0 %v589
        %591 = vmatprep.subr.mxu0 0.0
        %v592 = vand.u32 %v276, 4294901760
        %v593 = vsub.f32 %v276, %v592
        %v594 = vand.u32 %v593, 4294901760
        %v595 = vsub.f32 %v593, %v594
        %v596 = vand.u32 %v595, 4294901760
        %597 = vmatpush1.msra.mxu0 %v596
        %598 = vmatprep.subr.mxu0 0.0
        %v599 = vand.u32 %v277, 4294901760
        %v600 = vsub.f32 %v277, %v599
        %v601 = vand.u32 %v600, 4294901760
        %v602 = vsub.f32 %v600, %v601
        %v603 = vand.u32 %v602, 4294901760
        %604 = vmatpush1.msra.mxu0 %v603
        %605 = vmatprep.subr.mxu0 0.0
        %v606 = vand.u32 %v278, 4294901760
        %v607 = vsub.f32 %v278, %v606
        %v608 = vand.u32 %v607, 4294901760
        %v609 = vsub.f32 %v607, %v608
        %v610 = vand.u32 %v609, 4294901760
        %611 = vmatpush1.msra.mxu0 %v610
        %612 = vmatprep.subr.mxu0 0.0
        %v613 = vand.u32 %v279, 4294901760
        %v614 = vsub.f32 %v279, %v613
        %v615 = vand.u32 %v614, 4294901760
        %v616 = vsub.f32 %v614, %v615
        %v617 = vand.u32 %v616, 4294901760
        %618 = vmatpush1.msra.mxu0 %v617
        %619 = vmatprep.subr.mxu0 0.0
        %v620 = vand.u32 %v280, 4294901760
        %v621 = vsub.f32 %v280, %v620
        %v622 = vand.u32 %v621, 4294901760
        %v623 = vsub.f32 %v621, %v622
        %v624 = vand.u32 %v623, 4294901760
        %625 = vmatpush1.msra.mxu0 %v624
        %626 = vmatprep.subr.mxu0 0.0
        %v627 = vand.u32 %v281, 4294901760
        %v628 = vsub.f32 %v281, %v627
        %v629 = vand.u32 %v628, 4294901760
        %v630 = vsub.f32 %v628, %v629
        %v631 = vand.u32 %v630, 4294901760
        %632 = vmatpush1.msra.mxu0 %v631
        %633 = vmatprep.subr.mxu0 0.0
        %v634 = vand.u32 %v282, 4294901760
        %v635 = vsub.f32 %v282, %v634
        %v636 = vand.u32 %v635, 4294901760
        %v637 = vsub.f32 %v635, %v636
        %v638 = vand.u32 %v637, 4294901760
        %639 = vmatpush1.msra.mxu0 %v638
        %640 = vmatprep.subr.mxu0 0.0
        %v641 = vand.u32 %v283, 4294901760
        %v642 = vsub.f32 %v283, %v641
        %v643 = vand.u32 %v642, 4294901760
        %v644 = vsub.f32 %v642, %v643
        %v645 = vand.u32 %v644, 4294901760
        %646 = vmatpush1.msra.mxu0 %v645
        %647 = vmatprep.subr.mxu0 0.0
        %v648 = vand.u32 %v284, 4294901760
        %v649 = vsub.f32 %v284, %v648
        %v650 = vand.u32 %v649, 4294901760
        %v651 = vsub.f32 %v649, %v650
        %v652 = vand.u32 %v651, 4294901760
        %653 = vmatpush1.msra.mxu0 %v652
        %654 = vmatprep.subr.mxu0 0.0
        %v655 = vand.u32 %v285, 4294901760
        %v656 = vsub.f32 %v285, %v655
        %v657 = vand.u32 %v656, 4294901760
        %v658 = vsub.f32 %v656, %v657
        %v659 = vand.u32 %v658, 4294901760
        %660 = vmatpush1.msra.mxu0 %v659
        %v661 = vand.u32 %v251, 4294901760
        %662 = vmatprep.mubr.f32.mxu0 %v661
        %v663 = vand.u32 %v250, 4294901760
        %664 = vmatmul.mubr.f32.gmra.mrb[0].mxu0 %v663
        %v665 = vpop.f32.mrb[0].mxu0
        %v666 = vadd.f32 %v434, %v665
        %v667 = vpop.f32.mrb[0].mxu0
        %668 = vdwg.mxu0
        %669 = vmatprep.subr.mxu0 0.0
        %v670 = vand.u32 %v254, 4294901760
        %v671 = vsub.f32 %v254, %v670
        %672 = vmatpush1.msra.mxu0 %v671
        %673 = vmatprep.subr.mxu0 0.0
        %v674 = vand.u32 %v255, 4294901760
        %v675 = vsub.f32 %v255, %v674
        %676 = vmatpush1.msra.mxu0 %v675
        %677 = vmatprep.subr.mxu0 0.0
        %v678 = vand.u32 %v256, 4294901760
        %v679 = vsub.f32 %v256, %v678
        %680 = vmatpush1.msra.mxu0 %v679
        %681 = vmatprep.subr.mxu0 0.0
        %v682 = vand.u32 %v257, 4294901760
        %v683 = vsub.f32 %v257, %v682
        %684 = vmatpush1.msra.mxu0 %v683
        %685 = vmatprep.subr.mxu0 0.0
        %v686 = vand.u32 %v258, 4294901760
        %v687 = vsub.f32 %v258, %v686
        %688 = vmatpush1.msra.mxu0 %v687
        %689 = vmatprep.subr.mxu0 0.0
        %v690 = vand.u32 %v259, 4294901760
        %v691 = vsub.f32 %v259, %v690
        %692 = vmatpush1.msra.mxu0 %v691
        %693 = vmatprep.subr.mxu0 0.0
        %v694 = vand.u32 %v260, 4294901760
        %v695 = vsub.f32 %v260, %v694
        %696 = vmatpush1.msra.mxu0 %v695
        %697 = vmatprep.subr.mxu0 0.0
        %v698 = vand.u32 %v261, 4294901760
        %v699 = vsub.f32 %v261, %v698
        %700 = vmatpush1.msra.mxu0 %v699
        %701 = vmatprep.subr.mxu0 0.0
        %v702 = vand.u32 %v262, 4294901760
        %v703 = vsub.f32 %v262, %v702
        %704 = vmatpush1.msra.mxu0 %v703
        %705 = vmatprep.subr.mxu0 0.0
        %v706 = vand.u32 %v263, 4294901760
        %v707 = vsub.f32 %v263, %v706
        %708 = vmatpush1.msra.mxu0 %v707
        %709 = vmatprep.subr.mxu0 0.0
        %v710 = vand.u32 %v264, 4294901760
        %v711 = vsub.f32 %v264, %v710
        %712 = vmatpush1.msra.mxu0 %v711
        %713 = vmatprep.subr.mxu0 0.0
        %v714 = vand.u32 %v265, 4294901760
        %v715 = vsub.f32 %v265, %v714
        %716 = vmatpush1.msra.mxu0 %v715
        %717 = vmatprep.subr.mxu0 0.0
        %v718 = vand.u32 %v266, 4294901760
        %v719 = vsub.f32 %v266, %v718
        %720 = vmatpush1.msra.mxu0 %v719
        %721 = vmatprep.subr.mxu0 0.0
        %v722 = vand.u32 %v267, 4294901760
        %v723 = vsub.f32 %v267, %v722
        %724 = vmatpush1.msra.mxu0 %v723
        %725 = vmatprep.subr.mxu0 0.0
        %v726 = vand.u32 %v268, 4294901760
        %v727 = vsub.f32 %v268, %v726
        %728 = vmatpush1.msra.mxu0 %v727
        %729 = vmatprep.subr.mxu0 0.0
        %v730 = vand.u32 %v269, 4294901760
        %v731 = vsub.f32 %v269, %v730
        %732 = vmatpush1.msra.mxu0 %v731
        %733 = vmatprep.subr.mxu0 0.0
        %v734 = vand.u32 %v270, 4294901760
        %v735 = vsub.f32 %v270, %v734
        %736 = vmatpush1.msra.mxu0 %v735
        %737 = vmatprep.subr.mxu0 0.0
        %v738 = vand.u32 %v271, 4294901760
        %v739 = vsub.f32 %v271, %v738
        %740 = vmatpush1.msra.mxu0 %v739
        %741 = vmatprep.subr.mxu0 0.0
        %v742 = vand.u32 %v272, 4294901760
        %v743 = vsub.f32 %v272, %v742
        %744 = vmatpush1.msra.mxu0 %v743
        %745 = vmatprep.subr.mxu0 0.0
        %v746 = vand.u32 %v273, 4294901760
        %v747 = vsub.f32 %v273, %v746
        %748 = vmatpush1.msra.mxu0 %v747
        %749 = vmatprep.subr.mxu0 0.0
        %v750 = vand.u32 %v274, 4294901760
        %v751 = vsub.f32 %v274, %v750
        %752 = vmatpush1.msra.mxu0 %v751
        %753 = vmatprep.subr.mxu0 0.0
        %v754 = vand.u32 %v275, 4294901760
        %v755 = vsub.f32 %v275, %v754
        %756 = vmatpush1.msra.mxu0 %v755
        %757 = vmatprep.subr.mxu0 0.0
        %v758 = vand.u32 %v276, 4294901760
        %v759 = vsub.f32 %v276, %v758
        %760 = vmatpush1.msra.mxu0 %v759
        %761 = vmatprep.subr.mxu0 0.0
        %v762 = vand.u32 %v277, 4294901760
        %v763 = vsub.f32 %v277, %v762
        %764 = vmatpush1.msra.mxu0 %v763
        %765 = vmatprep.subr.mxu0 0.0
        %v766 = vand.u32 %v278, 4294901760
        %v767 = vsub.f32 %v278, %v766
        %768 = vmatpush1.msra.mxu0 %v767
        %769 = vmatprep.subr.mxu0 0.0
        %v770 = vand.u32 %v279, 4294901760
        %v771 = vsub.f32 %v279, %v770
        %772 = vmatpush1.msra.mxu0 %v771
        %773 = vmatprep.subr.mxu0 0.0
        %v774 = vand.u32 %v280, 4294901760
        %v775 = vsub.f32 %v280, %v774
        %776 = vmatpush1.msra.mxu0 %v775
        %777 = vmatprep.subr.mxu0 0.0
        %v778 = vand.u32 %v281, 4294901760
        %v779 = vsub.f32 %v281, %v778
        %780 = vmatpush1.msra.mxu0 %v779
        %781 = vmatprep.subr.mxu0 0.0
        %v782 = vand.u32 %v282, 4294901760
        %v783 = vsub.f32 %v282, %v782
        %784 = vmatpush1.msra.mxu0 %v783
        %785 = vmatprep.subr.mxu0 0.0
        %v786 = vand.u32 %v283, 4294901760
        %v787 = vsub.f32 %v283, %v786
        %788 = vmatpush1.msra.mxu0 %v787
        %789 = vmatprep.subr.mxu0 0.0
        %v790 = vand.u32 %v284, 4294901760
        %v791 = vsub.f32 %v284, %v790
        %792 = vmatpush1.msra.mxu0 %v791
        %793 = vmatprep.subr.mxu0 0.0
        %v794 = vand.u32 %v285, 4294901760
        %v795 = vsub.f32 %v285, %v794
        %796 = vmatpush1.msra.mxu0 %v795
        %v797 = vand.u32 %v251, 4294901760
        %v798 = vsub.f32 %v251, %v797
        %799 = vmatprep.mubr.f32.mxu0 %v798
        %v800 = vand.u32 %v250, 4294901760
        %v801 = vsub.f32 %v250, %v800
        %802 = vmatmul.mubr.f32.gmra.mrb[0].mxu0 %v801
        %v803 = vpop.f32.mrb[0].mxu0
        %v804 = vadd.f32 %v666, %v803
        %v805 = vpop.f32.mrb[0].mxu0
        %806 = vdwg.mxu0
        %807 = vmatprep.subr.mxu0 0.0
        %v808 = vand.u32 %v254, 4294901760
        %809 = vmatpush1.msra.mxu0 %v808
        %810 = vmatprep.subr.mxu0 0.0
        %v811 = vand.u32 %v255, 4294901760
        %812 = vmatpush1.msra.mxu0 %v811
        %813 = vmatprep.subr.mxu0 0.0
        %v814 = vand.u32 %v256, 4294901760
        %815 = vmatpush1.msra.mxu0 %v814
        %816 = vmatprep.subr.mxu0 0.0
        %v817 = vand.u32 %v257, 4294901760
        %818 = vmatpush1.msra.mxu0 %v817
        %819 = vmatprep.subr.mxu0 0.0
        %v820 = vand.u32 %v258, 4294901760
        %821 = vmatpush1.msra.mxu0 %v820
        %822 = vmatprep.subr.mxu0 0.0
        %v823 = vand.u32 %v259, 4294901760
        %824 = vmatpush1.msra.mxu0 %v823
        %825 = vmatprep.subr.mxu0 0.0
        %v826 = vand.u32 %v260, 4294901760
        %827 = vmatpush1.msra.mxu0 %v826
        %828 = vmatprep.subr.mxu0 0.0
        %v829 = vand.u32 %v261, 4294901760
        %830 = vmatpush1.msra.mxu0 %v829
        %831 = vmatprep.subr.mxu0 0.0
        %v832 = vand.u32 %v262, 4294901760
        %833 = vmatpush1.msra.mxu0 %v832
        %834 = vmatprep.subr.mxu0 0.0
        %v835 = vand.u32 %v263, 4294901760
        %836 = vmatpush1.msra.mxu0 %v835
        %837 = vmatprep.subr.mxu0 0.0
        %v838 = vand.u32 %v264, 4294901760
        %839 = vmatpush1.msra.mxu0 %v838
        %840 = vmatprep.subr.mxu0 0.0
        %v841 = vand.u32 %v265, 4294901760
        %842 = vmatpush1.msra.mxu0 %v841
        %843 = vmatprep.subr.mxu0 0.0
        %v844 = vand.u32 %v266, 4294901760
        %845 = vmatpush1.msra.mxu0 %v844
        %846 = vmatprep.subr.mxu0 0.0
        %v847 = vand.u32 %v267, 4294901760
        %848 = vmatpush1.msra.mxu0 %v847
        %849 = vmatprep.subr.mxu0 0.0
        %v850 = vand.u32 %v268, 4294901760
        %851 = vmatpush1.msra.mxu0 %v850
        %852 = vmatprep.subr.mxu0 0.0
        %v853 = vand.u32 %v269, 4294901760
        %854 = vmatpush1.msra.mxu0 %v853
        %855 = vmatprep.subr.mxu0 0.0
        %v856 = vand.u32 %v270, 4294901760
        %857 = vmatpush1.msra.mxu0 %v856
        %858 = vmatprep.subr.mxu0 0.0
        %v859 = vand.u32 %v271, 4294901760
        %860 = vmatpush1.msra.mxu0 %v859
        %861 = vmatprep.subr.mxu0 0.0
        %v862 = vand.u32 %v272, 4294901760
        %863 = vmatpush1.msra.mxu0 %v862
        %864 = vmatprep.subr.mxu0 0.0
        %v865 = vand.u32 %v273, 4294901760
        %866 = vmatpush1.msra.mxu0 %v865
        %867 = vmatprep.subr.mxu0 0.0
        %v868 = vand.u32 %v274, 4294901760
        %869 = vmatpush1.msra.mxu0 %v868
        %870 = vmatprep.subr.mxu0 0.0
        %v871 = vand.u32 %v275, 4294901760
        %872 = vmatpush1.msra.mxu0 %v871
        %873 = vmatprep.subr.mxu0 0.0
        %v874 = vand.u32 %v276, 4294901760
        %875 = vmatpush1.msra.mxu0 %v874
        %876 = vmatprep.subr.mxu0 0.0
        %v877 = vand.u32 %v277, 4294901760
        %878 = vmatpush1.msra.mxu0 %v877
        %879 = vmatprep.subr.mxu0 0.0
        %v880 = vand.u32 %v278, 4294901760
        %881 = vmatpush1.msra.mxu0 %v880
        %882 = vmatprep.subr.mxu0 0.0
        %v883 = vand.u32 %v279, 4294901760
        %884 = vmatpush1.msra.mxu0 %v883
        %885 = vmatprep.subr.mxu0 0.0
        %v886 = vand.u32 %v280, 4294901760
        %887 = vmatpush1.msra.mxu0 %v886
        %888 = vmatprep.subr.mxu0 0.0
        %v889 = vand.u32 %v281, 4294901760
        %890 = vmatpush1.msra.mxu0 %v889
        %891 = vmatprep.subr.mxu0 0.0
        %v892 = vand.u32 %v282, 4294901760
        %893 = vmatpush1.msra.mxu0 %v892
        %894 = vmatprep.subr.mxu0 0.0
        %v895 = vand.u32 %v283, 4294901760
        %896 = vmatpush1.msra.mxu0 %v895
        %897 = vmatprep.subr.mxu0 0.0
        %v898 = vand.u32 %v284, 4294901760
        %899 = vmatpush1.msra.mxu0 %v898
        %900 = vmatprep.subr.mxu0 0.0
        %v901 = vand.u32 %v285, 4294901760
        %902 = vmatpush1.msra.mxu0 %v901
        %v903 = vand.u32 %v251, 4294901760
        %v904 = vsub.f32 %v251, %v903
        %v905 = vand.u32 %v904, 4294901760
        %906 = vmatprep.mubr.f32.mxu0 %v905
        %v907 = vand.u32 %v250, 4294901760
        %v908 = vsub.f32 %v250, %v907
        %v909 = vand.u32 %v908, 4294901760
        %910 = vmatmul.mubr.f32.gmra.mrb[0].mxu0 %v909
        %v911 = vpop.f32.mrb[0].mxu0
        %v912 = vadd.f32 %v804, %v911
        %v913 = vpop.f32.mrb[0].mxu0
        %914 = vdwg.mxu0
        %915 = vmatprep.subr.mxu0 0.0
        %v916 = vand.u32 %v254, 4294901760
        %v917 = vsub.f32 %v254, %v916
        %v918 = vand.u32 %v917, 4294901760
        %919 = vmatpush1.msra.mxu0 %v918
        %920 = vmatprep.subr.mxu0 0.0
        %v921 = vand.u32 %v255, 4294901760
        %v922 = vsub.f32 %v255, %v921
        %v923 = vand.u32 %v922, 4294901760
        %924 = vmatpush1.msra.mxu0 %v923
        %925 = vmatprep.subr.mxu0 0.0
        %v926 = vand.u32 %v256, 4294901760
        %v927 = vsub.f32 %v256, %v926
        %v928 = vand.u32 %v927, 4294901760
        %929 = vmatpush1.msra.mxu0 %v928
        %930 = vmatprep.subr.mxu0 0.0
        %v931 = vand.u32 %v257, 4294901760
        %v932 = vsub.f32 %v257, %v931
        %v933 = vand.u32 %v932, 4294901760
        %934 = vmatpush1.msra.mxu0 %v933
        %935 = vmatprep.subr.mxu0 0.0
        %v936 = vand.u32 %v258, 4294901760
        %v937 = vsub.f32 %v258, %v936
        %v938 = vand.u32 %v937, 4294901760
        %939 = vmatpush1.msra.mxu0 %v938
        %940 = vmatprep.subr.mxu0 0.0
        %v941 = vand.u32 %v259, 4294901760
        %v942 = vsub.f32 %v259, %v941
        %v943 = vand.u32 %v942, 4294901760
        %944 = vmatpush1.msra.mxu0 %v943
        %945 = vmatprep.subr.mxu0 0.0
        %v946 = vand.u32 %v260, 4294901760
        %v947 = vsub.f32 %v260, %v946
        %v948 = vand.u32 %v947, 4294901760
        %949 = vmatpush1.msra.mxu0 %v948
        %950 = vmatprep.subr.mxu0 0.0
        %v951 = vand.u32 %v261, 4294901760
        %v952 = vsub.f32 %v261, %v951
        %v953 = vand.u32 %v952, 4294901760
        %954 = vmatpush1.msra.mxu0 %v953
        %955 = vmatprep.subr.mxu0 0.0
        %v956 = vand.u32 %v262, 4294901760
        %v957 = vsub.f32 %v262, %v956
        %v958 = vand.u32 %v957, 4294901760
        %959 = vmatpush1.msra.mxu0 %v958
        %960 = vmatprep.subr.mxu0 0.0
        %v961 = vand.u32 %v263, 4294901760
        %v962 = vsub.f32 %v263, %v961
        %v963 = vand.u32 %v962, 4294901760
        %964 = vmatpush1.msra.mxu0 %v963
        %965 = vmatprep.subr.mxu0 0.0
        %v966 = vand.u32 %v264, 4294901760
        %v967 = vsub.f32 %v264, %v966
        %v968 = vand.u32 %v967, 4294901760
        %969 = vmatpush1.msra.mxu0 %v968
        %970 = vmatprep.subr.mxu0 0.0
        %v971 = vand.u32 %v265, 4294901760
        %v972 = vsub.f32 %v265, %v971
        %v973 = vand.u32 %v972, 4294901760
        %974 = vmatpush1.msra.mxu0 %v973
        %975 = vmatprep.subr.mxu0 0.0
        %v976 = vand.u32 %v266, 4294901760
        %v977 = vsub.f32 %v266, %v976
        %v978 = vand.u32 %v977, 4294901760
        %979 = vmatpush1.msra.mxu0 %v978
        %980 = vmatprep.subr.mxu0 0.0
        %v981 = vand.u32 %v267, 4294901760
        %v982 = vsub.f32 %v267, %v981
        %v983 = vand.u32 %v982, 4294901760
        %984 = vmatpush1.msra.mxu0 %v983
        %985 = vmatprep.subr.mxu0 0.0
        %v986 = vand.u32 %v268, 4294901760
        %v987 = vsub.f32 %v268, %v986
        %v988 = vand.u32 %v987, 4294901760
        %989 = vmatpush1.msra.mxu0 %v988
        %990 = vmatprep.subr.mxu0 0.0
        %v991 = vand.u32 %v269, 4294901760
        %v992 = vsub.f32 %v269, %v991
        %v993 = vand.u32 %v992, 4294901760
        %994 = vmatpush1.msra.mxu0 %v993
        %995 = vmatprep.subr.mxu0 0.0
        %v996 = vand.u32 %v270, 4294901760
        %v997 = vsub.f32 %v270, %v996
        %v998 = vand.u32 %v997, 4294901760
        %999 = vmatpush1.msra.mxu0 %v998
        %1000 = vmatprep.subr.mxu0 0.0
        %v1001 = vand.u32 %v271, 4294901760
        %v1002 = vsub.f32 %v271, %v1001
        %v1003 = vand.u32 %v1002, 4294901760
        %1004 = vmatpush1.msra.mxu0 %v1003
        %1005 = vmatprep.subr.mxu0 0.0
        %v1006 = vand.u32 %v272, 4294901760
        %v1007 = vsub.f32 %v272, %v1006
        %v1008 = vand.u32 %v1007, 4294901760
        %1009 = vmatpush1.msra.mxu0 %v1008
        %1010 = vmatprep.subr.mxu0 0.0
        %v1011 = vand.u32 %v273, 4294901760
        %v1012 = vsub.f32 %v273, %v1011
        %v1013 = vand.u32 %v1012, 4294901760
        %1014 = vmatpush1.msra.mxu0 %v1013
        %1015 = vmatprep.subr.mxu0 0.0
        %v1016 = vand.u32 %v274, 4294901760
        %v1017 = vsub.f32 %v274, %v1016
        %v1018 = vand.u32 %v1017, 4294901760
        %1019 = vmatpush1.msra.mxu0 %v1018
        %1020 = vmatprep.subr.mxu0 0.0
        %v1021 = vand.u32 %v275, 4294901760
        %v1022 = vsub.f32 %v275, %v1021
        %v1023 = vand.u32 %v1022, 4294901760
        %1024 = vmatpush1.msra.mxu0 %v1023
        %1025 = vmatprep.subr.mxu0 0.0
        %v1026 = vand.u32 %v276, 4294901760
        %v1027 = vsub.f32 %v276, %v1026
        %v1028 = vand.u32 %v1027, 4294901760
        %1029 = vmatpush1.msra.mxu0 %v1028
        %1030 = vmatprep.subr.mxu0 0.0
        %v1031 = vand.u32 %v277, 4294901760
        %v1032 = vsub.f32 %v277, %v1031
        %v1033 = vand.u32 %v1032, 4294901760
        %1034 = vmatpush1.msra.mxu0 %v1033
        %1035 = vmatprep.subr.mxu0 0.0
        %v1036 = vand.u32 %v278, 4294901760
        %v1037 = vsub.f32 %v278, %v1036
        %v1038 = vand.u32 %v1037, 4294901760
        %1039 = vmatpush1.msra.mxu0 %v1038
        %1040 = vmatprep.subr.mxu0 0.0
        %v1041 = vand.u32 %v279, 4294901760
        %v1042 = vsub.f32 %v279, %v1041
        %v1043 = vand.u32 %v1042, 4294901760
        %1044 = vmatpush1.msra.mxu0 %v1043
        %1045 = vmatprep.subr.mxu0 0.0
        %v1046 = vand.u32 %v280, 4294901760
        %v1047 = vsub.f32 %v280, %v1046
        %v1048 = vand.u32 %v1047, 4294901760
        %1049 = vmatpush1.msra.mxu0 %v1048
        %1050 = vmatprep.subr.mxu0 0.0
        %v1051 = vand.u32 %v281, 4294901760
        %v1052 = vsub.f32 %v281, %v1051
        %v1053 = vand.u32 %v1052, 4294901760
        %1054 = vmatpush1.msra.mxu0 %v1053
        %1055 = vmatprep.subr.mxu0 0.0
        %v1056 = vand.u32 %v282, 4294901760
        %v1057 = vsub.f32 %v282, %v1056
        %v1058 = vand.u32 %v1057, 4294901760
        %1059 = vmatpush1.msra.mxu0 %v1058
        %1060 = vmatprep.subr.mxu0 0.0
        %v1061 = vand.u32 %v283, 4294901760
        %v1062 = vsub.f32 %v283, %v1061
        %v1063 = vand.u32 %v1062, 4294901760
        %1064 = vmatpush1.msra.mxu0 %v1063
        %1065 = vmatprep.subr.mxu0 0.0
        %v1066 = vand.u32 %v284, 4294901760
        %v1067 = vsub.f32 %v284, %v1066
        %v1068 = vand.u32 %v1067, 4294901760
        %1069 = vmatpush1.msra.mxu0 %v1068
        %1070 = vmatprep.subr.mxu0 0.0
        %v1071 = vand.u32 %v285, 4294901760
        %v1072 = vsub.f32 %v285, %v1071
        %v1073 = vand.u32 %v1072, 4294901760
        %1074 = vmatpush1.msra.mxu0 %v1073
        %v1075 = vand.u32 %v251, 4294901760
        %1076 = vmatprep.mubr.f32.mxu0 %v1075
        %v1077 = vand.u32 %v250, 4294901760
        %1078 = vmatmul.mubr.f32.gmra.mrb[0].mxu0 %v1077
        %v1079 = vpop.f32.mrb[0].mxu0
        %v1080 = vadd.f32 %v912, %v1079
        %v1081 = vpop.f32.mrb[0].mxu0
        %1082 = vdwg.mxu0
        %1083 = vmatprep.subr.mxu0 0.0
        %v1084 = vand.u32 %v254, 4294901760
        %1085 = vmatpush1.msra.mxu0 %v1084
        %1086 = vmatprep.subr.mxu0 0.0
        %v1087 = vand.u32 %v255, 4294901760
        %1088 = vmatpush1.msra.mxu0 %v1087
        %1089 = vmatprep.subr.mxu0 0.0
        %v1090 = vand.u32 %v256, 4294901760
        %1091 = vmatpush1.msra.mxu0 %v1090
        %1092 = vmatprep.subr.mxu0 0.0
        %v1093 = vand.u32 %v257, 4294901760
        %1094 = vmatpush1.msra.mxu0 %v1093
        %1095 = vmatprep.subr.mxu0 0.0
        %v1096 = vand.u32 %v258, 4294901760
        %1097 = vmatpush1.msra.mxu0 %v1096
        %1098 = vmatprep.subr.mxu0 0.0
        %v1099 = vand.u32 %v259, 4294901760
        %1100 = vmatpush1.msra.mxu0 %v1099
        %1101 = vmatprep.subr.mxu0 0.0
        %v1102 = vand.u32 %v260, 4294901760
        %1103 = vmatpush1.msra.mxu0 %v1102
        %1104 = vmatprep.subr.mxu0 0.0
        %v1105 = vand.u32 %v261, 4294901760
        %1106 = vmatpush1.msra.mxu0 %v1105
        %1107 = vmatprep.subr.mxu0 0.0
        %v1108 = vand.u32 %v262, 4294901760
        %1109 = vmatpush1.msra.mxu0 %v1108
        %1110 = vmatprep.subr.mxu0 0.0
        %v1111 = vand.u32 %v263, 4294901760
        %1112 = vmatpush1.msra.mxu0 %v1111
        %1113 = vmatprep.subr.mxu0 0.0
        %v1114 = vand.u32 %v264, 4294901760
        %1115 = vmatpush1.msra.mxu0 %v1114
        %1116 = vmatprep.subr.mxu0 0.0
        %v1117 = vand.u32 %v265, 4294901760
        %1118 = vmatpush1.msra.mxu0 %v1117
        %1119 = vmatprep.subr.mxu0 0.0
        %v1120 = vand.u32 %v266, 4294901760
        %1121 = vmatpush1.msra.mxu0 %v1120
        %1122 = vmatprep.subr.mxu0 0.0
        %v1123 = vand.u32 %v267, 4294901760
        %1124 = vmatpush1.msra.mxu0 %v1123
        %1125 = vmatprep.subr.mxu0 0.0
        %v1126 = vand.u32 %v268, 4294901760
        %1127 = vmatpush1.msra.mxu0 %v1126
        %1128 = vmatprep.subr.mxu0 0.0
        %v1129 = vand.u32 %v269, 4294901760
        %1130 = vmatpush1.msra.mxu0 %v1129
        %1131 = vmatprep.subr.mxu0 0.0
        %v1132 = vand.u32 %v270, 4294901760
        %1133 = vmatpush1.msra.mxu0 %v1132
        %1134 = vmatprep.subr.mxu0 0.0
        %v1135 = vand.u32 %v271, 4294901760
        %1136 = vmatpush1.msra.mxu0 %v1135
        %1137 = vmatprep.subr.mxu0 0.0
        %v1138 = vand.u32 %v272, 4294901760
        %1139 = vmatpush1.msra.mxu0 %v1138
        %1140 = vmatprep.subr.mxu0 0.0
        %v1141 = vand.u32 %v273, 4294901760
        %1142 = vmatpush1.msra.mxu0 %v1141
        %1143 = vmatprep.subr.mxu0 0.0
        %v1144 = vand.u32 %v274, 4294901760
        %1145 = vmatpush1.msra.mxu0 %v1144
        %1146 = vmatprep.subr.mxu0 0.0
        %v1147 = vand.u32 %v275, 4294901760
        %1148 = vmatpush1.msra.mxu0 %v1147
        %1149 = vmatprep.subr.mxu0 0.0
        %v1150 = vand.u32 %v276, 4294901760
        %1151 = vmatpush1.msra.mxu0 %v1150
        %1152 = vmatprep.subr.mxu0 0.0
        %v1153 = vand.u32 %v277, 4294901760
        %1154 = vmatpush1.msra.mxu0 %v1153
        %1155 = vmatprep.subr.mxu0 0.0
        %v1156 = vand.u32 %v278, 4294901760
        %1157 = vmatpush1.msra.mxu0 %v1156
        %1158 = vmatprep.subr.mxu0 0.0
        %v1159 = vand.u32 %v279, 4294901760
        %1160 = vmatpush1.msra.mxu0 %v1159
        %1161 = vmatprep.subr.mxu0 0.0
        %v1162 = vand.u32 %v280, 4294901760
        %1163 = vmatpush1.msra.mxu0 %v1162
        %1164 = vmatprep.subr.mxu0 0.0
        %v1165 = vand.u32 %v281, 4294901760
        %1166 = vmatpush1.msra.mxu0 %v1165
        %1167 = vmatprep.subr.mxu0 0.0
        %v1168 = vand.u32 %v282, 4294901760
        %1169 = vmatpush1.msra.mxu0 %v1168
        %1170 = vmatprep.subr.mxu0 0.0
        %v1171 = vand.u32 %v283, 4294901760
        %1172 = vmatpush1.msra.mxu0 %v1171
        %1173 = vmatprep.subr.mxu0 0.0
        %v1174 = vand.u32 %v284, 4294901760
        %1175 = vmatpush1.msra.mxu0 %v1174
        %1176 = vmatprep.subr.mxu0 0.0
        %v1177 = vand.u32 %v285, 4294901760
        %1178 = vmatpush1.msra.mxu0 %v1177
        %v1179 = vand.u32 %v251, 4294901760
        %1180 = vmatprep.mubr.f32.mxu0 %v1179
        %v1181 = vand.u32 %v250, 4294901760
        %1182 = vmatmul.mubr.f32.gmra.mrb[0].mxu0 %v1181
        %v1183 = vpop.f32.mrb[0].mxu0
        %v1184 = vadd.f32 %v1080, %v1183
        %v1185 = vpop.f32.mrb[0].mxu0
        %1186 = vdwg.mxu0
        %1187 = vmatprep.subr.mxu0 0.0
        %v1188 = vand.u32 %v286, 4294901760
        %1189 = vmatpush1.msra.mxu0 %v1188
        %1190 = vmatprep.subr.mxu0 0.0
        %v1191 = vand.u32 %v287, 4294901760
        %1192 = vmatpush1.msra.mxu0 %v1191
        %1193 = vmatprep.subr.mxu0 0.0
        %v1194 = vand.u32 %v288, 4294901760
        %1195 = vmatpush1.msra.mxu0 %v1194
        %1196 = vmatprep.subr.mxu0 0.0
        %v1197 = vand.u32 %v289, 4294901760
        %1198 = vmatpush1.msra.mxu0 %v1197
        %1199 = vmatprep.subr.mxu0 0.0
        %v1200 = vand.u32 %v290, 4294901760
        %1201 = vmatpush1.msra.mxu0 %v1200
        %1202 = vmatprep.subr.mxu0 0.0
        %v1203 = vand.u32 %v291, 4294901760
        %1204 = vmatpush1.msra.mxu0 %v1203
        %1205 = vmatprep.subr.mxu0 0.0
        %v1206 = vand.u32 %v292, 4294901760
        %1207 = vmatpush1.msra.mxu0 %v1206
        %1208 = vmatprep.subr.mxu0 0.0
        %v1209 = vand.u32 %v293, 4294901760
        %1210 = vmatpush1.msra.mxu0 %v1209
        %1211 = vmatprep.subr.mxu0 0.0
        %v1212 = vand.u32 %v294, 4294901760
        %1213 = vmatpush1.msra.mxu0 %v1212
        %1214 = vmatprep.subr.mxu0 0.0
        %v1215 = vand.u32 %v295, 4294901760
        %1216 = vmatpush1.msra.mxu0 %v1215
        %1217 = vmatprep.subr.mxu0 0.0
        %v1218 = vand.u32 %v296, 4294901760
        %1219 = vmatpush1.msra.mxu0 %v1218
        %1220 = vmatprep.subr.mxu0 0.0
        %v1221 = vand.u32 %v297, 4294901760
        %1222 = vmatpush1.msra.mxu0 %v1221
        %1223 = vmatprep.subr.mxu0 0.0
        %v1224 = vand.u32 %v298, 4294901760
        %1225 = vmatpush1.msra.mxu0 %v1224
        %1226 = vmatprep.subr.mxu0 0.0
        %v1227 = vand.u32 %v299, 4294901760
        %1228 = vmatpush1.msra.mxu0 %v1227
        %1229 = vmatprep.subr.mxu0 0.0
        %v1230 = vand.u32 %v300, 4294901760
        %1231 = vmatpush1.msra.mxu0 %v1230
        %1232 = vmatprep.subr.mxu0 0.0
        %v1233 = vand.u32 %v301, 4294901760
        %1234 = vmatpush1.msra.mxu0 %v1233
        %1235 = vmatprep.subr.mxu0 0.0
        %v1236 = vand.u32 %v302, 4294901760
        %1237 = vmatpush1.msra.mxu0 %v1236
        %1238 = vmatprep.subr.mxu0 0.0
        %v1239 = vand.u32 %v303, 4294901760
        %1240 = vmatpush1.msra.mxu0 %v1239
        %1241 = vmatprep.subr.mxu0 0.0
        %v1242 = vand.u32 %v304, 4294901760
        %1243 = vmatpush1.msra.mxu0 %v1242
        %1244 = vmatprep.subr.mxu0 0.0
        %v1245 = vand.u32 %v305, 4294901760
        %1246 = vmatpush1.msra.mxu0 %v1245
        %1247 = vmatprep.subr.mxu0 0.0
        %v1248 = vand.u32 %v306, 4294901760
        %1249 = vmatpush1.msra.mxu0 %v1248
        %1250 = vmatprep.subr.mxu0 0.0
        %v1251 = vand.u32 %v307, 4294901760
        %1252 = vmatpush1.msra.mxu0 %v1251
        %1253 = vmatprep.subr.mxu0 0.0
        %v1254 = vand.u32 %v308, 4294901760
        %1255 = vmatpush1.msra.mxu0 %v1254
        %1256 = vmatprep.subr.mxu0 0.0
        %v1257 = vand.u32 %v309, 4294901760
        %1258 = vmatpush1.msra.mxu0 %v1257
        %1259 = vmatprep.subr.mxu0 0.0
        %v1260 = vand.u32 %v310, 4294901760
        %1261 = vmatpush1.msra.mxu0 %v1260
        %1262 = vmatprep.subr.mxu0 0.0
        %v1263 = vand.u32 %v311, 4294901760
        %1264 = vmatpush1.msra.mxu0 %v1263
        %1265 = vmatprep.subr.mxu0 0.0
        %v1266 = vand.u32 %v312, 4294901760
        %1267 = vmatpush1.msra.mxu0 %v1266
        %1268 = vmatprep.subr.mxu0 0.0
        %v1269 = vand.u32 %v313, 4294901760
        %1270 = vmatpush1.msra.mxu0 %v1269
        %1271 = vmatprep.subr.mxu0 0.0
        %v1272 = vand.u32 %v314, 4294901760
        %1273 = vmatpush1.msra.mxu0 %v1272
        %1274 = vmatprep.subr.mxu0 0.0
        %v1275 = vand.u32 %v315, 4294901760
        %1276 = vmatpush1.msra.mxu0 %v1275
        %1277 = vmatprep.subr.mxu0 0.0
        %v1278 = vand.u32 %v316, 4294901760
        %1279 = vmatpush1.msra.mxu0 %v1278
        %1280 = vmatprep.subr.mxu0 0.0
        %v1281 = vand.u32 %v317, 4294901760
        %1282 = vmatpush1.msra.mxu0 %v1281
        %v1283 = vand.u32 %v253, 4294901760
        %v1284 = vsub.f32 %v253, %v1283
        %v1285 = vand.u32 %v1284, 4294901760
        %v1286 = vsub.f32 %v1284, %v1285
        %v1287 = vand.u32 %v1286, 4294901760
        %1288 = vmatprep.mubr.f32.mxu0 %v1287
        %v1289 = vand.u32 %v252, 4294901760
        %v1290 = vsub.f32 %v252, %v1289
        %v1291 = vand.u32 %v1290, 4294901760
        %v1292 = vsub.f32 %v1290, %v1291
        %v1293 = vand.u32 %v1292, 4294901760
        %1294 = vmatmul.mubr.f32.gmra.mrb[0].mxu0 %v1293
        %v1295 = vpop.f32.mrb[0].mxu0
        %v1296 = vadd.f32 %v1184, %v1295
        %v1297 = vpop.f32.mrb[0].mxu0
        %1298 = vdwg.mxu0
        %1299 = vmatprep.subr.mxu0 0.0
        %v1300 = vand.u32 %v286, 4294901760
        %v1301 = vsub.f32 %v286, %v1300
        %v1302 = vand.u32 %v1301, 4294901760
        %v1303 = vsub.f32 %v1301, %v1302
        %v1304 = vand.u32 %v1303, 4294901760
        %1305 = vmatpush1.msra.mxu0 %v1304
        %1306 = vmatprep.subr.mxu0 0.0
        %v1307 = vand.u32 %v287, 4294901760
        %v1308 = vsub.f32 %v287, %v1307
        %v1309 = vand.u32 %v1308, 4294901760
        %v1310 = vsub.f32 %v1308, %v1309
        %v1311 = vand.u32 %v1310, 4294901760
        %1312 = vmatpush1.msra.mxu0 %v1311
        %1313 = vmatprep.subr.mxu0 0.0
        %v1314 = vand.u32 %v288, 4294901760
        %v1315 = vsub.f32 %v288, %v1314
        %v1316 = vand.u32 %v1315, 4294901760
        %v1317 = vsub.f32 %v1315, %v1316
        %v1318 = vand.u32 %v1317, 4294901760
        %1319 = vmatpush1.msra.mxu0 %v1318
        %1320 = vmatprep.subr.mxu0 0.0
        %v1321 = vand.u32 %v289, 4294901760
        %v1322 = vsub.f32 %v289, %v1321
        %v1323 = vand.u32 %v1322, 4294901760
        %v1324 = vsub.f32 %v1322, %v1323
        %v1325 = vand.u32 %v1324, 4294901760
        %1326 = vmatpush1.msra.mxu0 %v1325
        %1327 = vmatprep.subr.mxu0 0.0
        %v1328 = vand.u32 %v290, 4294901760
        %v1329 = vsub.f32 %v290, %v1328
        %v1330 = vand.u32 %v1329, 4294901760
        %v1331 = vsub.f32 %v1329, %v1330
        %v1332 = vand.u32 %v1331, 4294901760
        %1333 = vmatpush1.msra.mxu0 %v1332
        %1334 = vmatprep.subr.mxu0 0.0
        %v1335 = vand.u32 %v291, 4294901760
        %v1336 = vsub.f32 %v291, %v1335
        %v1337 = vand.u32 %v1336, 4294901760
        %v1338 = vsub.f32 %v1336, %v1337
        %v1339 = vand.u32 %v1338, 4294901760
        %1340 = vmatpush1.msra.mxu0 %v1339
        %1341 = vmatprep.subr.mxu0 0.0
        %v1342 = vand.u32 %v292, 4294901760
        %v1343 = vsub.f32 %v292, %v1342
        %v1344 = vand.u32 %v1343, 4294901760
        %v1345 = vsub.f32 %v1343, %v1344
        %v1346 = vand.u32 %v1345, 4294901760
        %1347 = vmatpush1.msra.mxu0 %v1346
        %1348 = vmatprep.subr.mxu0 0.0
        %v1349 = vand.u32 %v293, 4294901760
        %v1350 = vsub.f32 %v293, %v1349
        %v1351 = vand.u32 %v1350, 4294901760
        %v1352 = vsub.f32 %v1350, %v1351
        %v1353 = vand.u32 %v1352, 4294901760
        %1354 = vmatpush1.msra.mxu0 %v1353
        %1355 = vmatprep.subr.mxu0 0.0
        %v1356 = vand.u32 %v294, 4294901760
        %v1357 = vsub.f32 %v294, %v1356
        %v1358 = vand.u32 %v1357, 4294901760
        %v1359 = vsub.f32 %v1357, %v1358
        %v1360 = vand.u32 %v1359, 4294901760
        %1361 = vmatpush1.msra.mxu0 %v1360
        %1362 = vmatprep.subr.mxu0 0.0
        %v1363 = vand.u32 %v295, 4294901760
        %v1364 = vsub.f32 %v295, %v1363
        %v1365 = vand.u32 %v1364, 4294901760
        %v1366 = vsub.f32 %v1364, %v1365
        %v1367 = vand.u32 %v1366, 4294901760
        %1368 = vmatpush1.msra.mxu0 %v1367
        %1369 = vmatprep.subr.mxu0 0.0
        %v1370 = vand.u32 %v296, 4294901760
        %v1371 = vsub.f32 %v296, %v1370
        %v1372 = vand.u32 %v1371, 4294901760
        %v1373 = vsub.f32 %v1371, %v1372
        %v1374 = vand.u32 %v1373, 4294901760
        %1375 = vmatpush1.msra.mxu0 %v1374
        %1376 = vmatprep.subr.mxu0 0.0
        %v1377 = vand.u32 %v297, 4294901760
        %v1378 = vsub.f32 %v297, %v1377
        %v1379 = vand.u32 %v1378, 4294901760
        %v1380 = vsub.f32 %v1378, %v1379
        %v1381 = vand.u32 %v1380, 4294901760
        %1382 = vmatpush1.msra.mxu0 %v1381
        %1383 = vmatprep.subr.mxu0 0.0
        %v1384 = vand.u32 %v298, 4294901760
        %v1385 = vsub.f32 %v298, %v1384
        %v1386 = vand.u32 %v1385, 4294901760
        %v1387 = vsub.f32 %v1385, %v1386
        %v1388 = vand.u32 %v1387, 4294901760
        %1389 = vmatpush1.msra.mxu0 %v1388
        %1390 = vmatprep.subr.mxu0 0.0
        %v1391 = vand.u32 %v299, 4294901760
        %v1392 = vsub.f32 %v299, %v1391
        %v1393 = vand.u32 %v1392, 4294901760
        %v1394 = vsub.f32 %v1392, %v1393
        %v1395 = vand.u32 %v1394, 4294901760
        %1396 = vmatpush1.msra.mxu0 %v1395
        %1397 = vmatprep.subr.mxu0 0.0
        %v1398 = vand.u32 %v300, 4294901760
        %v1399 = vsub.f32 %v300, %v1398
        %v1400 = vand.u32 %v1399, 4294901760
        %v1401 = vsub.f32 %v1399, %v1400
        %v1402 = vand.u32 %v1401, 4294901760
        %1403 = vmatpush1.msra.mxu0 %v1402
        %1404 = vmatprep.subr.mxu0 0.0
        %v1405 = vand.u32 %v301, 4294901760
        %v1406 = vsub.f32 %v301, %v1405
        %v1407 = vand.u32 %v1406, 4294901760
        %v1408 = vsub.f32 %v1406, %v1407
        %v1409 = vand.u32 %v1408, 4294901760
        %1410 = vmatpush1.msra.mxu0 %v1409
        %1411 = vmatprep.subr.mxu0 0.0
        %v1412 = vand.u32 %v302, 4294901760
        %v1413 = vsub.f32 %v302, %v1412
        %v1414 = vand.u32 %v1413, 4294901760
        %v1415 = vsub.f32 %v1413, %v1414
        %v1416 = vand.u32 %v1415, 4294901760
        %1417 = vmatpush1.msra.mxu0 %v1416
        %1418 = vmatprep.subr.mxu0 0.0
        %v1419 = vand.u32 %v303, 4294901760
        %v1420 = vsub.f32 %v303, %v1419
        %v1421 = vand.u32 %v1420, 4294901760
        %v1422 = vsub.f32 %v1420, %v1421
        %v1423 = vand.u32 %v1422, 4294901760
        %1424 = vmatpush1.msra.mxu0 %v1423
        %1425 = vmatprep.subr.mxu0 0.0
        %v1426 = vand.u32 %v304, 4294901760
        %v1427 = vsub.f32 %v304, %v1426
        %v1428 = vand.u32 %v1427, 4294901760
        %v1429 = vsub.f32 %v1427, %v1428
        %v1430 = vand.u32 %v1429, 4294901760
        %1431 = vmatpush1.msra.mxu0 %v1430
        %1432 = vmatprep.subr.mxu0 0.0
        %v1433 = vand.u32 %v305, 4294901760
        %v1434 = vsub.f32 %v305, %v1433
        %v1435 = vand.u32 %v1434, 4294901760
        %v1436 = vsub.f32 %v1434, %v1435
        %v1437 = vand.u32 %v1436, 4294901760
        %1438 = vmatpush1.msra.mxu0 %v1437
        %1439 = vmatprep.subr.mxu0 0.0
        %v1440 = vand.u32 %v306, 4294901760
        %v1441 = vsub.f32 %v306, %v1440
        %v1442 = vand.u32 %v1441, 4294901760
        %v1443 = vsub.f32 %v1441, %v1442
        %v1444 = vand.u32 %v1443, 4294901760
        %1445 = vmatpush1.msra.mxu0 %v1444
        %1446 = vmatprep.subr.mxu0 0.0
        %v1447 = vand.u32 %v307, 4294901760
        %v1448 = vsub.f32 %v307, %v1447
        %v1449 = vand.u32 %v1448, 4294901760
        %v1450 = vsub.f32 %v1448, %v1449
        %v1451 = vand.u32 %v1450, 4294901760
        %1452 = vmatpush1.msra.mxu0 %v1451
        %1453 = vmatprep.subr.mxu0 0.0
        %v1454 = vand.u32 %v308, 4294901760
        %v1455 = vsub.f32 %v308, %v1454
        %v1456 = vand.u32 %v1455, 4294901760
        %v1457 = vsub.f32 %v1455, %v1456
        %v1458 = vand.u32 %v1457, 4294901760
        %1459 = vmatpush1.msra.mxu0 %v1458
        %1460 = vmatprep.subr.mxu0 0.0
        %v1461 = vand.u32 %v309, 4294901760
        %v1462 = vsub.f32 %v309, %v1461
        %v1463 = vand.u32 %v1462, 4294901760
        %v1464 = vsub.f32 %v1462, %v1463
        %v1465 = vand.u32 %v1464, 4294901760
        %1466 = vmatpush1.msra.mxu0 %v1465
        %1467 = vmatprep.subr.mxu0 0.0
        %v1468 = vand.u32 %v310, 4294901760
        %v1469 = vsub.f32 %v310, %v1468
        %v1470 = vand.u32 %v1469, 4294901760
        %v1471 = vsub.f32 %v1469, %v1470
        %v1472 = vand.u32 %v1471, 4294901760
        %1473 = vmatpush1.msra.mxu0 %v1472
        %1474 = vmatprep.subr.mxu0 0.0
        %v1475 = vand.u32 %v311, 4294901760
        %v1476 = vsub.f32 %v311, %v1475
        %v1477 = vand.u32 %v1476, 4294901760
        %v1478 = vsub.f32 %v1476, %v1477
        %v1479 = vand.u32 %v1478, 4294901760
        %1480 = vmatpush1.msra.mxu0 %v1479
        %1481 = vmatprep.subr.mxu0 0.0
        %v1482 = vand.u32 %v312, 4294901760
        %v1483 = vsub.f32 %v312, %v1482
        %v1484 = vand.u32 %v1483, 4294901760
        %v1485 = vsub.f32 %v1483, %v1484
        %v1486 = vand.u32 %v1485, 4294901760
        %1487 = vmatpush1.msra.mxu0 %v1486
        %1488 = vmatprep.subr.mxu0 0.0
        %v1489 = vand.u32 %v313, 4294901760
        %v1490 = vsub.f32 %v313, %v1489
        %v1491 = vand.u32 %v1490, 4294901760
        %v1492 = vsub.f32 %v1490, %v1491
        %v1493 = vand.u32 %v1492, 4294901760
        %1494 = vmatpush1.msra.mxu0 %v1493
        %1495 = vmatprep.subr.mxu0 0.0
        %v1496 = vand.u32 %v314, 4294901760
        %v1497 = vsub.f32 %v314, %v1496
        %v1498 = vand.u32 %v1497, 4294901760
        %v1499 = vsub.f32 %v1497, %v1498
        %v1500 = vand.u32 %v1499, 4294901760
        %1501 = vmatpush1.msra.mxu0 %v1500
        %1502 = vmatprep.subr.mxu0 0.0
        %v1503 = vand.u32 %v315, 4294901760
        %v1504 = vsub.f32 %v315, %v1503
        %v1505 = vand.u32 %v1504, 4294901760
        %v1506 = vsub.f32 %v1504, %v1505
        %v1507 = vand.u32 %v1506, 4294901760
        %1508 = vmatpush1.msra.mxu0 %v1507
        %1509 = vmatprep.subr.mxu0 0.0
        %v1510 = vand.u32 %v316, 4294901760
        %v1511 = vsub.f32 %v316, %v1510
        %v1512 = vand.u32 %v1511, 4294901760
        %v1513 = vsub.f32 %v1511, %v1512
        %v1514 = vand.u32 %v1513, 4294901760
        %1515 = vmatpush1.msra.mxu0 %v1514
        %1516 = vmatprep.subr.mxu0 0.0
        %v1517 = vand.u32 %v317, 4294901760
        %v1518 = vsub.f32 %v317, %v1517
        %v1519 = vand.u32 %v1518, 4294901760
        %v1520 = vsub.f32 %v1518, %v1519
        %v1521 = vand.u32 %v1520, 4294901760
        %1522 = vmatpush1.msra.mxu0 %v1521
        %v1523 = vand.u32 %v253, 4294901760
        %1524 = vmatprep.mubr.f32.mxu0 %v1523
        %v1525 = vand.u32 %v252, 4294901760
        %1526 = vmatmul.mubr.f32.gmra.mrb[0].mxu0 %v1525
        %v1527 = vpop.f32.mrb[0].mxu0
        %v1528 = vadd.f32 %v1296, %v1527
        %v1529 = vpop.f32.mrb[0].mxu0
        %1530 = vdwg.mxu0
        %1531 = vmatprep.subr.mxu0 0.0
        %v1532 = vand.u32 %v286, 4294901760
        %v1533 = vsub.f32 %v286, %v1532
        %1534 = vmatpush1.msra.mxu0 %v1533
        %1535 = vmatprep.subr.mxu0 0.0
        %v1536 = vand.u32 %v287, 4294901760
        %v1537 = vsub.f32 %v287, %v1536
        %1538 = vmatpush1.msra.mxu0 %v1537
        %1539 = vmatprep.subr.mxu0 0.0
        %v1540 = vand.u32 %v288, 4294901760
        %v1541 = vsub.f32 %v288, %v1540
        %1542 = vmatpush1.msra.mxu0 %v1541
        %1543 = vmatprep.subr.mxu0 0.0
        %v1544 = vand.u32 %v289, 4294901760
        %v1545 = vsub.f32 %v289, %v1544
        %1546 = vmatpush1.msra.mxu0 %v1545
        %1547 = vmatprep.subr.mxu0 0.0
        %v1548 = vand.u32 %v290, 4294901760
        %v1549 = vsub.f32 %v290, %v1548
        %1550 = vmatpush1.msra.mxu0 %v1549
        %1551 = vmatprep.subr.mxu0 0.0
        %v1552 = vand.u32 %v291, 4294901760
        %v1553 = vsub.f32 %v291, %v1552
        %1554 = vmatpush1.msra.mxu0 %v1553
        %1555 = vmatprep.subr.mxu0 0.0
        %v1556 = vand.u32 %v292, 4294901760
        %v1557 = vsub.f32 %v292, %v1556
        %1558 = vmatpush1.msra.mxu0 %v1557
        %1559 = vmatprep.subr.mxu0 0.0
        %v1560 = vand.u32 %v293, 4294901760
        %v1561 = vsub.f32 %v293, %v1560
        %1562 = vmatpush1.msra.mxu0 %v1561
        %1563 = vmatprep.subr.mxu0 0.0
        %v1564 = vand.u32 %v294, 4294901760
        %v1565 = vsub.f32 %v294, %v1564
        %1566 = vmatpush1.msra.mxu0 %v1565
        %1567 = vmatprep.subr.mxu0 0.0
        %v1568 = vand.u32 %v295, 4294901760
        %v1569 = vsub.f32 %v295, %v1568
        %1570 = vmatpush1.msra.mxu0 %v1569
        %1571 = vmatprep.subr.mxu0 0.0
        %v1572 = vand.u32 %v296, 4294901760
        %v1573 = vsub.f32 %v296, %v1572
        %1574 = vmatpush1.msra.mxu0 %v1573
        %1575 = vmatprep.subr.mxu0 0.0
        %v1576 = vand.u32 %v297, 4294901760
        %v1577 = vsub.f32 %v297, %v1576
        %1578 = vmatpush1.msra.mxu0 %v1577
        %1579 = vmatprep.subr.mxu0 0.0
        %v1580 = vand.u32 %v298, 4294901760
        %v1581 = vsub.f32 %v298, %v1580
        %1582 = vmatpush1.msra.mxu0 %v1581
        %1583 = vmatprep.subr.mxu0 0.0
        %v1584 = vand.u32 %v299, 4294901760
        %v1585 = vsub.f32 %v299, %v1584
        %1586 = vmatpush1.msra.mxu0 %v1585
        %1587 = vmatprep.subr.mxu0 0.0
        %v1588 = vand.u32 %v300, 4294901760
        %v1589 = vsub.f32 %v300, %v1588
        %1590 = vmatpush1.msra.mxu0 %v1589
        %1591 = vmatprep.subr.mxu0 0.0
        %v1592 = vand.u32 %v301, 4294901760
        %v1593 = vsub.f32 %v301, %v1592
        %1594 = vmatpush1.msra.mxu0 %v1593
        %1595 = vmatprep.subr.mxu0 0.0
        %v1596 = vand.u32 %v302, 4294901760
        %v1597 = vsub.f32 %v302, %v1596
        %1598 = vmatpush1.msra.mxu0 %v1597
        %1599 = vmatprep.subr.mxu0 0.0
        %v1600 = vand.u32 %v303, 4294901760
        %v1601 = vsub.f32 %v303, %v1600
        %1602 = vmatpush1.msra.mxu0 %v1601
        %1603 = vmatprep.subr.mxu0 0.0
        %v1604 = vand.u32 %v304, 4294901760
        %v1605 = vsub.f32 %v304, %v1604
        %1606 = vmatpush1.msra.mxu0 %v1605
        %1607 = vmatprep.subr.mxu0 0.0
        %v1608 = vand.u32 %v305, 4294901760
        %v1609 = vsub.f32 %v305, %v1608
        %1610 = vmatpush1.msra.mxu0 %v1609
        %1611 = vmatprep.subr.mxu0 0.0
        %v1612 = vand.u32 %v306, 4294901760
        %v1613 = vsub.f32 %v306, %v1612
        %1614 = vmatpush1.msra.mxu0 %v1613
        %1615 = vmatprep.subr.mxu0 0.0
        %v1616 = vand.u32 %v307, 4294901760
        %v1617 = vsub.f32 %v307, %v1616
        %1618 = vmatpush1.msra.mxu0 %v1617
        %1619 = vmatprep.subr.mxu0 0.0
        %v1620 = vand.u32 %v308, 4294901760
        %v1621 = vsub.f32 %v308, %v1620
        %1622 = vmatpush1.msra.mxu0 %v1621
        %1623 = vmatprep.subr.mxu0 0.0
        %v1624 = vand.u32 %v309, 4294901760
        %v1625 = vsub.f32 %v309, %v1624
        %1626 = vmatpush1.msra.mxu0 %v1625
        %1627 = vmatprep.subr.mxu0 0.0
        %v1628 = vand.u32 %v310, 4294901760
        %v1629 = vsub.f32 %v310, %v1628
        %1630 = vmatpush1.msra.mxu0 %v1629
        %1631 = vmatprep.subr.mxu0 0.0
        %v1632 = vand.u32 %v311, 4294901760
        %v1633 = vsub.f32 %v311, %v1632
        %1634 = vmatpush1.msra.mxu0 %v1633
        %1635 = vmatprep.subr.mxu0 0.0
        %v1636 = vand.u32 %v312, 4294901760
        %v1637 = vsub.f32 %v312, %v1636
        %1638 = vmatpush1.msra.mxu0 %v1637
        %1639 = vmatprep.subr.mxu0 0.0
        %v1640 = vand.u32 %v313, 4294901760
        %v1641 = vsub.f32 %v313, %v1640
        %1642 = vmatpush1.msra.mxu0 %v1641
        %1643 = vmatprep.subr.mxu0 0.0
        %v1644 = vand.u32 %v314, 4294901760
        %v1645 = vsub.f32 %v314, %v1644
        %1646 = vmatpush1.msra.mxu0 %v1645
        %1647 = vmatprep.subr.mxu0 0.0
        %v1648 = vand.u32 %v315, 4294901760
        %v1649 = vsub.f32 %v315, %v1648
        %1650 = vmatpush1.msra.mxu0 %v1649
        %1651 = vmatprep.subr.mxu0 0.0
        %v1652 = vand.u32 %v316, 4294901760
        %v1653 = vsub.f32 %v316, %v1652
        %1654 = vmatpush1.msra.mxu0 %v1653
        %1655 = vmatprep.subr.mxu0 0.0
        %v1656 = vand.u32 %v317, 4294901760
        %v1657 = vsub.f32 %v317, %v1656
        %1658 = vmatpush1.msra.mxu0 %v1657
        %v1659 = vand.u32 %v253, 4294901760
        %v1660 = vsub.f32 %v253, %v1659
        %1661 = vmatprep.mubr.f32.mxu0 %v1660
        %v1662 = vand.u32 %v252, 4294901760
        %v1663 = vsub.f32 %v252, %v1662
        %1664 = vmatmul.mubr.f32.gmra.mrb[0].mxu0 %v1663
        %v1665 = vpop.f32.mrb[0].mxu0
        %v1666 = vadd.f32 %v1528, %v1665
        %v1667 = vpop.f32.mrb[0].mxu0
        %1668 = vdwg.mxu0
        %1669 = vmatprep.subr.mxu0 0.0
        %v1670 = vand.u32 %v286, 4294901760
        %1671 = vmatpush1.msra.mxu0 %v1670
        %1672 = vmatprep.subr.mxu0 0.0
        %v1673 = vand.u32 %v287, 4294901760
        %1674 = vmatpush1.msra.mxu0 %v1673
        %1675 = vmatprep.subr.mxu0 0.0
        %v1676 = vand.u32 %v288, 4294901760
        %1677 = vmatpush1.msra.mxu0 %v1676
        %1678 = vmatprep.subr.mxu0 0.0
        %v1679 = vand.u32 %v289, 4294901760
        %1680 = vmatpush1.msra.mxu0 %v1679
        %1681 = vmatprep.subr.mxu0 0.0
        %v1682 = vand.u32 %v290, 4294901760
        %1683 = vmatpush1.msra.mxu0 %v1682
        %1684 = vmatprep.subr.mxu0 0.0
        %v1685 = vand.u32 %v291, 4294901760
        %1686 = vmatpush1.msra.mxu0 %v1685
        %1687 = vmatprep.subr.mxu0 0.0
        %v1688 = vand.u32 %v292, 4294901760
        %1689 = vmatpush1.msra.mxu0 %v1688
        %1690 = vmatprep.subr.mxu0 0.0
        %v1691 = vand.u32 %v293, 4294901760
        %1692 = vmatpush1.msra.mxu0 %v1691
        %1693 = vmatprep.subr.mxu0 0.0
        %v1694 = vand.u32 %v294, 4294901760
        %1695 = vmatpush1.msra.mxu0 %v1694
        %1696 = vmatprep.subr.mxu0 0.0
        %v1697 = vand.u32 %v295, 4294901760
        %1698 = vmatpush1.msra.mxu0 %v1697
        %1699 = vmatprep.subr.mxu0 0.0
        %v1700 = vand.u32 %v296, 4294901760
        %1701 = vmatpush1.msra.mxu0 %v1700
        %1702 = vmatprep.subr.mxu0 0.0
        %v1703 = vand.u32 %v297, 4294901760
        %1704 = vmatpush1.msra.mxu0 %v1703
        %1705 = vmatprep.subr.mxu0 0.0
        %v1706 = vand.u32 %v298, 4294901760
        %1707 = vmatpush1.msra.mxu0 %v1706
        %1708 = vmatprep.subr.mxu0 0.0
        %v1709 = vand.u32 %v299, 4294901760
        %1710 = vmatpush1.msra.mxu0 %v1709
        %1711 = vmatprep.subr.mxu0 0.0
        %v1712 = vand.u32 %v300, 4294901760
        %1713 = vmatpush1.msra.mxu0 %v1712
        %1714 = vmatprep.subr.mxu0 0.0
        %v1715 = vand.u32 %v301, 4294901760
        %1716 = vmatpush1.msra.mxu0 %v1715
        %1717 = vmatprep.subr.mxu0 0.0
        %v1718 = vand.u32 %v302, 4294901760
        %1719 = vmatpush1.msra.mxu0 %v1718
        %1720 = vmatprep.subr.mxu0 0.0
        %v1721 = vand.u32 %v303, 4294901760
        %1722 = vmatpush1.msra.mxu0 %v1721
        %1723 = vmatprep.subr.mxu0 0.0
        %v1724 = vand.u32 %v304, 4294901760
        %1725 = vmatpush1.msra.mxu0 %v1724
        %1726 = vmatprep.subr.mxu0 0.0
        %v1727 = vand.u32 %v305, 4294901760
        %1728 = vmatpush1.msra.mxu0 %v1727
        %1729 = vmatprep.subr.mxu0 0.0
        %v1730 = vand.u32 %v306, 4294901760
        %1731 = vmatpush1.msra.mxu0 %v1730
        %1732 = vmatprep.subr.mxu0 0.0
        %v1733 = vand.u32 %v307, 4294901760
        %1734 = vmatpush1.msra.mxu0 %v1733
        %1735 = vmatprep.subr.mxu0 0.0
        %v1736 = vand.u32 %v308, 4294901760
        %1737 = vmatpush1.msra.mxu0 %v1736
        %1738 = vmatprep.subr.mxu0 0.0
        %v1739 = vand.u32 %v309, 4294901760
        %1740 = vmatpush1.msra.mxu0 %v1739
        %1741 = vmatprep.subr.mxu0 0.0
        %v1742 = vand.u32 %v310, 4294901760
        %1743 = vmatpush1.msra.mxu0 %v1742
        %1744 = vmatprep.subr.mxu0 0.0
        %v1745 = vand.u32 %v311, 4294901760
        %1746 = vmatpush1.msra.mxu0 %v1745
        %1747 = vmatprep.subr.mxu0 0.0
        %v1748 = vand.u32 %v312, 4294901760
        %1749 = vmatpush1.msra.mxu0 %v1748
        %1750 = vmatprep.subr.mxu0 0.0
        %v1751 = vand.u32 %v313, 4294901760
        %1752 = vmatpush1.msra.mxu0 %v1751
        %1753 = vmatprep.subr.mxu0 0.0
        %v1754 = vand.u32 %v314, 4294901760
        %1755 = vmatpush1.msra.mxu0 %v1754
        %1756 = vmatprep.subr.mxu0 0.0
        %v1757 = vand.u32 %v315, 4294901760
        %1758 = vmatpush1.msra.mxu0 %v1757
        %1759 = vmatprep.subr.mxu0 0.0
        %v1760 = vand.u32 %v316, 4294901760
        %1761 = vmatpush1.msra.mxu0 %v1760
        %1762 = vmatprep.subr.mxu0 0.0
        %v1763 = vand.u32 %v317, 4294901760
        %1764 = vmatpush1.msra.mxu0 %v1763
        %v1765 = vand.u32 %v253, 4294901760
        %v1766 = vsub.f32 %v253, %v1765
        %v1767 = vand.u32 %v1766, 4294901760
        %1768 = vmatprep.mubr.f32.mxu0 %v1767
        %v1769 = vand.u32 %v252, 4294901760
        %v1770 = vsub.f32 %v252, %v1769
        %v1771 = vand.u32 %v1770, 4294901760
        %1772 = vmatmul.mubr.f32.gmra.mrb[0].mxu0 %v1771
        %v1773 = vpop.f32.mrb[0].mxu0
        %v1774 = vadd.f32 %v1666, %v1773
        %v1775 = vpop.f32.mrb[0].mxu0
        %1776 = vdwg.mxu0
        %1777 = vmatprep.subr.mxu0 0.0
        %v1778 = vand.u32 %v286, 4294901760
        %v1779 = vsub.f32 %v286, %v1778
        %v1780 = vand.u32 %v1779, 4294901760
        %1781 = vmatpush1.msra.mxu0 %v1780
        %1782 = vmatprep.subr.mxu0 0.0
        %v1783 = vand.u32 %v287, 4294901760
        %v1784 = vsub.f32 %v287, %v1783
        %v1785 = vand.u32 %v1784, 4294901760
        %1786 = vmatpush1.msra.mxu0 %v1785
        %1787 = vmatprep.subr.mxu0 0.0
        %v1788 = vand.u32 %v288, 4294901760
        %v1789 = vsub.f32 %v288, %v1788
        %v1790 = vand.u32 %v1789, 4294901760
        %1791 = vmatpush1.msra.mxu0 %v1790
        %1792 = vmatprep.subr.mxu0 0.0
        %v1793 = vand.u32 %v289, 4294901760
        %v1794 = vsub.f32 %v289, %v1793
        %v1795 = vand.u32 %v1794, 4294901760
        %1796 = vmatpush1.msra.mxu0 %v1795
        %1797 = vmatprep.subr.mxu0 0.0
        %v1798 = vand.u32 %v290, 4294901760
        %v1799 = vsub.f32 %v290, %v1798
        %v1800 = vand.u32 %v1799, 4294901760
        %1801 = vmatpush1.msra.mxu0 %v1800
        %1802 = vmatprep.subr.mxu0 0.0
        %v1803 = vand.u32 %v291, 4294901760
        %v1804 = vsub.f32 %v291, %v1803
        %v1805 = vand.u32 %v1804, 4294901760
        %1806 = vmatpush1.msra.mxu0 %v1805
        %1807 = vmatprep.subr.mxu0 0.0
        %v1808 = vand.u32 %v292, 4294901760
        %v1809 = vsub.f32 %v292, %v1808
        %v1810 = vand.u32 %v1809, 4294901760
        %1811 = vmatpush1.msra.mxu0 %v1810
        %1812 = vmatprep.subr.mxu0 0.0
        %v1813 = vand.u32 %v293, 4294901760
        %v1814 = vsub.f32 %v293, %v1813
        %v1815 = vand.u32 %v1814, 4294901760
        %1816 = vmatpush1.msra.mxu0 %v1815
        %1817 = vmatprep.subr.mxu0 0.0
        %v1818 = vand.u32 %v294, 4294901760
        %v1819 = vsub.f32 %v294, %v1818
        %v1820 = vand.u32 %v1819, 4294901760
        %1821 = vmatpush1.msra.mxu0 %v1820
        %1822 = vmatprep.subr.mxu0 0.0
        %v1823 = vand.u32 %v295, 4294901760
        %v1824 = vsub.f32 %v295, %v1823
        %v1825 = vand.u32 %v1824, 4294901760
        %1826 = vmatpush1.msra.mxu0 %v1825
        %1827 = vmatprep.subr.mxu0 0.0
        %v1828 = vand.u32 %v296, 4294901760
        %v1829 = vsub.f32 %v296, %v1828
        %v1830 = vand.u32 %v1829, 4294901760
        %1831 = vmatpush1.msra.mxu0 %v1830
        %1832 = vmatprep.subr.mxu0 0.0
        %v1833 = vand.u32 %v297, 4294901760
        %v1834 = vsub.f32 %v297, %v1833
        %v1835 = vand.u32 %v1834, 4294901760
        %1836 = vmatpush1.msra.mxu0 %v1835
        %1837 = vmatprep.subr.mxu0 0.0
        %v1838 = vand.u32 %v298, 4294901760
        %v1839 = vsub.f32 %v298, %v1838
        %v1840 = vand.u32 %v1839, 4294901760
        %1841 = vmatpush1.msra.mxu0 %v1840
        %1842 = vmatprep.subr.mxu0 0.0
        %v1843 = vand.u32 %v299, 4294901760
        %v1844 = vsub.f32 %v299, %v1843
        %v1845 = vand.u32 %v1844, 4294901760
        %1846 = vmatpush1.msra.mxu0 %v1845
        %1847 = vmatprep.subr.mxu0 0.0
        %v1848 = vand.u32 %v300, 4294901760
        %v1849 = vsub.f32 %v300, %v1848
        %v1850 = vand.u32 %v1849, 4294901760
        %1851 = vmatpush1.msra.mxu0 %v1850
        %1852 = vmatprep.subr.mxu0 0.0
        %v1853 = vand.u32 %v301, 4294901760
        %v1854 = vsub.f32 %v301, %v1853
        %v1855 = vand.u32 %v1854, 4294901760
        %1856 = vmatpush1.msra.mxu0 %v1855
        %1857 = vmatprep.subr.mxu0 0.0
        %v1858 = vand.u32 %v302, 4294901760
        %v1859 = vsub.f32 %v302, %v1858
        %v1860 = vand.u32 %v1859, 4294901760
        %1861 = vmatpush1.msra.mxu0 %v1860
        %1862 = vmatprep.subr.mxu0 0.0
        %v1863 = vand.u32 %v303, 4294901760
        %v1864 = vsub.f32 %v303, %v1863
        %v1865 = vand.u32 %v1864, 4294901760
        %1866 = vmatpush1.msra.mxu0 %v1865
        %1867 = vmatprep.subr.mxu0 0.0
        %v1868 = vand.u32 %v304, 4294901760
        %v1869 = vsub.f32 %v304, %v1868
        %v1870 = vand.u32 %v1869, 4294901760
        %1871 = vmatpush1.msra.mxu0 %v1870
        %1872 = vmatprep.subr.mxu0 0.0
        %v1873 = vand.u32 %v305, 4294901760
        %v1874 = vsub.f32 %v305, %v1873
        %v1875 = vand.u32 %v1874, 4294901760
        %1876 = vmatpush1.msra.mxu0 %v1875
        %1877 = vmatprep.subr.mxu0 0.0
        %v1878 = vand.u32 %v306, 4294901760
        %v1879 = vsub.f32 %v306, %v1878
        %v1880 = vand.u32 %v1879, 4294901760
        %1881 = vmatpush1.msra.mxu0 %v1880
        %1882 = vmatprep.subr.mxu0 0.0
        %v1883 = vand.u32 %v307, 4294901760
        %v1884 = vsub.f32 %v307, %v1883
        %v1885 = vand.u32 %v1884, 4294901760
        %1886 = vmatpush1.msra.mxu0 %v1885
        %1887 = vmatprep.subr.mxu0 0.0
        %v1888 = vand.u32 %v308, 4294901760
        %v1889 = vsub.f32 %v308, %v1888
        %v1890 = vand.u32 %v1889, 4294901760
        %1891 = vmatpush1.msra.mxu0 %v1890
        %1892 = vmatprep.subr.mxu0 0.0
        %v1893 = vand.u32 %v309, 4294901760
        %v1894 = vsub.f32 %v309, %v1893
        %v1895 = vand.u32 %v1894, 4294901760
        %1896 = vmatpush1.msra.mxu0 %v1895
        %1897 = vmatprep.subr.mxu0 0.0
        %v1898 = vand.u32 %v310, 4294901760
        %v1899 = vsub.f32 %v310, %v1898
        %v1900 = vand.u32 %v1899, 4294901760
        %1901 = vmatpush1.msra.mxu0 %v1900
        %1902 = vmatprep.subr.mxu0 0.0
        %v1903 = vand.u32 %v311, 4294901760
        %v1904 = vsub.f32 %v311, %v1903
        %v1905 = vand.u32 %v1904, 4294901760
        %1906 = vmatpush1.msra.mxu0 %v1905
        %1907 = vmatprep.subr.mxu0 0.0
        %v1908 = vand.u32 %v312, 4294901760
        %v1909 = vsub.f32 %v312, %v1908
        %v1910 = vand.u32 %v1909, 4294901760
        %1911 = vmatpush1.msra.mxu0 %v1910
        %1912 = vmatprep.subr.mxu0 0.0
        %v1913 = vand.u32 %v313, 4294901760
        %v1914 = vsub.f32 %v313, %v1913
        %v1915 = vand.u32 %v1914, 4294901760
        %1916 = vmatpush1.msra.mxu0 %v1915
        %1917 = vmatprep.subr.mxu0 0.0
        %v1918 = vand.u32 %v314, 4294901760
        %v1919 = vsub.f32 %v314, %v1918
        %v1920 = vand.u32 %v1919, 4294901760
        %1921 = vmatpush1.msra.mxu0 %v1920
        %1922 = vmatprep.subr.mxu0 0.0
        %v1923 = vand.u32 %v315, 4294901760
        %v1924 = vsub.f32 %v315, %v1923
        %v1925 = vand.u32 %v1924, 4294901760
        %1926 = vmatpush1.msra.mxu0 %v1925
        %1927 = vmatprep.subr.mxu0 0.0
        %v1928 = vand.u32 %v316, 4294901760
        %v1929 = vsub.f32 %v316, %v1928
        %v1930 = vand.u32 %v1929, 4294901760
        %1931 = vmatpush1.msra.mxu0 %v1930
        %1932 = vmatprep.subr.mxu0 0.0
        %v1933 = vand.u32 %v317, 4294901760
        %v1934 = vsub.f32 %v317, %v1933
        %v1935 = vand.u32 %v1934, 4294901760
        %1936 = vmatpush1.msra.mxu0 %v1935
        %v1937 = vand.u32 %v253, 4294901760
        %1938 = vmatprep.mubr.f32.mxu0 %v1937
        %v1939 = vand.u32 %v252, 4294901760
        %1940 = vmatmul.mubr.f32.gmra.mrb[0].mxu0 %v1939
        %v1941 = vpop.f32.mrb[0].mxu0
        %v1942 = vadd.f32 %v1774, %v1941
        %v1943 = vpop.f32.mrb[0].mxu0
        %1944 = vdwg.mxu0
        %1945 = vmatprep.subr.mxu0 0.0
        %v1946 = vand.u32 %v286, 4294901760
        %1947 = vmatpush1.msra.mxu0 %v1946
        %1948 = vmatprep.subr.mxu0 0.0
        %v1949 = vand.u32 %v287, 4294901760
        %1950 = vmatpush1.msra.mxu0 %v1949
        %1951 = vmatprep.subr.mxu0 0.0
        %v1952 = vand.u32 %v288, 4294901760
        %1953 = vmatpush1.msra.mxu0 %v1952
        %1954 = vmatprep.subr.mxu0 0.0
        %v1955 = vand.u32 %v289, 4294901760
        %1956 = vmatpush1.msra.mxu0 %v1955
        %1957 = vmatprep.subr.mxu0 0.0
        %v1958 = vand.u32 %v290, 4294901760
        %1959 = vmatpush1.msra.mxu0 %v1958
        %1960 = vmatprep.subr.mxu0 0.0
        %v1961 = vand.u32 %v291, 4294901760
        %1962 = vmatpush1.msra.mxu0 %v1961
        %1963 = vmatprep.subr.mxu0 0.0
        %v1964 = vand.u32 %v292, 4294901760
        %1965 = vmatpush1.msra.mxu0 %v1964
        %1966 = vmatprep.subr.mxu0 0.0
        %v1967 = vand.u32 %v293, 4294901760
        %1968 = vmatpush1.msra.mxu0 %v1967
        %1969 = vmatprep.subr.mxu0 0.0
        %v1970 = vand.u32 %v294, 4294901760
        %1971 = vmatpush1.msra.mxu0 %v1970
        %1972 = vmatprep.subr.mxu0 0.0
        %v1973 = vand.u32 %v295, 4294901760
        %1974 = vmatpush1.msra.mxu0 %v1973
        %1975 = vmatprep.subr.mxu0 0.0
        %v1976 = vand.u32 %v296, 4294901760
        %1977 = vmatpush1.msra.mxu0 %v1976
        %1978 = vmatprep.subr.mxu0 0.0
        %v1979 = vand.u32 %v297, 4294901760
        %1980 = vmatpush1.msra.mxu0 %v1979
        %1981 = vmatprep.subr.mxu0 0.0
        %v1982 = vand.u32 %v298, 4294901760
        %1983 = vmatpush1.msra.mxu0 %v1982
        %1984 = vmatprep.subr.mxu0 0.0
        %v1985 = vand.u32 %v299, 4294901760
        %1986 = vmatpush1.msra.mxu0 %v1985
        %1987 = vmatprep.subr.mxu0 0.0
        %v1988 = vand.u32 %v300, 4294901760
        %1989 = vmatpush1.msra.mxu0 %v1988
        %1990 = vmatprep.subr.mxu0 0.0
        %v1991 = vand.u32 %v301, 4294901760
        %1992 = vmatpush1.msra.mxu0 %v1991
        %1993 = vmatprep.subr.mxu0 0.0
        %v1994 = vand.u32 %v302, 4294901760
        %1995 = vmatpush1.msra.mxu0 %v1994
        %1996 = vmatprep.subr.mxu0 0.0
        %v1997 = vand.u32 %v303, 4294901760
        %1998 = vmatpush1.msra.mxu0 %v1997
        %1999 = vmatprep.subr.mxu0 0.0
        %v2000 = vand.u32 %v304, 4294901760
        %2001 = vmatpush1.msra.mxu0 %v2000
        %2002 = vmatprep.subr.mxu0 0.0
        %v2003 = vand.u32 %v305, 4294901760
        %2004 = vmatpush1.msra.mxu0 %v2003
        %2005 = vmatprep.subr.mxu0 0.0
        %v2006 = vand.u32 %v306, 4294901760
        %2007 = vmatpush1.msra.mxu0 %v2006
        %2008 = vmatprep.subr.mxu0 0.0
        %v2009 = vand.u32 %v307, 4294901760
        %2010 = vmatpush1.msra.mxu0 %v2009
        %2011 = vmatprep.subr.mxu0 0.0
        %v2012 = vand.u32 %v308, 4294901760
        %2013 = vmatpush1.msra.mxu0 %v2012
        %2014 = vmatprep.subr.mxu0 0.0
        %v2015 = vand.u32 %v309, 4294901760
        %2016 = vmatpush1.msra.mxu0 %v2015
        %2017 = vmatprep.subr.mxu0 0.0
        %v2018 = vand.u32 %v310, 4294901760
        %2019 = vmatpush1.msra.mxu0 %v2018
        %2020 = vmatprep.subr.mxu0 0.0
        %v2021 = vand.u32 %v311, 4294901760
        %2022 = vmatpush1.msra.mxu0 %v2021
        %2023 = vmatprep.subr.mxu0 0.0
        %v2024 = vand.u32 %v312, 4294901760
        %2025 = vmatpush1.msra.mxu0 %v2024
        %2026 = vmatprep.subr.mxu0 0.0
        %v2027 = vand.u32 %v313, 4294901760
        %2028 = vmatpush1.msra.mxu0 %v2027
        %2029 = vmatprep.subr.mxu0 0.0
        %v2030 = vand.u32 %v314, 4294901760
        %2031 = vmatpush1.msra.mxu0 %v2030
        %2032 = vmatprep.subr.mxu0 0.0
        %v2033 = vand.u32 %v315, 4294901760
        %2034 = vmatpush1.msra.mxu0 %v2033
        %2035 = vmatprep.subr.mxu0 0.0
        %v2036 = vand.u32 %v316, 4294901760
        %2037 = vmatpush1.msra.mxu0 %v2036
        %2038 = vmatprep.subr.mxu0 0.0
        %v2039 = vand.u32 %v317, 4294901760
        %2040 = vmatpush1.msra.mxu0 %v2039
        %v2041 = vand.u32 %v253, 4294901760
        %2042 = vmatprep.mubr.f32.mxu0 %v2041
        %v2043 = vand.u32 %v252, 4294901760
        %2044 = vmatmul.mubr.f32.gmra.mrb[0].mxu0 %v2043
        %v2045 = vpop.f32.mrb[0].mxu0
        %v2046 = vadd.f32 %v1942, %v2045
        %v2047 = vpop.f32.mrb[0].mxu0
        %2048 = vdwg.mxu0
        %v2049 = vmax.f32 %v2046, 0.0
        %v2050 = vld [vmem:[%s3] sm:$0x3]
        %v2051 = vld [vmem:[%s4] sm:$0x1]
        %v2053 = vlaneseq
        %v2054 = vshrl.u32 %v2053, 7
        %v2055 = vsub.s32 0, %v2054
        %v2056 = vrot.slane %v2051, %v2055
        %vm2058 = vcmask 15360
        %v2060 = vsel %vm2058, %v2049, 0
        %vm2062 = vcmask 1041408
        %v2064 = vsel %vm2062, %v2050, 0
        %2066 = vmatprep.subr.mxu0 0.0
        %v2067 = vand.u32 %v2064, 4294901760
        %2068 = vmatpush1.msra.mxu0 %v2067
        %2069 = vmatprep.subr.mxu0 0.0
        %2070 = vmatpush1.msra.mxu0 0.0
        %2071 = vmatprep.subr.mxu0 0.0
        %2072 = vmatpush1.msra.mxu0 0.0
        %2073 = vmatprep.subr.mxu0 0.0
        %2074 = vmatpush1.msra.mxu0 0.0
        %2075 = vmatprep.subr.mxu0 0.0
        %2076 = vmatpush1.msra.mxu0 0.0
        %2077 = vmatprep.subr.mxu0 0.0
        %2078 = vmatpush1.msra.mxu0 0.0
        %2079 = vmatprep.subr.mxu0 0.0
        %2080 = vmatpush1.msra.mxu0 0.0
        %2081 = vmatprep.subr.mxu0 0.0
        %2082 = vmatpush1.msra.mxu0 0.0
        %2083 = vmatprep.subr.mxu0 0.0
        %2084 = vmatpush1.msra.mxu0 0.0
        %2085 = vmatprep.subr.mxu0 0.0
        %2086 = vmatpush1.msra.mxu0 0.0
        %2087 = vmatprep.subr.mxu0 0.0
        %2088 = vmatpush1.msra.mxu0 0.0
        %2089 = vmatprep.subr.mxu0 0.0
        %2090 = vmatpush1.msra.mxu0 0.0
        %2091 = vmatprep.subr.mxu0 0.0
        %2092 = vmatpush1.msra.mxu0 0.0
        %2093 = vmatprep.subr.mxu0 0.0
        %2094 = vmatpush1.msra.mxu0 0.0
        %2095 = vmatprep.subr.mxu0 0.0
        %2096 = vmatpush1.msra.mxu0 0.0
        %2097 = vmatprep.subr.mxu0 0.0
        %2098 = vmatpush1.msra.mxu0 0.0
        %2099 = vmatprep.subr.mxu0 0.0
        %2100 = vmatpush1.msra.mxu0 0.0
        %2101 = vmatprep.subr.mxu0 0.0
        %2102 = vmatpush1.msra.mxu0 0.0
        %2103 = vmatprep.subr.mxu0 0.0
        %2104 = vmatpush1.msra.mxu0 0.0
        %2105 = vmatprep.subr.mxu0 0.0
        %2106 = vmatpush1.msra.mxu0 0.0
        %2107 = vmatprep.subr.mxu0 0.0
        %2108 = vmatpush1.msra.mxu0 0.0
        %2109 = vmatprep.subr.mxu0 0.0
        %2110 = vmatpush1.msra.mxu0 0.0
        %2111 = vmatprep.subr.mxu0 0.0
        %2112 = vmatpush1.msra.mxu0 0.0
        %2113 = vmatprep.subr.mxu0 0.0
        %2114 = vmatpush1.msra.mxu0 0.0
        %2115 = vmatprep.subr.mxu0 0.0
        %2116 = vmatpush1.msra.mxu0 0.0
        %2117 = vmatprep.subr.mxu0 0.0
        %2118 = vmatpush1.msra.mxu0 0.0
        %2119 = vmatprep.subr.mxu0 0.0
        %2120 = vmatpush1.msra.mxu0 0.0
        %2121 = vmatprep.subr.mxu0 0.0
        %2122 = vmatpush1.msra.mxu0 0.0
        %2123 = vmatprep.subr.mxu0 0.0
        %2124 = vmatpush1.msra.mxu0 0.0
        %2125 = vmatprep.subr.mxu0 0.0
        %2126 = vmatpush1.msra.mxu0 0.0
        %2127 = vmatprep.subr.mxu0 0.0
        %2128 = vmatpush1.msra.mxu0 0.0
        %2129 = vmatprep.subr.mxu0 0.0
        %2130 = vmatpush1.msra.mxu0 0.0
        %2131 = vmatprep.mubr.f32.mxu0 0.0
        %v2132 = vand.u32 %v2060, 4294901760
        %v2133 = vsub.f32 %v2060, %v2132
        %v2134 = vand.u32 %v2133, 4294901760
        %v2135 = vsub.f32 %v2133, %v2134
        %v2136 = vand.u32 %v2135, 4294901760
        %2137 = vmatmul.mubr.f32.gmra.mrb[0].mxu0 %v2136
        %v2138 = vpop.f32.mrb[0].mxu0
        %v2139 = vadd.f32 %v2056, %v2138
        %v2140 = vpop.f32.mrb[0].mxu0
        %2141 = vdwg.mxu0
        %2142 = vmatprep.subr.mxu0 0.0
        %v2143 = vand.u32 %v2064, 4294901760
        %v2144 = vsub.f32 %v2064, %v2143
        %v2145 = vand.u32 %v2144, 4294901760
        %v2146 = vsub.f32 %v2144, %v2145
        %v2147 = vand.u32 %v2146, 4294901760
        %2148 = vmatpush1.msra.mxu0 %v2147
        %2149 = vmatprep.subr.mxu0 0.0
        %2150 = vmatpush1.msra.mxu0 0.0
        %2151 = vmatprep.subr.mxu0 0.0
        %2152 = vmatpush1.msra.mxu0 0.0
        %2153 = vmatprep.subr.mxu0 0.0
        %2154 = vmatpush1.msra.mxu0 0.0
        %2155 = vmatprep.subr.mxu0 0.0
        %2156 = vmatpush1.msra.mxu0 0.0
        %2157 = vmatprep.subr.mxu0 0.0
        %2158 = vmatpush1.msra.mxu0 0.0
        %2159 = vmatprep.subr.mxu0 0.0
        %2160 = vmatpush1.msra.mxu0 0.0
        %2161 = vmatprep.subr.mxu0 0.0
        %2162 = vmatpush1.msra.mxu0 0.0
        %2163 = vmatprep.subr.mxu0 0.0
        %2164 = vmatpush1.msra.mxu0 0.0
        %2165 = vmatprep.subr.mxu0 0.0
        %2166 = vmatpush1.msra.mxu0 0.0
        %2167 = vmatprep.subr.mxu0 0.0
        %2168 = vmatpush1.msra.mxu0 0.0
        %2169 = vmatprep.subr.mxu0 0.0
        %2170 = vmatpush1.msra.mxu0 0.0
        %2171 = vmatprep.subr.mxu0 0.0
        %2172 = vmatpush1.msra.mxu0 0.0
        %2173 = vmatprep.subr.mxu0 0.0
        %2174 = vmatpush1.msra.mxu0 0.0
        %2175 = vmatprep.subr.mxu0 0.0
        %2176 = vmatpush1.msra.mxu0 0.0
        %2177 = vmatprep.subr.mxu0 0.0
        %2178 = vmatpush1.msra.mxu0 0.0
        %2179 = vmatprep.subr.mxu0 0.0
        %2180 = vmatpush1.msra.mxu0 0.0
        %2181 = vmatprep.subr.mxu0 0.0
        %2182 = vmatpush1.msra.mxu0 0.0
        %2183 = vmatprep.subr.mxu0 0.0
        %2184 = vmatpush1.msra.mxu0 0.0
        %2185 = vmatprep.subr.mxu0 0.0
        %2186 = vmatpush1.msra.mxu0 0.0
        %2187 = vmatprep.subr.mxu0 0.0
        %2188 = vmatpush1.msra.mxu0 0.0
        %2189 = vmatprep.subr.mxu0 0.0
        %2190 = vmatpush1.msra.mxu0 0.0
        %2191 = vmatprep.subr.mxu0 0.0
        %2192 = vmatpush1.msra.mxu0 0.0
        %2193 = vmatprep.subr.mxu0 0.0
        %2194 = vmatpush1.msra.mxu0 0.0
        %2195 = vmatprep.subr.mxu0 0.0
        %2196 = vmatpush1.msra.mxu0 0.0
        %2197 = vmatprep.subr.mxu0 0.0
        %2198 = vmatpush1.msra.mxu0 0.0
        %2199 = vmatprep.subr.mxu0 0.0
        %2200 = vmatpush1.msra.mxu0 0.0
        %2201 = vmatprep.subr.mxu0 0.0
        %2202 = vmatpush1.msra.mxu0 0.0
        %2203 = vmatprep.subr.mxu0 0.0
        %2204 = vmatpush1.msra.mxu0 0.0
        %2205 = vmatprep.subr.mxu0 0.0
        %2206 = vmatpush1.msra.mxu0 0.0
        %2207 = vmatprep.subr.mxu0 0.0
        %2208 = vmatpush1.msra.mxu0 0.0
        %2209 = vmatprep.subr.mxu0 0.0
        %2210 = vmatpush1.msra.mxu0 0.0
        %2211 = vmatprep.mubr.f32.mxu0 0.0
        %v2212 = vand.u32 %v2060, 4294901760
        %2213 = vmatmul.mubr.f32.gmra.mrb[0].mxu0 %v2212
        %v2214 = vpop.f32.mrb[0].mxu0
        %v2215 = vadd.f32 %v2139, %v2214
        %v2216 = vpop.f32.mrb[0].mxu0
        %2217 = vdwg.mxu0
        %2218 = vmatprep.subr.mxu0 0.0
        %v2219 = vand.u32 %v2064, 4294901760
        %v2220 = vsub.f32 %v2064, %v2219
        %2221 = vmatpush1.msra.mxu0 %v2220
        %2222 = vmatprep.subr.mxu0 0.0
        %2223 = vmatpush1.msra.mxu0 0.0
        %2224 = vmatprep.subr.mxu0 0.0
        %2225 = vmatpush1.msra.mxu0 0.0
        %2226 = vmatprep.subr.mxu0 0.0
        %2227 = vmatpush1.msra.mxu0 0.0
        %2228 = vmatprep.subr.mxu0 0.0
        %2229 = vmatpush1.msra.mxu0 0.0
        %2230 = vmatprep.subr.mxu0 0.0
        %2231 = vmatpush1.msra.mxu0 0.0
        %2232 = vmatprep.subr.mxu0 0.0
        %2233 = vmatpush1.msra.mxu0 0.0
        %2234 = vmatprep.subr.mxu0 0.0
        %2235 = vmatpush1.msra.mxu0 0.0
        %2236 = vmatprep.subr.mxu0 0.0
        %2237 = vmatpush1.msra.mxu0 0.0
        %2238 = vmatprep.subr.mxu0 0.0
        %2239 = vmatpush1.msra.mxu0 0.0
        %2240 = vmatprep.subr.mxu0 0.0
        %2241 = vmatpush1.msra.mxu0 0.0
        %2242 = vmatprep.subr.mxu0 0.0
        %2243 = vmatpush1.msra.mxu0 0.0
        %2244 = vmatprep.subr.mxu0 0.0
        %2245 = vmatpush1.msra.mxu0 0.0
        %2246 = vmatprep.subr.mxu0 0.0
        %2247 = vmatpush1.msra.mxu0 0.0
        %2248 = vmatprep.subr.mxu0 0.0
        %2249 = vmatpush1.msra.mxu0 0.0
        %2250 = vmatprep.subr.mxu0 0.0
        %2251 = vmatpush1.msra.mxu0 0.0
        %2252 = vmatprep.subr.mxu0 0.0
        %2253 = vmatpush1.msra.mxu0 0.0
        %2254 = vmatprep.subr.mxu0 0.0
        %2255 = vmatpush1.msra.mxu0 0.0
        %2256 = vmatprep.subr.mxu0 0.0
        %2257 = vmatpush1.msra.mxu0 0.0
        %2258 = vmatprep.subr.mxu0 0.0
        %2259 = vmatpush1.msra.mxu0 0.0
        %2260 = vmatprep.subr.mxu0 0.0
        %2261 = vmatpush1.msra.mxu0 0.0
        %2262 = vmatprep.subr.mxu0 0.0
        %2263 = vmatpush1.msra.mxu0 0.0
        %2264 = vmatprep.subr.mxu0 0.0
        %2265 = vmatpush1.msra.mxu0 0.0
        %2266 = vmatprep.subr.mxu0 0.0
        %2267 = vmatpush1.msra.mxu0 0.0
        %2268 = vmatprep.subr.mxu0 0.0
        %2269 = vmatpush1.msra.mxu0 0.0
        %2270 = vmatprep.subr.mxu0 0.0
        %2271 = vmatpush1.msra.mxu0 0.0
        %2272 = vmatprep.subr.mxu0 0.0
        %2273 = vmatpush1.msra.mxu0 0.0
        %2274 = vmatprep.subr.mxu0 0.0
        %2275 = vmatpush1.msra.mxu0 0.0
        %2276 = vmatprep.subr.mxu0 0.0
        %2277 = vmatpush1.msra.mxu0 0.0
        %2278 = vmatprep.subr.mxu0 0.0
        %2279 = vmatpush1.msra.mxu0 0.0
        %2280 = vmatprep.subr.mxu0 0.0
        %2281 = vmatpush1.msra.mxu0 0.0
        %2282 = vmatprep.subr.mxu0 0.0
        %2283 = vmatpush1.msra.mxu0 0.0
        %2284 = vmatprep.mubr.f32.mxu0 0.0
        %v2285 = vand.u32 %v2060, 4294901760
        %v2286 = vsub.f32 %v2060, %v2285
        %2287 = vmatmul.mubr.f32.gmra.mrb[0].mxu0 %v2286
        %v2288 = vpop.f32.mrb[0].mxu0
        %v2289 = vadd.f32 %v2215, %v2288
        %v2290 = vpop.f32.mrb[0].mxu0
        %2291 = vdwg.mxu0
        %2292 = vmatprep.subr.mxu0 0.0
        %v2293 = vand.u32 %v2064, 4294901760
        %2294 = vmatpush1.msra.mxu0 %v2293
        %2295 = vmatprep.subr.mxu0 0.0
        %2296 = vmatpush1.msra.mxu0 0.0
        %2297 = vmatprep.subr.mxu0 0.0
        %2298 = vmatpush1.msra.mxu0 0.0
        %2299 = vmatprep.subr.mxu0 0.0
        %2300 = vmatpush1.msra.mxu0 0.0
        %2301 = vmatprep.subr.mxu0 0.0
        %2302 = vmatpush1.msra.mxu0 0.0
        %2303 = vmatprep.subr.mxu0 0.0
        %2304 = vmatpush1.msra.mxu0 0.0
        %2305 = vmatprep.subr.mxu0 0.0
        %2306 = vmatpush1.msra.mxu0 0.0
        %2307 = vmatprep.subr.mxu0 0.0
        %2308 = vmatpush1.msra.mxu0 0.0
        %2309 = vmatprep.subr.mxu0 0.0
        %2310 = vmatpush1.msra.mxu0 0.0
        %2311 = vmatprep.subr.mxu0 0.0
        %2312 = vmatpush1.msra.mxu0 0.0
        %2313 = vmatprep.subr.mxu0 0.0
        %2314 = vmatpush1.msra.mxu0 0.0
        %2315 = vmatprep.subr.mxu0 0.0
        %2316 = vmatpush1.msra.mxu0 0.0
        %2317 = vmatprep.subr.mxu0 0.0
        %2318 = vmatpush1.msra.mxu0 0.0
        %2319 = vmatprep.subr.mxu0 0.0
        %2320 = vmatpush1.msra.mxu0 0.0
        %2321 = vmatprep.subr.mxu0 0.0
        %2322 = vmatpush1.msra.mxu0 0.0
        %2323 = vmatprep.subr.mxu0 0.0
        %2324 = vmatpush1.msra.mxu0 0.0
        %2325 = vmatprep.subr.mxu0 0.0
        %2326 = vmatpush1.msra.mxu0 0.0
        %2327 = vmatprep.subr.mxu0 0.0
        %2328 = vmatpush1.msra.mxu0 0.0
        %2329 = vmatprep.subr.mxu0 0.0
        %2330 = vmatpush1.msra.mxu0 0.0
        %2331 = vmatprep.subr.mxu0 0.0
        %2332 = vmatpush1.msra.mxu0 0.0
        %2333 = vmatprep.subr.mxu0 0.0
        %2334 = vmatpush1.msra.mxu0 0.0
        %2335 = vmatprep.subr.mxu0 0.0
        %2336 = vmatpush1.msra.mxu0 0.0
        %2337 = vmatprep.subr.mxu0 0.0
        %2338 = vmatpush1.msra.mxu0 0.0
        %2339 = vmatprep.subr.mxu0 0.0
        %2340 = vmatpush1.msra.mxu0 0.0
        %2341 = vmatprep.subr.mxu0 0.0
        %2342 = vmatpush1.msra.mxu0 0.0
        %2343 = vmatprep.subr.mxu0 0.0
        %2344 = vmatpush1.msra.mxu0 0.0
        %2345 = vmatprep.subr.mxu0 0.0
        %2346 = vmatpush1.msra.mxu0 0.0
        %2347 = vmatprep.subr.mxu0 0.0
        %2348 = vmatpush1.msra.mxu0 0.0
        %2349 = vmatprep.subr.mxu0 0.0
        %2350 = vmatpush1.msra.mxu0 0.0
        %2351 = vmatprep.subr.mxu0 0.0
        %2352 = vmatpush1.msra.mxu0 0.0
        %2353 = vmatprep.subr.mxu0 0.0
        %2354 = vmatpush1.msra.mxu0 0.0
        %2355 = vmatprep.subr.mxu0 0.0
        %2356 = vmatpush1.msra.mxu0 0.0
        %2357 = vmatprep.mubr.f32.mxu0 0.0
        %v2358 = vand.u32 %v2060, 4294901760
        %v2359 = vsub.f32 %v2060, %v2358
        %v2360 = vand.u32 %v2359, 4294901760
        %2361 = vmatmul.mubr.f32.gmra.mrb[0].mxu0 %v2360
        %v2362 = vpop.f32.mrb[0].mxu0
        %v2363 = vadd.f32 %v2289, %v2362
        %v2364 = vpop.f32.mrb[0].mxu0
        %2365 = vdwg.mxu0
        %2366 = vmatprep.subr.mxu0 0.0
        %v2367 = vand.u32 %v2064, 4294901760
        %v2368 = vsub.f32 %v2064, %v2367
        %v2369 = vand.u32 %v2368, 4294901760
        %2370 = vmatpush1.msra.mxu0 %v2369
        %2371 = vmatprep.subr.mxu0 0.0
        %2372 = vmatpush1.msra.mxu0 0.0
        %2373 = vmatprep.subr.mxu0 0.0
        %2374 = vmatpush1.msra.mxu0 0.0
        %2375 = vmatprep.subr.mxu0 0.0
        %2376 = vmatpush1.msra.mxu0 0.0
        %2377 = vmatprep.subr.mxu0 0.0
        %2378 = vmatpush1.msra.mxu0 0.0
        %2379 = vmatprep.subr.mxu0 0.0
        %2380 = vmatpush1.msra.mxu0 0.0
        %2381 = vmatprep.subr.mxu0 0.0
        %2382 = vmatpush1.msra.mxu0 0.0
        %2383 = vmatprep.subr.mxu0 0.0
        %2384 = vmatpush1.msra.mxu0 0.0
        %2385 = vmatprep.subr.mxu0 0.0
        %2386 = vmatpush1.msra.mxu0 0.0
        %2387 = vmatprep.subr.mxu0 0.0
        %2388 = vmatpush1.msra.mxu0 0.0
        %2389 = vmatprep.subr.mxu0 0.0
        %2390 = vmatpush1.msra.mxu0 0.0
        %2391 = vmatprep.subr.mxu0 0.0
        %2392 = vmatpush1.msra.mxu0 0.0
        %2393 = vmatprep.subr.mxu0 0.0
        %2394 = vmatpush1.msra.mxu0 0.0
        %2395 = vmatprep.subr.mxu0 0.0
        %2396 = vmatpush1.msra.mxu0 0.0
        %2397 = vmatprep.subr.mxu0 0.0
        %2398 = vmatpush1.msra.mxu0 0.0
        %2399 = vmatprep.subr.mxu0 0.0
        %2400 = vmatpush1.msra.mxu0 0.0
        %2401 = vmatprep.subr.mxu0 0.0
        %2402 = vmatpush1.msra.mxu0 0.0
        %2403 = vmatprep.subr.mxu0 0.0
        %2404 = vmatpush1.msra.mxu0 0.0
        %2405 = vmatprep.subr.mxu0 0.0
        %2406 = vmatpush1.msra.mxu0 0.0
        %2407 = vmatprep.subr.mxu0 0.0
        %2408 = vmatpush1.msra.mxu0 0.0
        %2409 = vmatprep.subr.mxu0 0.0
        %2410 = vmatpush1.msra.mxu0 0.0
        %2411 = vmatprep.subr.mxu0 0.0
        %2412 = vmatpush1.msra.mxu0 0.0
        %2413 = vmatprep.subr.mxu0 0.0
        %2414 = vmatpush1.msra.mxu0 0.0
        %2415 = vmatprep.subr.mxu0 0.0
        %2416 = vmatpush1.msra.mxu0 0.0
        %2417 = vmatprep.subr.mxu0 0.0
        %2418 = vmatpush1.msra.mxu0 0.0
        %2419 = vmatprep.subr.mxu0 0.0
        %2420 = vmatpush1.msra.mxu0 0.0
        %2421 = vmatprep.subr.mxu0 0.0
        %2422 = vmatpush1.msra.mxu0 0.0
        %2423 = vmatprep.subr.mxu0 0.0
        %2424 = vmatpush1.msra.mxu0 0.0
        %2425 = vmatprep.subr.mxu0 0.0
        %2426 = vmatpush1.msra.mxu0 0.0
        %2427 = vmatprep.subr.mxu0 0.0
        %2428 = vmatpush1.msra.mxu0 0.0
        %2429 = vmatprep.subr.mxu0 0.0
        %2430 = vmatpush1.msra.mxu0 0.0
        %2431 = vmatprep.subr.mxu0 0.0
        %2432 = vmatpush1.msra.mxu0 0.0
        %2433 = vmatprep.mubr.f32.mxu0 0.0
        %v2434 = vand.u32 %v2060, 4294901760
        %2435 = vmatmul.mubr.f32.gmra.mrb[0].mxu0 %v2434
        %v2436 = vpop.f32.mrb[0].mxu0
        %v2437 = vadd.f32 %v2363, %v2436
        %v2438 = vpop.f32.mrb[0].mxu0
        %2439 = vdwg.mxu0
        %2440 = vmatprep.subr.mxu0 0.0
        %v2441 = vand.u32 %v2064, 4294901760
        %2442 = vmatpush1.msra.mxu0 %v2441
        %2443 = vmatprep.subr.mxu0 0.0
        %2444 = vmatpush1.msra.mxu0 0.0
        %2445 = vmatprep.subr.mxu0 0.0
        %2446 = vmatpush1.msra.mxu0 0.0
        %2447 = vmatprep.subr.mxu0 0.0
        %2448 = vmatpush1.msra.mxu0 0.0
        %2449 = vmatprep.subr.mxu0 0.0
        %2450 = vmatpush1.msra.mxu0 0.0
        %2451 = vmatprep.subr.mxu0 0.0
        %2452 = vmatpush1.msra.mxu0 0.0
        %2453 = vmatprep.subr.mxu0 0.0
        %2454 = vmatpush1.msra.mxu0 0.0
        %2455 = vmatprep.subr.mxu0 0.0
        %2456 = vmatpush1.msra.mxu0 0.0
        %2457 = vmatprep.subr.mxu0 0.0
        %2458 = vmatpush1.msra.mxu0 0.0
        %2459 = vmatprep.subr.mxu0 0.0
        %2460 = vmatpush1.msra.mxu0 0.0
        %2461 = vmatprep.subr.mxu0 0.0
        %2462 = vmatpush1.msra.mxu0 0.0
        %2463 = vmatprep.subr.mxu0 0.0
        %2464 = vmatpush1.msra.mxu0 0.0
        %2465 = vmatprep.subr.mxu0 0.0
        %2466 = vmatpush1.msra.mxu0 0.0
        %2467 = vmatprep.subr.mxu0 0.0
        %2468 = vmatpush1.msra.mxu0 0.0
        %2469 = vmatprep.subr.mxu0 0.0
        %2470 = vmatpush1.msra.mxu0 0.0
        %2471 = vmatprep.subr.mxu0 0.0
        %2472 = vmatpush1.msra.mxu0 0.0
        %2473 = vmatprep.subr.mxu0 0.0
        %2474 = vmatpush1.msra.mxu0 0.0
        %2475 = vmatprep.subr.mxu0 0.0
        %2476 = vmatpush1.msra.mxu0 0.0
        %2477 = vmatprep.subr.mxu0 0.0
        %2478 = vmatpush1.msra.mxu0 0.0
        %2479 = vmatprep.subr.mxu0 0.0
        %2480 = vmatpush1.msra.mxu0 0.0
        %2481 = vmatprep.subr.mxu0 0.0
        %2482 = vmatpush1.msra.mxu0 0.0
        %2483 = vmatprep.subr.mxu0 0.0
        %2484 = vmatpush1.msra.mxu0 0.0
        %2485 = vmatprep.subr.mxu0 0.0
        %2486 = vmatpush1.msra.mxu0 0.0
        %2487 = vmatprep.subr.mxu0 0.0
        %2488 = vmatpush1.msra.mxu0 0.0
        %2489 = vmatprep.subr.mxu0 0.0
        %2490 = vmatpush1.msra.mxu0 0.0
        %2491 = vmatprep.subr.mxu0 0.0
        %2492 = vmatpush1.msra.mxu0 0.0
        %2493 = vmatprep.subr.mxu0 0.0
        %2494 = vmatpush1.msra.mxu0 0.0
        %2495 = vmatprep.subr.mxu0 0.0
        %2496 = vmatpush1.msra.mxu0 0.0
        %2497 = vmatprep.subr.mxu0 0.0
        %2498 = vmatpush1.msra.mxu0 0.0
        %2499 = vmatprep.subr.mxu0 0.0
        %2500 = vmatpush1.msra.mxu0 0.0
        %2501 = vmatprep.subr.mxu0 0.0
        %2502 = vmatpush1.msra.mxu0 0.0
        %2503 = vmatprep.subr.mxu0 0.0
        %2504 = vmatpush1.msra.mxu0 0.0
        %2505 = vmatprep.mubr.f32.mxu0 0.0
        %v2506 = vand.u32 %v2060, 4294901760
        %2507 = vmatmul.mubr.f32.gmra.mrb[0].mxu0 %v2506
        %v2508 = vpop.f32.mrb[0].mxu0
        %v2509 = vadd.f32 %v2437, %v2508
        %v2510 = vpop.f32.mrb[0].mxu0
        %2511 = vdwg.mxu0
        %v2512 = vxor.u32 %v2509, 2147483648
        %v2513 = vmul.f32 %v2512, 1.442695
        %v2514 = vpow.pop %v2513
        %v2515 = vadd.f32 %v2514, 1.0
        %v2516 = vrcp.pop %v2515
        %v2517 = vmul.f32 1.0, %v2516
        %v2518 = vld [vmem:[%s5] sm:$0xff]
        %v2519 = vld [vmem:[%s5 + $0x8] sm:$0xff]
        %v2520 = vld [vmem:[%s5 + $0x10] sm:$0xff]
        %v2521 = vld [vmem:[%s5 + $0x18] sm:$0xff]
        %v2522 = vld [vmem:[%s5 + $0x20] sm:$0xff]
        %v2523 = vld [vmem:[%s5 + $0x28] sm:$0xff]
        %v2524 = vld [vmem:[%s5 + $0x30] sm:$0xff]
        %v2525 = vld [vmem:[%s5 + $0x38] sm:$0xff]
        %v2526 = vld [vmem:[%s5 + $0x40] sm:$0xff]
        %v2527 = vld [vmem:[%s5 + $0x48] sm:$0xff]
        %v2528 = vld [vmem:[%s5 + $0x50] sm:$0xff]
        %v2529 = vld [vmem:[%s5 + $0x58] sm:$0xff]
        %v2530 = vld [vmem:[%s5 + $0x60] sm:$0xff]
        %v2531 = vld [vmem:[%s5 + $0x68] sm:$0xff]
        %v2532 = vld [vmem:[%s5 + $0x70] sm:$0xff]
        %v2533 = vld [vmem:[%s5 + $0x78] sm:$0xff]
        %vm2534 = vcmask 261120
        %v2536 = vsel %vm2534, %v2517, 0
        %v2538 = vand.u32 %v2519, 4294901760
        %2539 = vmatprep.subr.mxu0 %v2538
        %v2540 = vand.u32 %v2518, 4294901760
        %2541 = vmatpush1.msra.mxu0 %v2540
        %v2542 = vand.u32 %v2523, 4294901760
        %2543 = vmatprep.subr.mxu0 %v2542
        %v2544 = vand.u32 %v2522, 4294901760
        %2545 = vmatpush1.msra.mxu0 %v2544
        %v2546 = vand.u32 %v2527, 4294901760
        %2547 = vmatprep.subr.mxu0 %v2546
        %v2548 = vand.u32 %v2526, 4294901760
        %2549 = vmatpush1.msra.mxu0 %v2548
        %v2550 = vand.u32 %v2531, 4294901760
        %2551 = vmatprep.subr.mxu0 %v2550
        %v2552 = vand.u32 %v2530, 4294901760
        %2553 = vmatpush1.msra.mxu0 %v2552
        %2554 = vmatprep.subr.mxu0 0.0
        %2555 = vmatpush1.msra.mxu0 0.0
        %2556 = vmatprep.subr.mxu0 0.0
        %2557 = vmatpush1.msra.mxu0 0.0
        %2558 = vmatprep.subr.mxu0 0.0
        %2559 = vmatpush1.msra.mxu0 0.0
        %2560 = vmatprep.subr.mxu0 0.0
        %2561 = vmatpush1.msra.mxu0 0.0
        %2562 = vmatprep.subr.mxu0 0.0
        %2563 = vmatpush1.msra.mxu0 0.0
        %2564 = vmatprep.subr.mxu0 0.0
        %2565 = vmatpush1.msra.mxu0 0.0
        %2566 = vmatprep.subr.mxu0 0.0
        %2567 = vmatpush1.msra.mxu0 0.0
        %2568 = vmatprep.subr.mxu0 0.0
        %2569 = vmatpush1.msra.mxu0 0.0
        %2570 = vmatprep.subr.mxu0 0.0
        %2571 = vmatpush1.msra.mxu0 0.0
        %2572 = vmatprep.subr.mxu0 0.0
        %2573 = vmatpush1.msra.mxu0 0.0
        %2574 = vmatprep.subr.mxu0 0.0
        %2575 = vmatpush1.msra.mxu0 0.0
        %2576 = vmatprep.subr.mxu0 0.0
        %2577 = vmatpush1.msra.mxu0 0.0
        %2578 = vmatprep.subr.mxu0 0.0
        %2579 = vmatpush1.msra.mxu0 0.0
        %2580 = vmatprep.subr.mxu0 0.0
        %2581 = vmatpush1.msra.mxu0 0.0
        %2582 = vmatprep.subr.mxu0 0.0
        %2583 = vmatpush1.msra.mxu0 0.0
        %2584 = vmatprep.subr.mxu0 0.0
        %2585 = vmatpush1.msra.mxu0 0.0
        %2586 = vmatprep.subr.mxu0 0.0
        %2587 = vmatpush1.msra.mxu0 0.0
        %2588 = vmatprep.subr.mxu0 0.0
        %2589 = vmatpush1.msra.mxu0 0.0
        %2590 = vmatprep.subr.mxu0 0.0
        %2591 = vmatpush1.msra.mxu0 0.0
        %2592 = vmatprep.subr.mxu0 0.0
        %2593 = vmatpush1.msra.mxu0 0.0
        %2594 = vmatprep.subr.mxu0 0.0
        %2595 = vmatpush1.msra.mxu0 0.0
        %2596 = vmatprep.subr.mxu0 0.0
        %2597 = vmatpush1.msra.mxu0 0.0
        %2598 = vmatprep.subr.mxu0 0.0
        %2599 = vmatpush1.msra.mxu0 0.0
        %2600 = vmatprep.subr.mxu0 0.0
        %2601 = vmatpush1.msra.mxu0 0.0
        %2602 = vmatprep.subr.mxu0 0.0
        %2603 = vmatpush1.msra.mxu0 0.0
        %2604 = vmatprep.subr.mxu0 0.0
        %2605 = vmatpush1.msra.mxu0 0.0
        %2606 = vmatprep.subr.mxu0 0.0
        %2607 = vmatpush1.msra.mxu0 0.0
        %2608 = vmatprep.subr.mxu0 0.0
        %2609 = vmatpush1.msra.mxu0 0.0
        %2610 = vmatprep.mubr.f32.mxu0 0.0
        %v2611 = vand.u32 %v2536, 4294901760
        %v2612 = vsub.f32 %v2536, %v2611
        %v2613 = vand.u32 %v2612, 4294901760
        %v2614 = vsub.f32 %v2612, %v2613
        %v2615 = vand.u32 %v2614, 4294901760
        %2616 = vmatmul.mubr.f32.gmra.mrb[0].mxu0 %v2615
        %v2617 = vpop.f32.mrb[0].mxu0
        %v2618 = vadd.f32 0.0, %v2617
        %v2619 = vpop.f32.mrb[0].mxu0
        %v2620 = vadd.f32 0.0, %v2619
        %2621 = vdwg.mxu0
        %v2622 = vand.u32 %v2519, 4294901760
        %v2623 = vsub.f32 %v2519, %v2622
        %v2624 = vand.u32 %v2623, 4294901760
        %v2625 = vsub.f32 %v2623, %v2624
        %v2626 = vand.u32 %v2625, 4294901760
        %2627 = vmatprep.subr.mxu0 %v2626
        %v2628 = vand.u32 %v2518, 4294901760
        %v2629 = vsub.f32 %v2518, %v2628
        %v2630 = vand.u32 %v2629, 4294901760
        %v2631 = vsub.f32 %v2629, %v2630
        %v2632 = vand.u32 %v2631, 4294901760
        %2633 = vmatpush1.msra.mxu0 %v2632
        %v2634 = vand.u32 %v2523, 4294901760
        %v2635 = vsub.f32 %v2523, %v2634
        %v2636 = vand.u32 %v2635, 4294901760
        %v2637 = vsub.f32 %v2635, %v2636
        %v2638 = vand.u32 %v2637, 4294901760
        %2639 = vmatprep.subr.mxu0 %v2638
        %v2640 = vand.u32 %v2522, 4294901760
        %v2641 = vsub.f32 %v2522, %v2640
        %v2642 = vand.u32 %v2641, 4294901760
        %v2643 = vsub.f32 %v2641, %v2642
        %v2644 = vand.u32 %v2643, 4294901760
        %2645 = vmatpush1.msra.mxu0 %v2644
        %v2646 = vand.u32 %v2527, 4294901760
        %v2647 = vsub.f32 %v2527, %v2646
        %v2648 = vand.u32 %v2647, 4294901760
        %v2649 = vsub.f32 %v2647, %v2648
        %v2650 = vand.u32 %v2649, 4294901760
        %2651 = vmatprep.subr.mxu0 %v2650
        %v2652 = vand.u32 %v2526, 4294901760
        %v2653 = vsub.f32 %v2526, %v2652
        %v2654 = vand.u32 %v2653, 4294901760
        %v2655 = vsub.f32 %v2653, %v2654
        %v2656 = vand.u32 %v2655, 4294901760
        %2657 = vmatpush1.msra.mxu0 %v2656
        %v2658 = vand.u32 %v2531, 4294901760
        %v2659 = vsub.f32 %v2531, %v2658
        %v2660 = vand.u32 %v2659, 4294901760
        %v2661 = vsub.f32 %v2659, %v2660
        %v2662 = vand.u32 %v2661, 4294901760
        %2663 = vmatprep.subr.mxu0 %v2662
        %v2664 = vand.u32 %v2530, 4294901760
        %v2665 = vsub.f32 %v2530, %v2664
        %v2666 = vand.u32 %v2665, 4294901760
        %v2667 = vsub.f32 %v2665, %v2666
        %v2668 = vand.u32 %v2667, 4294901760
        %2669 = vmatpush1.msra.mxu0 %v2668
        %2670 = vmatprep.subr.mxu0 0.0
        %2671 = vmatpush1.msra.mxu0 0.0
        %2672 = vmatprep.subr.mxu0 0.0
        %2673 = vmatpush1.msra.mxu0 0.0
        %2674 = vmatprep.subr.mxu0 0.0
        %2675 = vmatpush1.msra.mxu0 0.0
        %2676 = vmatprep.subr.mxu0 0.0
        %2677 = vmatpush1.msra.mxu0 0.0
        %2678 = vmatprep.subr.mxu0 0.0
        %2679 = vmatpush1.msra.mxu0 0.0
        %2680 = vmatprep.subr.mxu0 0.0
        %2681 = vmatpush1.msra.mxu0 0.0
        %2682 = vmatprep.subr.mxu0 0.0
        %2683 = vmatpush1.msra.mxu0 0.0
        %2684 = vmatprep.subr.mxu0 0.0
        %2685 = vmatpush1.msra.mxu0 0.0
        %2686 = vmatprep.subr.mxu0 0.0
        %2687 = vmatpush1.msra.mxu0 0.0
        %2688 = vmatprep.subr.mxu0 0.0
        %2689 = vmatpush1.msra.mxu0 0.0
        %2690 = vmatprep.subr.mxu0 0.0
        %2691 = vmatpush1.msra.mxu0 0.0
        %2692 = vmatprep.subr.mxu0 0.0
        %2693 = vmatpush1.msra.mxu0 0.0
        %2694 = vmatprep.subr.mxu0 0.0
        %2695 = vmatpush1.msra.mxu0 0.0
        %2696 = vmatprep.subr.mxu0 0.0
        %2697 = vmatpush1.msra.mxu0 0.0
        %2698 = vmatprep.subr.mxu0 0.0
        %2699 = vmatpush1.msra.mxu0 0.0
        %2700 = vmatprep.subr.mxu0 0.0
        %2701 = vmatpush1.msra.mxu0 0.0
        %2702 = vmatprep.subr.mxu0 0.0
        %2703 = vmatpush1.msra.mxu0 0.0
        %2704 = vmatprep.subr.mxu0 0.0
        %2705 = vmatpush1.msra.mxu0 0.0
        %2706 = vmatprep.subr.mxu0 0.0
        %2707 = vmatpush1.msra.mxu0 0.0
        %2708 = vmatprep.subr.mxu0 0.0
        %2709 = vmatpush1.msra.mxu0 0.0
        %2710 = vmatprep.subr.mxu0 0.0
        %2711 = vmatpush1.msra.mxu0 0.0
        %2712 = vmatprep.subr.mxu0 0.0
        %2713 = vmatpush1.msra.mxu0 0.0
        %2714 = vmatprep.subr.mxu0 0.0
        %2715 = vmatpush1.msra.mxu0 0.0
        %2716 = vmatprep.subr.mxu0 0.0
        %2717 = vmatpush1.msra.mxu0 0.0
        %2718 = vmatprep.subr.mxu0 0.0
        %2719 = vmatpush1.msra.mxu0 0.0
        %2720 = vmatprep.subr.mxu0 0.0
        %2721 = vmatpush1.msra.mxu0 0.0
        %2722 = vmatprep.subr.mxu0 0.0
        %2723 = vmatpush1.msra.mxu0 0.0
        %2724 = vmatprep.subr.mxu0 0.0
        %2725 = vmatpush1.msra.mxu0 0.0
        %2726 = vmatprep.mubr.f32.mxu0 0.0
        %v2727 = vand.u32 %v2536, 4294901760
        %2728 = vmatmul.mubr.f32.gmra.mrb[0].mxu0 %v2727
        %v2729 = vpop.f32.mrb[0].mxu0
        %v2730 = vadd.f32 %v2618, %v2729
        %v2731 = vpop.f32.mrb[0].mxu0
        %v2732 = vadd.f32 %v2620, %v2731
        %2733 = vdwg.mxu0
        %v2734 = vand.u32 %v2519, 4294901760
        %v2735 = vsub.f32 %v2519, %v2734
        %2736 = vmatprep.subr.mxu0 %v2735
        %v2737 = vand.u32 %v2518, 4294901760
        %v2738 = vsub.f32 %v2518, %v2737
        %2739 = vmatpush1.msra.mxu0 %v2738
        %v2740 = vand.u32 %v2523, 4294901760
        %v2741 = vsub.f32 %v2523, %v2740
        %2742 = vmatprep.subr.mxu0 %v2741
        %v2743 = vand.u32 %v2522, 4294901760
        %v2744 = vsub.f32 %v2522, %v2743
        %2745 = vmatpush1.msra.mxu0 %v2744
        %v2746 = vand.u32 %v2527, 4294901760
        %v2747 = vsub.f32 %v2527, %v2746
        %2748 = vmatprep.subr.mxu0 %v2747
        %v2749 = vand.u32 %v2526, 4294901760
        %v2750 = vsub.f32 %v2526, %v2749
        %2751 = vmatpush1.msra.mxu0 %v2750
        %v2752 = vand.u32 %v2531, 4294901760
        %v2753 = vsub.f32 %v2531, %v2752
        %2754 = vmatprep.subr.mxu0 %v2753
        %v2755 = vand.u32 %v2530, 4294901760
        %v2756 = vsub.f32 %v2530, %v2755
        %2757 = vmatpush1.msra.mxu0 %v2756
        %2758 = vmatprep.subr.mxu0 0.0
        %2759 = vmatpush1.msra.mxu0 0.0
        %2760 = vmatprep.subr.mxu0 0.0
        %2761 = vmatpush1.msra.mxu0 0.0
        %2762 = vmatprep.subr.mxu0 0.0
        %2763 = vmatpush1.msra.mxu0 0.0
        %2764 = vmatprep.subr.mxu0 0.0
        %2765 = vmatpush1.msra.mxu0 0.0
        %2766 = vmatprep.subr.mxu0 0.0
        %2767 = vmatpush1.msra.mxu0 0.0
        %2768 = vmatprep.subr.mxu0 0.0
        %2769 = vmatpush1.msra.mxu0 0.0
        %2770 = vmatprep.subr.mxu0 0.0
        %2771 = vmatpush1.msra.mxu0 0.0
        %2772 = vmatprep.subr.mxu0 0.0
        %2773 = vmatpush1.msra.mxu0 0.0
        %2774 = vmatprep.subr.mxu0 0.0
        %2775 = vmatpush1.msra.mxu0 0.0
        %2776 = vmatprep.subr.mxu0 0.0
        %2777 = vmatpush1.msra.mxu0 0.0
        %2778 = vmatprep.subr.mxu0 0.0
        %2779 = vmatpush1.msra.mxu0 0.0
        %2780 = vmatprep.subr.mxu0 0.0
        %2781 = vmatpush1.msra.mxu0 0.0
        %2782 = vmatprep.subr.mxu0 0.0
        %2783 = vmatpush1.msra.mxu0 0.0
        %2784 = vmatprep.subr.mxu0 0.0
        %2785 = vmatpush1.msra.mxu0 0.0
        %2786 = vmatprep.subr.mxu0 0.0
        %2787 = vmatpush1.msra.mxu0 0.0
        %2788 = vmatprep.subr.mxu0 0.0
        %2789 = vmatpush1.msra.mxu0 0.0
        %2790 = vmatprep.subr.mxu0 0.0
        %2791 = vmatpush1.msra.mxu0 0.0
        %2792 = vmatprep.subr.mxu0 0.0
        %2793 = vmatpush1.msra.mxu0 0.0
        %2794 = vmatprep.subr.mxu0 0.0
        %2795 = vmatpush1.msra.mxu0 0.0
        %2796 = vmatprep.subr.mxu0 0.0
        %2797 = vmatpush1.msra.mxu0 0.0
        %2798 = vmatprep.subr.mxu0 0.0
        %2799 = vmatpush1.msra.mxu0 0.0
        %2800 = vmatprep.subr.mxu0 0.0
        %2801 = vmatpush1.msra.mxu0 0.0
        %2802 = vmatprep.subr.mxu0 0.0
        %2803 = vmatpush1.msra.mxu0 0.0
        %2804 = vmatprep.subr.mxu0 0.0
        %2805 = vmatpush1.msra.mxu0 0.0
        %2806 = vmatprep.subr.mxu0 0.0
        %2807 = vmatpush1.msra.mxu0 0.0
        %2808 = vmatprep.subr.mxu0 0.0
        %2809 = vmatpush1.msra.mxu0 0.0
        %2810 = vmatprep.subr.mxu0 0.0
        %2811 = vmatpush1.msra.mxu0 0.0
        %2812 = vmatprep.subr.mxu0 0.0
        %2813 = vmatpush1.msra.mxu0 0.0
        %2814 = vmatprep.mubr.f32.mxu0 0.0
        %v2815 = vand.u32 %v2536, 4294901760
        %v2816 = vsub.f32 %v2536, %v2815
        %2817 = vmatmul.mubr.f32.gmra.mrb[0].mxu0 %v2816
        %v2818 = vpop.f32.mrb[0].mxu0
        %v2819 = vadd.f32 %v2730, %v2818
        %v2820 = vpop.f32.mrb[0].mxu0
        %v2821 = vadd.f32 %v2732, %v2820
        %2822 = vdwg.mxu0
        %v2823 = vand.u32 %v2519, 4294901760
        %2824 = vmatprep.subr.mxu0 %v2823
        %v2825 = vand.u32 %v2518, 4294901760
        %2826 = vmatpush1.msra.mxu0 %v2825
        %v2827 = vand.u32 %v2523, 4294901760
        %2828 = vmatprep.subr.mxu0 %v2827
        %v2829 = vand.u32 %v2522, 4294901760
        %2830 = vmatpush1.msra.mxu0 %v2829
        %v2831 = vand.u32 %v2527, 4294901760
        %2832 = vmatprep.subr.mxu0 %v2831
        %v2833 = vand.u32 %v2526, 4294901760
        %2834 = vmatpush1.msra.mxu0 %v2833
        %v2835 = vand.u32 %v2531, 4294901760
        %2836 = vmatprep.subr.mxu0 %v2835
        %v2837 = vand.u32 %v2530, 4294901760
        %2838 = vmatpush1.msra.mxu0 %v2837
        %2839 = vmatprep.subr.mxu0 0.0
        %2840 = vmatpush1.msra.mxu0 0.0
        %2841 = vmatprep.subr.mxu0 0.0
        %2842 = vmatpush1.msra.mxu0 0.0
        %2843 = vmatprep.subr.mxu0 0.0
        %2844 = vmatpush1.msra.mxu0 0.0
        %2845 = vmatprep.subr.mxu0 0.0
        %2846 = vmatpush1.msra.mxu0 0.0
        %2847 = vmatprep.subr.mxu0 0.0
        %2848 = vmatpush1.msra.mxu0 0.0
        %2849 = vmatprep.subr.mxu0 0.0
        %2850 = vmatpush1.msra.mxu0 0.0
        %2851 = vmatprep.subr.mxu0 0.0
        %2852 = vmatpush1.msra.mxu0 0.0
        %2853 = vmatprep.subr.mxu0 0.0
        %2854 = vmatpush1.msra.mxu0 0.0
        %2855 = vmatprep.subr.mxu0 0.0
        %2856 = vmatpush1.msra.mxu0 0.0
        %2857 = vmatprep.subr.mxu0 0.0
        %2858 = vmatpush1.msra.mxu0 0.0
        %2859 = vmatprep.subr.mxu0 0.0
        %2860 = vmatpush1.msra.mxu0 0.0
        %2861 = vmatprep.subr.mxu0 0.0
        %2862 = vmatpush1.msra.mxu0 0.0
        %2863 = vmatprep.subr.mxu0 0.0
        %2864 = vmatpush1.msra.mxu0 0.0
        %2865 = vmatprep.subr.mxu0 0.0
        %2866 = vmatpush1.msra.mxu0 0.0
        %2867 = vmatprep.subr.mxu0 0.0
        %2868 = vmatpush1.msra.mxu0 0.0
        %2869 = vmatprep.subr.mxu0 0.0
        %2870 = vmatpush1.msra.mxu0 0.0
        %2871 = vmatprep.subr.mxu0 0.0
        %2872 = vmatpush1.msra.mxu0 0.0
        %2873 = vmatprep.subr.mxu0 0.0
        %2874 = vmatpush1.msra.mxu0 0.0
        %2875 = vmatprep.subr.mxu0 0.0
        %2876 = vmatpush1.msra.mxu0 0.0
        %2877 = vmatprep.subr.mxu0 0.0
        %2878 = vmatpush1.msra.mxu0 0.0
        %2879 = vmatprep.subr.mxu0 0.0
        %2880 = vmatpush1.msra.mxu0 0.0
        %2881 = vmatprep.subr.mxu0 0.0
        %2882 = vmatpush1.msra.mxu0 0.0
        %2883 = vmatprep.subr.mxu0 0.0
        %2884 = vmatpush1.msra.mxu0 0.0
        %2885 = vmatprep.subr.mxu0 0.0
        %2886 = vmatpush1.msra.mxu0 0.0
        %2887 = vmatprep.subr.mxu0 0.0
        %2888 = vmatpush1.msra.mxu0 0.0
        %2889 = vmatprep.subr.mxu0 0.0
        %2890 = vmatpush1.msra.mxu0 0.0
        %2891 = vmatprep.subr.mxu0 0.0
        %2892 = vmatpush1.msra.mxu0 0.0
        %2893 = vmatprep.subr.mxu0 0.0
        %2894 = vmatpush1.msra.mxu0 0.0
        %2895 = vmatprep.mubr.f32.mxu0 0.0
        %v2896 = vand.u32 %v2536, 4294901760
        %v2897 = vsub.f32 %v2536, %v2896
        %v2898 = vand.u32 %v2897, 4294901760
        %2899 = vmatmul.mubr.f32.gmra.mrb[0].mxu0 %v2898
        %v2900 = vpop.f32.mrb[0].mxu0
        %v2901 = vadd.f32 %v2819, %v2900
        %v2902 = vpop.f32.mrb[0].mxu0
        %v2903 = vadd.f32 %v2821, %v2902
        %2904 = vdwg.mxu0
        %v2905 = vand.u32 %v2519, 4294901760
        %v2906 = vsub.f32 %v2519, %v2905
        %v2907 = vand.u32 %v2906, 4294901760
        %2908 = vmatprep.subr.mxu0 %v2907
        %v2909 = vand.u32 %v2518, 4294901760
        %v2910 = vsub.f32 %v2518, %v2909
        %v2911 = vand.u32 %v2910, 4294901760
        %2912 = vmatpush1.msra.mxu0 %v2911
        %v2913 = vand.u32 %v2523, 4294901760
        %v2914 = vsub.f32 %v2523, %v2913
        %v2915 = vand.u32 %v2914, 4294901760
        %2916 = vmatprep.subr.mxu0 %v2915
        %v2917 = vand.u32 %v2522, 4294901760
        %v2918 = vsub.f32 %v2522, %v2917
        %v2919 = vand.u32 %v2918, 4294901760
        %2920 = vmatpush1.msra.mxu0 %v2919
        %v2921 = vand.u32 %v2527, 4294901760
        %v2922 = vsub.f32 %v2527, %v2921
        %v2923 = vand.u32 %v2922, 4294901760
        %2924 = vmatprep.subr.mxu0 %v2923
        %v2925 = vand.u32 %v2526, 4294901760
        %v2926 = vsub.f32 %v2526, %v2925
        %v2927 = vand.u32 %v2926, 4294901760
        %2928 = vmatpush1.msra.mxu0 %v2927
        %v2929 = vand.u32 %v2531, 4294901760
        %v2930 = vsub.f32 %v2531, %v2929
        %v2931 = vand.u32 %v2930, 4294901760
        %2932 = vmatprep.subr.mxu0 %v2931
        %v2933 = vand.u32 %v2530, 4294901760
        %v2934 = vsub.f32 %v2530, %v2933
        %v2935 = vand.u32 %v2934, 4294901760
        %2936 = vmatpush1.msra.mxu0 %v2935
        %2937 = vmatprep.subr.mxu0 0.0
        %2938 = vmatpush1.msra.mxu0 0.0
        %2939 = vmatprep.subr.mxu0 0.0
        %2940 = vmatpush1.msra.mxu0 0.0
        %2941 = vmatprep.subr.mxu0 0.0
        %2942 = vmatpush1.msra.mxu0 0.0
        %2943 = vmatprep.subr.mxu0 0.0
        %2944 = vmatpush1.msra.mxu0 0.0
        %2945 = vmatprep.subr.mxu0 0.0
        %2946 = vmatpush1.msra.mxu0 0.0
        %2947 = vmatprep.subr.mxu0 0.0
        %2948 = vmatpush1.msra.mxu0 0.0
        %2949 = vmatprep.subr.mxu0 0.0
        %2950 = vmatpush1.msra.mxu0 0.0
        %2951 = vmatprep.subr.mxu0 0.0
        %2952 = vmatpush1.msra.mxu0 0.0
        %2953 = vmatprep.subr.mxu0 0.0
        %2954 = vmatpush1.msra.mxu0 0.0
        %2955 = vmatprep.subr.mxu0 0.0
        %2956 = vmatpush1.msra.mxu0 0.0
        %2957 = vmatprep.subr.mxu0 0.0
        %2958 = vmatpush1.msra.mxu0 0.0
        %2959 = vmatprep.subr.mxu0 0.0
        %2960 = vmatpush1.msra.mxu0 0.0
        %2961 = vmatprep.subr.mxu0 0.0
        %2962 = vmatpush1.msra.mxu0 0.0
        %2963 = vmatprep.subr.mxu0 0.0
        %2964 = vmatpush1.msra.mxu0 0.0
        %2965 = vmatprep.subr.mxu0 0.0
        %2966 = vmatpush1.msra.mxu0 0.0
        %2967 = vmatprep.subr.mxu0 0.0
        %2968 = vmatpush1.msra.mxu0 0.0
        %2969 = vmatprep.subr.mxu0 0.0
        %2970 = vmatpush1.msra.mxu0 0.0
        %2971 = vmatprep.subr.mxu0 0.0
        %2972 = vmatpush1.msra.mxu0 0.0
        %2973 = vmatprep.subr.mxu0 0.0
        %2974 = vmatpush1.msra.mxu0 0.0
        %2975 = vmatprep.subr.mxu0 0.0
        %2976 = vmatpush1.msra.mxu0 0.0
        %2977 = vmatprep.subr.mxu0 0.0
        %2978 = vmatpush1.msra.mxu0 0.0
        %2979 = vmatprep.subr.mxu0 0.0
        %2980 = vmatpush1.msra.mxu0 0.0
        %2981 = vmatprep.subr.mxu0 0.0
        %2982 = vmatpush1.msra.mxu0 0.0
        %2983 = vmatprep.subr.mxu0 0.0
        %2984 = vmatpush1.msra.mxu0 0.0
        %2985 = vmatprep.subr.mxu0 0.0
        %2986 = vmatpush1.msra.mxu0 0.0
        %2987 = vmatprep.subr.mxu0 0.0
        %2988 = vmatpush1.msra.mxu0 0.0
        %2989 = vmatprep.subr.mxu0 0.0
        %2990 = vmatpush1.msra.mxu0 0.0
        %2991 = vmatprep.subr.mxu0 0.0
        %2992 = vmatpush1.msra.mxu0 0.0
        %2993 = vmatprep.mubr.f32.mxu0 0.0
        %v2994 = vand.u32 %v2536, 4294901760
        %2995 = vmatmul.mubr.f32.gmra.mrb[0].mxu0 %v2994
        %v2996 = vpop.f32.mrb[0].mxu0
        %v2997 = vadd.f32 %v2901, %v2996
        %v2998 = vpop.f32.mrb[0].mxu0
        %v2999 = vadd.f32 %v2903, %v2998
        %3000 = vdwg.mxu0
        %v3001 = vand.u32 %v2519, 4294901760
        %3002 = vmatprep.subr.mxu0 %v3001
        %v3003 = vand.u32 %v2518, 4294901760
        %3004 = vmatpush1.msra.mxu0 %v3003
        %v3005 = vand.u32 %v2523, 4294901760
        %3006 = vmatprep.subr.mxu0 %v3005
        %v3007 = vand.u32 %v2522, 4294901760
        %3008 = vmatpush1.msra.mxu0 %v3007
        %v3009 = vand.u32 %v2527, 4294901760
        %3010 = vmatprep.subr.mxu0 %v3009
        %v3011 = vand.u32 %v2526, 4294901760
        %3012 = vmatpush1.msra.mxu0 %v3011
        %v3013 = vand.u32 %v2531, 4294901760
        %3014 = vmatprep.subr.mxu0 %v3013
        %v3015 = vand.u32 %v2530, 4294901760
        %3016 = vmatpush1.msra.mxu0 %v3015
        %3017 = vmatprep.subr.mxu0 0.0
        %3018 = vmatpush1.msra.mxu0 0.0
        %3019 = vmatprep.subr.mxu0 0.0
        %3020 = vmatpush1.msra.mxu0 0.0
        %3021 = vmatprep.subr.mxu0 0.0
        %3022 = vmatpush1.msra.mxu0 0.0
        %3023 = vmatprep.subr.mxu0 0.0
        %3024 = vmatpush1.msra.mxu0 0.0
        %3025 = vmatprep.subr.mxu0 0.0
        %3026 = vmatpush1.msra.mxu0 0.0
        %3027 = vmatprep.subr.mxu0 0.0
        %3028 = vmatpush1.msra.mxu0 0.0
        %3029 = vmatprep.subr.mxu0 0.0
        %3030 = vmatpush1.msra.mxu0 0.0
        %3031 = vmatprep.subr.mxu0 0.0
        %3032 = vmatpush1.msra.mxu0 0.0
        %3033 = vmatprep.subr.mxu0 0.0
        %3034 = vmatpush1.msra.mxu0 0.0
        %3035 = vmatprep.subr.mxu0 0.0
        %3036 = vmatpush1.msra.mxu0 0.0
        %3037 = vmatprep.subr.mxu0 0.0
        %3038 = vmatpush1.msra.mxu0 0.0
        %3039 = vmatprep.subr.mxu0 0.0
        %3040 = vmatpush1.msra.mxu0 0.0
        %3041 = vmatprep.subr.mxu0 0.0
        %3042 = vmatpush1.msra.mxu0 0.0
        %3043 = vmatprep.subr.mxu0 0.0
        %3044 = vmatpush1.msra.mxu0 0.0
        %3045 = vmatprep.subr.mxu0 0.0
        %3046 = vmatpush1.msra.mxu0 0.0
        %3047 = vmatprep.subr.mxu0 0.0
        %3048 = vmatpush1.msra.mxu0 0.0
        %3049 = vmatprep.subr.mxu0 0.0
        %3050 = vmatpush1.msra.mxu0 0.0
        %3051 = vmatprep.subr.mxu0 0.0
        %3052 = vmatpush1.msra.mxu0 0.0
        %3053 = vmatprep.subr.mxu0 0.0
        %3054 = vmatpush1.msra.mxu0 0.0
        %3055 = vmatprep.subr.mxu0 0.0
        %3056 = vmatpush1.msra.mxu0 0.0
        %3057 = vmatprep.subr.mxu0 0.0
        %3058 = vmatpush1.msra.mxu0 0.0
        %3059 = vmatprep.subr.mxu0 0.0
        %3060 = vmatpush1.msra.mxu0 0.0
        %3061 = vmatprep.subr.mxu0 0.0
        %3062 = vmatpush1.msra.mxu0 0.0
        %3063 = vmatprep.subr.mxu0 0.0
        %3064 = vmatpush1.msra.mxu0 0.0
        %3065 = vmatprep.subr.mxu0 0.0
        %3066 = vmatpush1.msra.mxu0 0.0
        %3067 = vmatprep.subr.mxu0 0.0
        %3068 = vmatpush1.msra.mxu0 0.0
        %3069 = vmatprep.subr.mxu0 0.0
        %3070 = vmatpush1.msra.mxu0 0.0
        %3071 = vmatprep.subr.mxu0 0.0
        %3072 = vmatpush1.msra.mxu0 0.0
        %3073 = vmatprep.mubr.f32.mxu0 0.0
        %v3074 = vand.u32 %v2536, 4294901760
        %3075 = vmatmul.mubr.f32.gmra.mrb[0].mxu0 %v3074
        %v3076 = vpop.f32.mrb[0].mxu0
        %v3077 = vadd.f32 %v2997, %v3076
        %v3078 = vpop.f32.mrb[0].mxu0
        %v3079 = vadd.f32 %v2999, %v3078
        %3080 = vdwg.mxu0
        %v3081 = vand.u32 %v2521, 4294901760
        %3082 = vmatprep.subr.mxu0 %v3081
        %v3083 = vand.u32 %v2520, 4294901760
        %3084 = vmatpush1.msra.mxu0 %v3083
        %v3085 = vand.u32 %v2525, 4294901760
        %3086 = vmatprep.subr.mxu0 %v3085
        %v3087 = vand.u32 %v2524, 4294901760
        %3088 = vmatpush1.msra.mxu0 %v3087
        %v3089 = vand.u32 %v2529, 4294901760
        %3090 = vmatprep.subr.mxu0 %v3089
        %v3091 = vand.u32 %v2528, 4294901760
        %3092 = vmatpush1.msra.mxu0 %v3091
        %v3093 = vand.u32 %v2533, 4294901760
        %3094 = vmatprep.subr.mxu0 %v3093
        %v3095 = vand.u32 %v2532, 4294901760
        %3096 = vmatpush1.msra.mxu0 %v3095
        %3097 = vmatprep.subr.mxu0 0.0
        %3098 = vmatpush1.msra.mxu0 0.0
        %3099 = vmatprep.subr.mxu0 0.0
        %3100 = vmatpush1.msra.mxu0 0.0
        %3101 = vmatprep.subr.mxu0 0.0
        %3102 = vmatpush1.msra.mxu0 0.0
        %3103 = vmatprep.subr.mxu0 0.0
        %3104 = vmatpush1.msra.mxu0 0.0
        %3105 = vmatprep.subr.mxu0 0.0
        %3106 = vmatpush1.msra.mxu0 0.0
        %3107 = vmatprep.subr.mxu0 0.0
        %3108 = vmatpush1.msra.mxu0 0.0
        %3109 = vmatprep.subr.mxu0 0.0
        %3110 = vmatpush1.msra.mxu0 0.0
        %3111 = vmatprep.subr.mxu0 0.0
        %3112 = vmatpush1.msra.mxu0 0.0
        %3113 = vmatprep.subr.mxu0 0.0
        %3114 = vmatpush1.msra.mxu0 0.0
        %3115 = vmatprep.subr.mxu0 0.0
        %3116 = vmatpush1.msra.mxu0 0.0
        %3117 = vmatprep.subr.mxu0 0.0
        %3118 = vmatpush1.msra.mxu0 0.0
        %3119 = vmatprep.subr.mxu0 0.0
        %3120 = vmatpush1.msra.mxu0 0.0
        %3121 = vmatprep.subr.mxu0 0.0
        %3122 = vmatpush1.msra.mxu0 0.0
        %3123 = vmatprep.subr.mxu0 0.0
        %3124 = vmatpush1.msra.mxu0 0.0
        %3125 = vmatprep.subr.mxu0 0.0
        %3126 = vmatpush1.msra.mxu0 0.0
        %3127 = vmatprep.subr.mxu0 0.0
        %3128 = vmatpush1.msra.mxu0 0.0
        %3129 = vmatprep.subr.mxu0 0.0
        %3130 = vmatpush1.msra.mxu0 0.0
        %3131 = vmatprep.subr.mxu0 0.0
        %3132 = vmatpush1.msra.mxu0 0.0
        %3133 = vmatprep.subr.mxu0 0.0
        %3134 = vmatpush1.msra.mxu0 0.0
        %3135 = vmatprep.subr.mxu0 0.0
        %3136 = vmatpush1.msra.mxu0 0.0
        %3137 = vmatprep.subr.mxu0 0.0
        %3138 = vmatpush1.msra.mxu0 0.0
        %3139 = vmatprep.subr.mxu0 0.0
        %3140 = vmatpush1.msra.mxu0 0.0
        %3141 = vmatprep.subr.mxu0 0.0
        %3142 = vmatpush1.msra.mxu0 0.0
        %3143 = vmatprep.subr.mxu0 0.0
        %3144 = vmatpush1.msra.mxu0 0.0
        %3145 = vmatprep.subr.mxu0 0.0
        %3146 = vmatpush1.msra.mxu0 0.0
        %3147 = vmatprep.subr.mxu0 0.0
        %3148 = vmatpush1.msra.mxu0 0.0
        %3149 = vmatprep.subr.mxu0 0.0
        %3150 = vmatpush1.msra.mxu0 0.0
        %3151 = vmatprep.subr.mxu0 0.0
        %3152 = vmatpush1.msra.mxu0 0.0
        %3153 = vmatprep.mubr.f32.mxu0 0.0
        %v3154 = vand.u32 %v2536, 4294901760
        %v3155 = vsub.f32 %v2536, %v3154
        %v3156 = vand.u32 %v3155, 4294901760
        %v3157 = vsub.f32 %v3155, %v3156
        %v3158 = vand.u32 %v3157, 4294901760
        %3159 = vmatmul.mubr.f32.gmra.mrb[0].mxu0 %v3158
        %v3160 = vpop.f32.mrb[0].mxu0
        %v3161 = vadd.f32 0.0, %v3160
        %v3162 = vpop.f32.mrb[0].mxu0
        %v3163 = vadd.f32 0.0, %v3162
        %3164 = vdwg.mxu0
        %v3165 = vand.u32 %v2521, 4294901760
        %v3166 = vsub.f32 %v2521, %v3165
        %v3167 = vand.u32 %v3166, 4294901760
        %v3168 = vsub.f32 %v3166, %v3167
        %v3169 = vand.u32 %v3168, 4294901760
        %3170 = vmatprep.subr.mxu0 %v3169
        %v3171 = vand.u32 %v2520, 4294901760
        %v3172 = vsub.f32 %v2520, %v3171
        %v3173 = vand.u32 %v3172, 4294901760
        %v3174 = vsub.f32 %v3172, %v3173
        %v3175 = vand.u32 %v3174, 4294901760
        %3176 = vmatpush1.msra.mxu0 %v3175
        %v3177 = vand.u32 %v2525, 4294901760
        %v3178 = vsub.f32 %v2525, %v3177
        %v3179 = vand.u32 %v3178, 4294901760
        %v3180 = vsub.f32 %v3178, %v3179
        %v3181 = vand.u32 %v3180, 4294901760
        %3182 = vmatprep.subr.mxu0 %v3181
        %v3183 = vand.u32 %v2524, 4294901760
        %v3184 = vsub.f32 %v2524, %v3183
        %v3185 = vand.u32 %v3184, 4294901760
        %v3186 = vsub.f32 %v3184, %v3185
        %v3187 = vand.u32 %v3186, 4294901760
        %3188 = vmatpush1.msra.mxu0 %v3187
        %v3189 = vand.u32 %v2529, 4294901760
        %v3190 = vsub.f32 %v2529, %v3189
        %v3191 = vand.u32 %v3190, 4294901760
        %v3192 = vsub.f32 %v3190, %v3191
        %v3193 = vand.u32 %v3192, 4294901760
        %3194 = vmatprep.subr.mxu0 %v3193
        %v3195 = vand.u32 %v2528, 4294901760
        %v3196 = vsub.f32 %v2528, %v3195
        %v3197 = vand.u32 %v3196, 4294901760
        %v3198 = vsub.f32 %v3196, %v3197
        %v3199 = vand.u32 %v3198, 4294901760
        %3200 = vmatpush1.msra.mxu0 %v3199
        %v3201 = vand.u32 %v2533, 4294901760
        %v3202 = vsub.f32 %v2533, %v3201
        %v3203 = vand.u32 %v3202, 4294901760
        %v3204 = vsub.f32 %v3202, %v3203
        %v3205 = vand.u32 %v3204, 4294901760
        %3206 = vmatprep.subr.mxu0 %v3205
        %v3207 = vand.u32 %v2532, 4294901760
        %v3208 = vsub.f32 %v2532, %v3207
        %v3209 = vand.u32 %v3208, 4294901760
        %v3210 = vsub.f32 %v3208, %v3209
        %v3211 = vand.u32 %v3210, 4294901760
        %3212 = vmatpush1.msra.mxu0 %v3211
        %3213 = vmatprep.subr.mxu0 0.0
        %3214 = vmatpush1.msra.mxu0 0.0
        %3215 = vmatprep.subr.mxu0 0.0
        %3216 = vmatpush1.msra.mxu0 0.0
        %3217 = vmatprep.subr.mxu0 0.0
        %3218 = vmatpush1.msra.mxu0 0.0
        %3219 = vmatprep.subr.mxu0 0.0
        %3220 = vmatpush1.msra.mxu0 0.0
        %3221 = vmatprep.subr.mxu0 0.0
        %3222 = vmatpush1.msra.mxu0 0.0
        %3223 = vmatprep.subr.mxu0 0.0
        %3224 = vmatpush1.msra.mxu0 0.0
        %3225 = vmatprep.subr.mxu0 0.0
        %3226 = vmatpush1.msra.mxu0 0.0
        %3227 = vmatprep.subr.mxu0 0.0
        %3228 = vmatpush1.msra.mxu0 0.0
        %3229 = vmatprep.subr.mxu0 0.0
        %3230 = vmatpush1.msra.mxu0 0.0
        %3231 = vmatprep.subr.mxu0 0.0
        %3232 = vmatpush1.msra.mxu0 0.0
        %3233 = vmatprep.subr.mxu0 0.0
        %3234 = vmatpush1.msra.mxu0 0.0
        %3235 = vmatprep.subr.mxu0 0.0
        %3236 = vmatpush1.msra.mxu0 0.0
        %3237 = vmatprep.subr.mxu0 0.0
        %3238 = vmatpush1.msra.mxu0 0.0
        %3239 = vmatprep.subr.mxu0 0.0
        %3240 = vmatpush1.msra.mxu0 0.0
        %3241 = vmatprep.subr.mxu0 0.0
        %3242 = vmatpush1.msra.mxu0 0.0
        %3243 = vmatprep.subr.mxu0 0.0
        %3244 = vmatpush1.msra.mxu0 0.0
        %3245 = vmatprep.subr.mxu0 0.0
        %3246 = vmatpush1.msra.mxu0 0.0
        %3247 = vmatprep.subr.mxu0 0.0
        %3248 = vmatpush1.msra.mxu0 0.0
        %3249 = vmatprep.subr.mxu0 0.0
        %3250 = vmatpush1.msra.mxu0 0.0
        %3251 = vmatprep.subr.mxu0 0.0
        %3252 = vmatpush1.msra.mxu0 0.0
        %3253 = vmatprep.subr.mxu0 0.0
        %3254 = vmatpush1.msra.mxu0 0.0
        %3255 = vmatprep.subr.mxu0 0.0
        %3256 = vmatpush1.msra.mxu0 0.0
        %3257 = vmatprep.subr.mxu0 0.0
        %3258 = vmatpush1.msra.mxu0 0.0
        %3259 = vmatprep.subr.mxu0 0.0
        %3260 = vmatpush1.msra.mxu0 0.0
        %3261 = vmatprep.subr.mxu0 0.0
        %3262 = vmatpush1.msra.mxu0 0.0
        %3263 = vmatprep.subr.mxu0 0.0
        %3264 = vmatpush1.msra.mxu0 0.0
        %3265 = vmatprep.subr.mxu0 0.0
        %3266 = vmatpush1.msra.mxu0 0.0
        %3267 = vmatprep.subr.mxu0 0.0
        %3268 = vmatpush1.msra.mxu0 0.0
        %3269 = vmatprep.mubr.f32.mxu0 0.0
        %v3270 = vand.u32 %v2536, 4294901760
        %3271 = vmatmul.mubr.f32.gmra.mrb[0].mxu0 %v3270
        %v3272 = vpop.f32.mrb[0].mxu0
        %v3273 = vadd.f32 %v3161, %v3272
        %v3274 = vpop.f32.mrb[0].mxu0
        %v3275 = vadd.f32 %v3163, %v3274
        %3276 = vdwg.mxu0
        %v3277 = vand.u32 %v2521, 4294901760
        %v3278 = vsub.f32 %v2521, %v3277
        %3279 = vmatprep.subr.mxu0 %v3278
        %v3280 = vand.u32 %v2520, 4294901760
        %v3281 = vsub.f32 %v2520, %v3280
        %3282 = vmatpush1.msra.mxu0 %v3281
        %v3283 = vand.u32 %v2525, 4294901760
        %v3284 = vsub.f32 %v2525, %v3283
        %3285 = vmatprep.subr.mxu0 %v3284
        %v3286 = vand.u32 %v2524, 4294901760
        %v3287 = vsub.f32 %v2524, %v3286
        %3288 = vmatpush1.msra.mxu0 %v3287
        %v3289 = vand.u32 %v2529, 4294901760
        %v3290 = vsub.f32 %v2529, %v3289
        %3291 = vmatprep.subr.mxu0 %v3290
        %v3292 = vand.u32 %v2528, 4294901760
        %v3293 = vsub.f32 %v2528, %v3292
        %3294 = vmatpush1.msra.mxu0 %v3293
        %v3295 = vand.u32 %v2533, 4294901760
        %v3296 = vsub.f32 %v2533, %v3295
        %3297 = vmatprep.subr.mxu0 %v3296
        %v3298 = vand.u32 %v2532, 4294901760
        %v3299 = vsub.f32 %v2532, %v3298
        %3300 = vmatpush1.msra.mxu0 %v3299
        %3301 = vmatprep.subr.mxu0 0.0
        %3302 = vmatpush1.msra.mxu0 0.0
        %3303 = vmatprep.subr.mxu0 0.0
        %3304 = vmatpush1.msra.mxu0 0.0
        %3305 = vmatprep.subr.mxu0 0.0
        %3306 = vmatpush1.msra.mxu0 0.0
        %3307 = vmatprep.subr.mxu0 0.0
        %3308 = vmatpush1.msra.mxu0 0.0
        %3309 = vmatprep.subr.mxu0 0.0
        %3310 = vmatpush1.msra.mxu0 0.0
        %3311 = vmatprep.subr.mxu0 0.0
        %3312 = vmatpush1.msra.mxu0 0.0
        %3313 = vmatprep.subr.mxu0 0.0
        %3314 = vmatpush1.msra.mxu0 0.0
        %3315 = vmatprep.subr.mxu0 0.0
        %3316 = vmatpush1.msra.mxu0 0.0
        %3317 = vmatprep.subr.mxu0 0.0
        %3318 = vmatpush1.msra.mxu0 0.0
        %3319 = vmatprep.subr.mxu0 0.0
        %3320 = vmatpush1.msra.mxu0 0.0
        %3321 = vmatprep.subr.mxu0 0.0
        %3322 = vmatpush1.msra.mxu0 0.0
        %3323 = vmatprep.subr.mxu0 0.0
        %3324 = vmatpush1.msra.mxu0 0.0
        %3325 = vmatprep.subr.mxu0 0.0
        %3326 = vmatpush1.msra.mxu0 0.0
        %3327 = vmatprep.subr.mxu0 0.0
        %3328 = vmatpush1.msra.mxu0 0.0
        %3329 = vmatprep.subr.mxu0 0.0
        %3330 = vmatpush1.msra.mxu0 0.0
        %3331 = vmatprep.subr.mxu0 0.0
        %3332 = vmatpush1.msra.mxu0 0.0
        %3333 = vmatprep.subr.mxu0 0.0
        %3334 = vmatpush1.msra.mxu0 0.0
        %3335 = vmatprep.subr.mxu0 0.0
        %3336 = vmatpush1.msra.mxu0 0.0
        %3337 = vmatprep.subr.mxu0 0.0
        %3338 = vmatpush1.msra.mxu0 0.0
        %3339 = vmatprep.subr.mxu0 0.0
        %3340 = vmatpush1.msra.mxu0 0.0
        %3341 = vmatprep.subr.mxu0 0.0
        %3342 = vmatpush1.msra.mxu0 0.0
        %3343 = vmatprep.subr.mxu0 0.0
        %3344 = vmatpush1.msra.mxu0 0.0
        %3345 = vmatprep.subr.mxu0 0.0
        %3346 = vmatpush1.msra.mxu0 0.0
        %3347 = vmatprep.subr.mxu0 0.0
        %3348 = vmatpush1.msra.mxu0 0.0
        %3349 = vmatprep.subr.mxu0 0.0
        %3350 = vmatpush1.msra.mxu0 0.0
        %3351 = vmatprep.subr.mxu0 0.0
        %3352 = vmatpush1.msra.mxu0 0.0
        %3353 = vmatprep.subr.mxu0 0.0
        %3354 = vmatpush1.msra.mxu0 0.0
        %3355 = vmatprep.subr.mxu0 0.0
        %3356 = vmatpush1.msra.mxu0 0.0
        %3357 = vmatprep.mubr.f32.mxu0 0.0
        %v3358 = vand.u32 %v2536, 4294901760
        %v3359 = vsub.f32 %v2536, %v3358
        %3360 = vmatmul.mubr.f32.gmra.mrb[0].mxu0 %v3359
        %v3361 = vpop.f32.mrb[0].mxu0
        %v3362 = vadd.f32 %v3273, %v3361
        %v3363 = vpop.f32.mrb[0].mxu0
        %v3364 = vadd.f32 %v3275, %v3363
        %3365 = vdwg.mxu0
        %v3366 = vand.u32 %v2521, 4294901760
        %3367 = vmatprep.subr.mxu0 %v3366
        %v3368 = vand.u32 %v2520, 4294901760
        %3369 = vmatpush1.msra.mxu0 %v3368
        %v3370 = vand.u32 %v2525, 4294901760
        %3371 = vmatprep.subr.mxu0 %v3370
        %v3372 = vand.u32 %v2524, 4294901760
        %3373 = vmatpush1.msra.mxu0 %v3372
        %v3374 = vand.u32 %v2529, 4294901760
        %3375 = vmatprep.subr.mxu0 %v3374
        %v3376 = vand.u32 %v2528, 4294901760
        %3377 = vmatpush1.msra.mxu0 %v3376
        %v3378 = vand.u32 %v2533, 4294901760
        %3379 = vmatprep.subr.mxu0 %v3378
        %v3380 = vand.u32 %v2532, 4294901760
        %3381 = vmatpush1.msra.mxu0 %v3380
        %3382 = vmatprep.subr.mxu0 0.0
        %3383 = vmatpush1.msra.mxu0 0.0
        %3384 = vmatprep.subr.mxu0 0.0
        %3385 = vmatpush1.msra.mxu0 0.0
        %3386 = vmatprep.subr.mxu0 0.0
        %3387 = vmatpush1.msra.mxu0 0.0
        %3388 = vmatprep.subr.mxu0 0.0
        %3389 = vmatpush1.msra.mxu0 0.0
        %3390 = vmatprep.subr.mxu0 0.0
        %3391 = vmatpush1.msra.mxu0 0.0
        %3392 = vmatprep.subr.mxu0 0.0
        %3393 = vmatpush1.msra.mxu0 0.0
        %3394 = vmatprep.subr.mxu0 0.0
        %3395 = vmatpush1.msra.mxu0 0.0
        %3396 = vmatprep.subr.mxu0 0.0
        %3397 = vmatpush1.msra.mxu0 0.0
        %3398 = vmatprep.subr.mxu0 0.0
        %3399 = vmatpush1.msra.mxu0 0.0
        %3400 = vmatprep.subr.mxu0 0.0
        %3401 = vmatpush1.msra.mxu0 0.0
        %3402 = vmatprep.subr.mxu0 0.0
        %3403 = vmatpush1.msra.mxu0 0.0
        %3404 = vmatprep.subr.mxu0 0.0
        %3405 = vmatpush1.msra.mxu0 0.0
        %3406 = vmatprep.subr.mxu0 0.0
        %3407 = vmatpush1.msra.mxu0 0.0
        %3408 = vmatprep.subr.mxu0 0.0
        %3409 = vmatpush1.msra.mxu0 0.0
        %3410 = vmatprep.subr.mxu0 0.0
        %3411 = vmatpush1.msra.mxu0 0.0
        %3412 = vmatprep.subr.mxu0 0.0
        %3413 = vmatpush1.msra.mxu0 0.0
        %3414 = vmatprep.subr.mxu0 0.0
        %3415 = vmatpush1.msra.mxu0 0.0
        %3416 = vmatprep.subr.mxu0 0.0
        %3417 = vmatpush1.msra.mxu0 0.0
        %3418 = vmatprep.subr.mxu0 0.0
        %3419 = vmatpush1.msra.mxu0 0.0
        %3420 = vmatprep.subr.mxu0 0.0
        %3421 = vmatpush1.msra.mxu0 0.0
        %3422 = vmatprep.subr.mxu0 0.0
        %3423 = vmatpush1.msra.mxu0 0.0
        %3424 = vmatprep.subr.mxu0 0.0
        %3425 = vmatpush1.msra.mxu0 0.0
        %3426 = vmatprep.subr.mxu0 0.0
        %3427 = vmatpush1.msra.mxu0 0.0
        %3428 = vmatprep.subr.mxu0 0.0
        %3429 = vmatpush1.msra.mxu0 0.0
        %3430 = vmatprep.subr.mxu0 0.0
        %3431 = vmatpush1.msra.mxu0 0.0
        %3432 = vmatprep.subr.mxu0 0.0
        %3433 = vmatpush1.msra.mxu0 0.0
        %3434 = vmatprep.subr.mxu0 0.0
        %3435 = vmatpush1.msra.mxu0 0.0
        %3436 = vmatprep.subr.mxu0 0.0
        %3437 = vmatpush1.msra.mxu0 0.0
        %3438 = vmatprep.mubr.f32.mxu0 0.0
        %v3439 = vand.u32 %v2536, 4294901760
        %v3440 = vsub.f32 %v2536, %v3439
        %v3441 = vand.u32 %v3440, 4294901760
        %3442 = vmatmul.mubr.f32.gmra.mrb[0].mxu0 %v3441
        %v3443 = vpop.f32.mrb[0].mxu0
        %v3444 = vadd.f32 %v3362, %v3443
        %v3445 = vpop.f32.mrb[0].mxu0
        %v3446 = vadd.f32 %v3364, %v3445
        %3447 = vdwg.mxu0
        %v3448 = vand.u32 %v2521, 4294901760
        %v3449 = vsub.f32 %v2521, %v3448
        %v3450 = vand.u32 %v3449, 4294901760
        %3451 = vmatprep.subr.mxu0 %v3450
        %v3452 = vand.u32 %v2520, 4294901760
        %v3453 = vsub.f32 %v2520, %v3452
        %v3454 = vand.u32 %v3453, 4294901760
        %3455 = vmatpush1.msra.mxu0 %v3454
        %v3456 = vand.u32 %v2525, 4294901760
        %v3457 = vsub.f32 %v2525, %v3456
        %v3458 = vand.u32 %v3457, 4294901760
        %3459 = vmatprep.subr.mxu0 %v3458
        %v3460 = vand.u32 %v2524, 4294901760
        %v3461 = vsub.f32 %v2524, %v3460
        %v3462 = vand.u32 %v3461, 4294901760
        %3463 = vmatpush1.msra.mxu0 %v3462
        %v3464 = vand.u32 %v2529, 4294901760
        %v3465 = vsub.f32 %v2529, %v3464
        %v3466 = vand.u32 %v3465, 4294901760
        %3467 = vmatprep.subr.mxu0 %v3466
        %v3468 = vand.u32 %v2528, 4294901760
        %v3469 = vsub.f32 %v2528, %v3468
        %v3470 = vand.u32 %v3469, 4294901760
        %3471 = vmatpush1.msra.mxu0 %v3470
        %v3472 = vand.u32 %v2533, 4294901760
        %v3473 = vsub.f32 %v2533, %v3472
        %v3474 = vand.u32 %v3473, 4294901760
        %3475 = vmatprep.subr.mxu0 %v3474
        %v3476 = vand.u32 %v2532, 4294901760
        %v3477 = vsub.f32 %v2532, %v3476
        %v3478 = vand.u32 %v3477, 4294901760
        %3479 = vmatpush1.msra.mxu0 %v3478
        %3480 = vmatprep.subr.mxu0 0.0
        %3481 = vmatpush1.msra.mxu0 0.0
        %3482 = vmatprep.subr.mxu0 0.0
        %3483 = vmatpush1.msra.mxu0 0.0
        %3484 = vmatprep.subr.mxu0 0.0
        %3485 = vmatpush1.msra.mxu0 0.0
        %3486 = vmatprep.subr.mxu0 0.0
        %3487 = vmatpush1.msra.mxu0 0.0
        %3488 = vmatprep.subr.mxu0 0.0
        %3489 = vmatpush1.msra.mxu0 0.0
        %3490 = vmatprep.subr.mxu0 0.0
        %3491 = vmatpush1.msra.mxu0 0.0
        %3492 = vmatprep.subr.mxu0 0.0
        %3493 = vmatpush1.msra.mxu0 0.0
        %3494 = vmatprep.subr.mxu0 0.0
        %3495 = vmatpush1.msra.mxu0 0.0
        %3496 = vmatprep.subr.mxu0 0.0
        %3497 = vmatpush1.msra.mxu0 0.0
        %3498 = vmatprep.subr.mxu0 0.0
        %3499 = vmatpush1.msra.mxu0 0.0
        %3500 = vmatprep.subr.mxu0 0.0
        %3501 = vmatpush1.msra.mxu0 0.0
        %3502 = vmatprep.subr.mxu0 0.0
        %3503 = vmatpush1.msra.mxu0 0.0
        %3504 = vmatprep.subr.mxu0 0.0
        %3505 = vmatpush1.msra.mxu0 0.0
        %3506 = vmatprep.subr.mxu0 0.0
        %3507 = vmatpush1.msra.mxu0 0.0
        %3508 = vmatprep.subr.mxu0 0.0
        %3509 = vmatpush1.msra.mxu0 0.0
        %3510 = vmatprep.subr.mxu0 0.0
        %3511 = vmatpush1.msra.mxu0 0.0
        %3512 = vmatprep.subr.mxu0 0.0
        %3513 = vmatpush1.msra.mxu0 0.0
        %3514 = vmatprep.subr.mxu0 0.0
        %3515 = vmatpush1.msra.mxu0 0.0
        %3516 = vmatprep.subr.mxu0 0.0
        %3517 = vmatpush1.msra.mxu0 0.0
        %3518 = vmatprep.subr.mxu0 0.0
        %3519 = vmatpush1.msra.mxu0 0.0
        %3520 = vmatprep.subr.mxu0 0.0
        %3521 = vmatpush1.msra.mxu0 0.0
        %3522 = vmatprep.subr.mxu0 0.0
        %3523 = vmatpush1.msra.mxu0 0.0
        %3524 = vmatprep.subr.mxu0 0.0
        %3525 = vmatpush1.msra.mxu0 0.0
        %3526 = vmatprep.subr.mxu0 0.0
        %3527 = vmatpush1.msra.mxu0 0.0
        %3528 = vmatprep.subr.mxu0 0.0
        %3529 = vmatpush1.msra.mxu0 0.0
        %3530 = vmatprep.subr.mxu0 0.0
        %3531 = vmatpush1.msra.mxu0 0.0
        %3532 = vmatprep.subr.mxu0 0.0
        %3533 = vmatpush1.msra.mxu0 0.0
        %3534 = vmatprep.subr.mxu0 0.0
        %3535 = vmatpush1.msra.mxu0 0.0
        %3536 = vmatprep.mubr.f32.mxu0 0.0
        %v3537 = vand.u32 %v2536, 4294901760
        %3538 = vmatmul.mubr.f32.gmra.mrb[0].mxu0 %v3537
        %v3539 = vpop.f32.mrb[0].mxu0
        %v3540 = vadd.f32 %v3444, %v3539
        %v3541 = vpop.f32.mrb[0].mxu0
        %v3542 = vadd.f32 %v3446, %v3541
        %3543 = vdwg.mxu0
        %v3544 = vand.u32 %v2521, 4294901760
        %3545 = vmatprep.subr.mxu0 %v3544
        %v3546 = vand.u32 %v2520, 4294901760
        %3547 = vmatpush1.msra.mxu0 %v3546
        %v3548 = vand.u32 %v2525, 4294901760
        %3549 = vmatprep.subr.mxu0 %v3548
        %v3550 = vand.u32 %v2524, 4294901760
        %3551 = vmatpush1.msra.mxu0 %v3550
        %v3552 = vand.u32 %v2529, 4294901760
        %3553 = vmatprep.subr.mxu0 %v3552
        %v3554 = vand.u32 %v2528, 4294901760
        %3555 = vmatpush1.msra.mxu0 %v3554
        %v3556 = vand.u32 %v2533, 4294901760
        %3557 = vmatprep.subr.mxu0 %v3556
        %v3558 = vand.u32 %v2532, 4294901760
        %3559 = vmatpush1.msra.mxu0 %v3558
        %3560 = vmatprep.subr.mxu0 0.0
        %3561 = vmatpush1.msra.mxu0 0.0
        %3562 = vmatprep.subr.mxu0 0.0
        %3563 = vmatpush1.msra.mxu0 0.0
        %3564 = vmatprep.subr.mxu0 0.0
        %3565 = vmatpush1.msra.mxu0 0.0
        %3566 = vmatprep.subr.mxu0 0.0
        %3567 = vmatpush1.msra.mxu0 0.0
        %3568 = vmatprep.subr.mxu0 0.0
        %3569 = vmatpush1.msra.mxu0 0.0
        %3570 = vmatprep.subr.mxu0 0.0
        %3571 = vmatpush1.msra.mxu0 0.0
        %3572 = vmatprep.subr.mxu0 0.0
        %3573 = vmatpush1.msra.mxu0 0.0
        %3574 = vmatprep.subr.mxu0 0.0
        %3575 = vmatpush1.msra.mxu0 0.0
        %3576 = vmatprep.subr.mxu0 0.0
        %3577 = vmatpush1.msra.mxu0 0.0
        %3578 = vmatprep.subr.mxu0 0.0
        %3579 = vmatpush1.msra.mxu0 0.0
        %3580 = vmatprep.subr.mxu0 0.0
        %3581 = vmatpush1.msra.mxu0 0.0
        %3582 = vmatprep.subr.mxu0 0.0
        %3583 = vmatpush1.msra.mxu0 0.0
        %3584 = vmatprep.subr.mxu0 0.0
        %3585 = vmatpush1.msra.mxu0 0.0
        %3586 = vmatprep.subr.mxu0 0.0
        %3587 = vmatpush1.msra.mxu0 0.0
        %3588 = vmatprep.subr.mxu0 0.0
        %3589 = vmatpush1.msra.mxu0 0.0
        %3590 = vmatprep.subr.mxu0 0.0
        %3591 = vmatpush1.msra.mxu0 0.0
        %3592 = vmatprep.subr.mxu0 0.0
        %3593 = vmatpush1.msra.mxu0 0.0
        %3594 = vmatprep.subr.mxu0 0.0
        %3595 = vmatpush1.msra.mxu0 0.0
        %3596 = vmatprep.subr.mxu0 0.0
        %3597 = vmatpush1.msra.mxu0 0.0
        %3598 = vmatprep.subr.mxu0 0.0
        %3599 = vmatpush1.msra.mxu0 0.0
        %3600 = vmatprep.subr.mxu0 0.0
        %3601 = vmatpush1.msra.mxu0 0.0
        %3602 = vmatprep.subr.mxu0 0.0
        %3603 = vmatpush1.msra.mxu0 0.0
        %3604 = vmatprep.subr.mxu0 0.0
        %3605 = vmatpush1.msra.mxu0 0.0
        %3606 = vmatprep.subr.mxu0 0.0
        %3607 = vmatpush1.msra.mxu0 0.0
        %3608 = vmatprep.subr.mxu0 0.0
        %3609 = vmatpush1.msra.mxu0 0.0
        %3610 = vmatprep.subr.mxu0 0.0
        %3611 = vmatpush1.msra.mxu0 0.0
        %3612 = vmatprep.subr.mxu0 0.0
        %3613 = vmatpush1.msra.mxu0 0.0
        %3614 = vmatprep.subr.mxu0 0.0
        %3615 = vmatpush1.msra.mxu0 0.0
        %3616 = vmatprep.mubr.f32.mxu0 0.0
        %v3617 = vand.u32 %v2536, 4294901760
        %3618 = vmatmul.mubr.f32.gmra.mrb[0].mxu0 %v3617
        %v3619 = vpop.f32.mrb[0].mxu0
        %v3620 = vadd.f32 %v3540, %v3619
        %v3621 = vpop.f32.mrb[0].mxu0
        %v3622 = vadd.f32 %v3542, %v3621
        %3623 = vdwg.mxu0
        %v3624 = vmul.f32 %v250, %v3077
        %v3625 = vmul.f32 %v251, %v3079
        %v3626 = vmul.f32 %v252, %v3620
        %v3627 = vmul.f32 %v253, %v3622
        %3628 = vst [vmem:[%s244] sm:$0xff] %v3624
        %3629 = vst [vmem:[%s244 + $0x8] sm:$0xff] %v3625
        %3630 = vst [vmem:[%s244 + $0x10] sm:$0xff] %v3626
        %3631 = vst [vmem:[%s244 + $0x18] sm:$0xff] %v3627
        %s3632 = sand.u32 %s159, 1
        %s3633 = scalar_lea.sflag [#allocation3], %s3632
        %s3634 = sand.u32 %s159, 1
        %s3635 = smul.addr %s3634, 32
        %s3636 = scalar_lea.vmem [#allocation2], %s3635
        // Predicated region
        $region45: #{tpu_custom_call.1} parent=43 // pred_check
          %p3637 = pneg %p169
        $region46: #{tpu_custom_call.1} parent=43 // pred_check_branch
          %3639 = sbr.rel (%p3637) target = $region48
        $region47: #{tpu_custom_call.1} parent=43 // pred_region
          %s3641 = ssub.s32 512, 512
          %3642 = vsyncadd %s3633, %s3641
          %s3643 = smul.addr %s20, 4
          %s3644 = smul.addr %s3643, 128
          %s3645 = scalar_lea.hbm %s6, %s3644
          %s3647 = sshll.u32 %s3636, 4
          %s3648 = int_to_ptr.vmem [resolvable:$true] %s3647
          %3650 = dma.vmem_to_hbm [thread:$0]  %s3648, 512, %s3645, %s3633
        $region48: #{tpu_custom_call.1} parent=43 // pred_fallthru
          _
      $region44: #{tpu_custom_call.1} parent=5 // pred_fallthru
        _
      %p3651 = scmp.le.s32.totalorder 2, %s15
      // Predicated region
      $region49: #{tpu_custom_call.1} parent=5 // pred_check
        %p3652 = pneg %p3651
      $region50: #{tpu_custom_call.1} parent=5 // pred_check_branch
        %3654 = sbr.rel (%p3652) target = $region52
      $region51: #{tpu_custom_call.1} parent=5 // pred_region
        %s3655 = ssub.s32 %s15, 2
        // Predicated region
        $region53: #{tpu_custom_call.1} parent=51 // pred_check
          %p3656 = pneg %p175
        $region54: #{tpu_custom_call.1} parent=51 // pred_check_branch
          %3658 = sbr.rel (%p3656) target = $region56
        $region55: #{tpu_custom_call.1} parent=51 // pred_region
          %s3659 = sand.u32 %s160, 1
          %s3660 = scalar_lea.sflag [#allocation3], %s3659
          %s3661 = sand.u32 %s160, 1
          %s3662 = smul.addr %s3661, 32
          %s3663 = scalar_lea.vmem [#allocation2], %s3662
          %3664 = dma.done %s3660, 512
        $region56: #{tpu_custom_call.1} parent=51 // pred_fallthru
          _
      $region52: #{tpu_custom_call.1} parent=5 // pred_fallthru
        _
    $region6: #{tpu_custom_call.1} parent=1 // loop_footer
      %s19 = sadd.s32 1, %s15
    $region7: #{tpu_custom_call.1} parent=1 // loop_footer_branch
      %14 = sbr.rel target = $region3
    $region8: #{tpu_custom_call.1} parent=1 // loop_exit
      _
    %3665 = vsyncpa [#allocation3], 1
    %s3666 = scalar_lea.sflag [#allocation3], 1
    %3667 = vsyncpa %s3666, 1

</llo_original>
